<compile_context>
chip_gen: v7x
topology: tpu7x:2x2x1
jax: 0.10.0
libtpu: 0.0.40
codegen_flags: <defaults>
</compile_context>

<pallas_src>
import math
import functools

import jax
import jax.numpy as jnp
from jax.experimental import pallas as pl
from jax.experimental.pallas import tpu as pltpu

PAD_IDX = 0  # StatementsFactory.padding_idx


def _layer_norm(x, g, b, eps=1e-5):
    mu = jnp.mean(x, axis=-1, keepdims=True)
    var = jnp.mean((x - mu) ** 2, axis=-1, keepdims=True)
    return (x - mu) * jax.lax.rsqrt(var + eps) * g + b


def _pick_batch_tile(B):
    if B <= 8:
        return B
    for tb in (128, 64, 32, 16, 8):
        if B % tb == 0:
            return tb
    return B


def _pick_ent_tile(N):
    # Lane-dense entity tiles (multiple of 128) for large N; whole table else.
    if N <= 512:
        return N
    return 1024 if N >= 1024 else 512


# ----------------------------------------------------------------------------
# Fused kernel: encoder layers + masked mean pool + linear + entity scoring.
# grid = (batch_tiles [parallel], entity_tiles [arbitrary])
# ----------------------------------------------------------------------------
def fused_qualifier_forward(x, addmask, keep, stacked, lin_w_t, lin_b, ent_t,
                            *, n_heads):
    B, S, D = x.shape
    L = stacked["in_w_t"].shape[0]
    N = ent_t.shape[1]
    H = n_heads
    dh = D // H
    scale = 1.0 / math.sqrt(dh)

    TB = _pick_batch_tile(B)
    TN = _pick_ent_tile(N)
    n_pad = pl.cdiv(N, TN) * TN
    if n_pad != N:
        ent_t = jnp.pad(ent_t, ((0, 0), (0, n_pad - N)))
    grid = (B // TB, n_pad // TN)

    param_order = ["in_w_t", "in_b", "out_w_t", "out_b", "ln1_g", "ln1_b",
                   "ff1_w_t", "ff1_b", "ff2_w_t", "ff2_b", "ln2_g", "ln2_b"]
    param_vals = [stacked[k] for k in param_order]

    def kernel(x_ref, m_ref, keep_ref,
               in_w_ref, in_b_ref, out_w_ref, out_b_ref,
               ln1_g_ref, ln1_b_ref, ff1_w_ref, ff1_b_ref,
               ff2_w_ref, ff2_b_ref, ln2_g_ref, ln2_b_ref,
               lin_w_ref, lin_b_ref, ent_ref,
               o_ref, z_scr):
        j = pl.program_id(1)

        # Run the encoder + pool + linear only once per batch tile (first
        # entity tile); keep the result z resident in VMEM scratch.
        @pl.when(j == 0)
        def _():
            h2 = x_ref[...].reshape(TB * S, D)                  # (TB*S, D)
            # hoisted once: additive key mask broadcast to (TB, S, S)
            addm = jnp.broadcast_to(m_ref[...], (TB, S, S))

            for l in range(L):                                  # static unroll
                # fused QKV projection: one wide matmul, pre-transposed weight
                qkv = (jnp.dot(h2, in_w_ref[l],
                               preferred_element_type=jnp.float32)
                       + in_b_ref[l])                           # (TB*S, 3D)
                qkv3 = qkv.reshape(TB, S, 3 * D)

                ctx_heads = []
                for hh in range(H):                             # batched over TB
                    lo = hh * dh
                    qs = qkv3[:, :, lo:lo + dh]                 # (TB, S, dh)
                    ks = qkv3[:, :, D + lo:D + lo + dh]
                    vs = qkv3[:, :, 2 * D + lo:2 * D + lo + dh]
                    s = jnp.einsum('bqd,bkd->bqk', qs, ks,
                                   preferred_element_type=jnp.float32) * scale
                    s = s + addm
                    s = s - jnp.max(s, axis=-1, keepdims=True)
                    p = jnp.exp(s)
                    p = p * pl.reciprocal(
                        jnp.sum(p, axis=-1, keepdims=True), approx=True)
                    ctx_heads.append(
                        jnp.einsum('bqk,bkd->bqd', p, vs,
                                   preferred_element_type=jnp.float32))
                ctx = jnp.concatenate(ctx_heads, axis=-1).reshape(TB * S, D)

                attn = (jnp.dot(ctx, out_w_ref[l],
                                preferred_element_type=jnp.float32)
                        + out_b_ref[l])
                h2 = _layer_norm(h2 + attn, ln1_g_ref[l], ln1_b_ref[l])

                ff = jnp.maximum(
                    jnp.dot(h2, ff1_w_ref[l],
                            preferred_element_type=jnp.float32) + ff1_b_ref[l],
                    0.0)
                ff = (jnp.dot(ff, ff2_w_ref[l],
                              preferred_element_type=jnp.float32)
                      + ff2_b_ref[l])
                h2 = _layer_norm(h2 + ff, ln2_g_ref[l], ln2_b_ref[l])

            # masked mean pool (clamp_min(1.0)) + linear_transformation
            y3 = h2.reshape(TB, S, D)
            kp = keep_ref[...]                                  # (TB, S, 1)
            denom = jnp.maximum(jnp.sum(kp, axis=1), 1.0)       # (TB, 1)
            pooled = jnp.sum(kp * y3, axis=1) * pl.reciprocal(denom, approx=True)
            z_scr[...] = (jnp.dot(pooled, lin_w_ref[...],
                                  preferred_element_type=jnp.float32)
                          + lin_b_ref[...])                     # (TB, D)

        # score this entity tile: (TB, D) x (D, TN) -> (TB, TN)
        o_ref[...] = jnp.dot(z_scr[...], ent_ref[...],
                             preferred_element_type=jnp.float32)

    in_specs = [
        pl.BlockSpec((TB, S, D), lambda i, j: (i, 0, 0)),   # x batch tile
        pl.BlockSpec((TB, 1, S), lambda i, j: (i, 0, 0)),   # additive key mask
        pl.BlockSpec((TB, S, 1), lambda i, j: (i, 0, 0)),   # keep mask (pool)
    ]
    for pv in param_vals:                                   # stacked weights
        in_specs.append(pl.BlockSpec(pv.shape, lambda i, j, n=pv.ndim: (0,) * n))
    in_specs.append(pl.BlockSpec(lin_w_t.shape, lambda i, j: (0, 0)))
    in_specs.append(pl.BlockSpec(lin_b.shape, lambda i, j: (0, 0)))
    in_specs.append(pl.BlockSpec((D, TN), lambda i, j: (0, j)))   # ent tile

    out = pl.pallas_call(
        kernel,
        out_shape=jax.ShapeDtypeStruct((B, n_pad), jnp.float32),
        grid=grid,
        in_specs=in_specs,
        out_specs=pl.BlockSpec((TB, TN), lambda i, j: (i, j)),
        scratch_shapes=[pltpu.VMEM((TB, D), jnp.float32)],
        compiler_params=pltpu.CompilerParams(
            dimension_semantics=("parallel", "arbitrary")),
    )(x, addmask, keep, *param_vals, lin_w_t, lin_b, ent_t)
    return out[:, :N] if n_pad != N else out


# ----------------------------------------------------------------------------
# Parameter init (deterministic, synthetic; torch layout (out_feat, in_feat)).
# ----------------------------------------------------------------------------
def init_encoder_layer_params(key, d_model, d_ff):
    ks = jax.random.split(key, 4)
    return {
        "in_w": jax.random.normal(ks[0], (3 * d_model, d_model), jnp.float32) * 0.02,
        "in_b": jnp.zeros((1, 3 * d_model), jnp.float32),
        "out_w": jax.random.normal(ks[1], (d_model, d_model), jnp.float32) * 0.02,
        "out_b": jnp.zeros((1, d_model), jnp.float32),
        "ln1_g": jnp.ones((1, d_model), jnp.float32),
        "ln1_b": jnp.zeros((1, d_model), jnp.float32),
        "ff1_w": jax.random.normal(ks[2], (d_ff, d_model), jnp.float32) * 0.02,
        "ff1_b": jnp.zeros((1, d_ff), jnp.float32),
        "ff2_w": jax.random.normal(ks[3], (d_model, d_ff), jnp.float32) * 0.02,
        "ff2_b": jnp.zeros((1, d_model), jnp.float32),
        "ln2_g": jnp.ones((1, d_model), jnp.float32),
        "ln2_b": jnp.zeros((1, d_model), jnp.float32),
    }


def stack_layer_params(layer_params_list):
    """Stack per-layer params to (L, ...) and pre-transpose weights to (in, out)."""
    def stackit(key, transpose=False):
        arrs = [lp[key] for lp in layer_params_list]
        if transpose:
            arrs = [a.T for a in arrs]
        return jnp.stack(arrs, axis=0)
    return {
        "in_w_t": stackit("in_w", True),    # (L, D, 3D)
        "in_b": stackit("in_b"),            # (L, 1, 3D)
        "out_w_t": stackit("out_w", True),  # (L, D, D)
        "out_b": stackit("out_b"),
        "ln1_g": stackit("ln1_g"),
        "ln1_b": stackit("ln1_b"),
        "ff1_w_t": stackit("ff1_w", True),  # (L, D, F)
        "ff1_b": stackit("ff1_b"),
        "ff2_w_t": stackit("ff2_w", True),  # (L, F, D)
        "ff2_b": stackit("ff2_b"),
        "ln2_g": stackit("ln2_g"),
        "ln2_b": stackit("ln2_b"),
    }


# ----------------------------------------------------------------------------
# BaseQualifierModel.forward (1-D h/r indices, t_indices=None -> all entities).
# ----------------------------------------------------------------------------
@functools.partial(jax.jit, static_argnames=("n_heads",))
def base_qualifier_forward(h_idx, r_idx, qual_idx,
                           ent_emb, rel_emb, pos_emb,
                           layer_params_list, lin_w, lin_b, *, n_heads):
    B = h_idx.shape[0]
    D = ent_emb.shape[1]

    # embedding lookups + sequence assembly (glue)
    h = jnp.take(ent_emb, h_idx, axis=0)                          # (B, D)
    r = jnp.take(rel_emb, r_idx, axis=0)                          # (B, D)
    qr_idx = qual_idx[:, 0::2]                                    # (B, Q)
    qe_idx = qual_idx[:, 1::2]                                    # (B, Q)
    qr_emb = jnp.take(rel_emb, qr_idx, axis=0)                    # (B, Q, D)
    qe_emb = jnp.take(ent_emb, qe_idx, axis=0)                    # (B, Q, D)
    quals = jnp.stack([qr_emb, qe_emb], axis=2).reshape(B, -1, D)  # (B, 2Q, D)

    stacked_inp = jnp.concatenate([h[:, None, :], r[:, None, :], quals], axis=1)
    S = stacked_inp.shape[1]                                      # 2 + 2Q

    # key-padding mask (True == padded qualifier slot)
    mask = jnp.zeros((B, S), dtype=bool)
    mask = mask.at[:, 2::2].set(qr_idx == PAD_IDX)
    mask = mask.at[:, 3::2].set(qe_idx == PAD_IDX)

    x = (stacked_inp + pos_emb[None, :, :]).astype(jnp.float32)   # (B, S, D)
    addmask = jnp.where(mask, -1e9, 0.0).astype(jnp.float32).reshape(B, 1, S)
    keep = (~mask).astype(jnp.float32).reshape(B, S, 1)

    # pre-transpose / stack everything once on the host side
    stacked = stack_layer_params(layer_params_list)
    lin_w_t = lin_w.T                                             # (D, D)
    ent_t = ent_emb.T                                             # (D, N)

    return fused_qualifier_forward(x, addmask, keep, stacked, lin_w_t, lin_b,
                                   ent_t, n_heads=n_heads)


if __name__ == "__main__":
    # small shapes
    B = 2                      # batch
    D = 32                     # embedding_dim
    N_HEADS = 4                # num_transformer_heads
    N_LAYERS = 2               # num_transformer_layers
    D_FF = 64                  # dim_transformer_hidden
    MAX_Q = 3                  # max_num_qualifier_pairs
    SEQ = 2 + 2 * MAX_Q        # statement_length - 1 = 8
    NUM_ENT = 16
    NUM_REL = 8

    key = jax.random.PRNGKey(0)
    k_ent, k_rel, k_pos, k_lin, k_l1, k_l2, k_idx = jax.random.split(key, 7)

    ent_emb = jax.random.normal(k_ent, (NUM_ENT, D), jnp.float32) * 0.02
    rel_emb = jax.random.normal(k_rel, (NUM_REL, D), jnp.float32) * 0.02
    pos_emb = jax.random.normal(k_pos, (SEQ, D), jnp.float32) * 0.02
    lin_w = jax.random.normal(k_lin, (D, D), jnp.float32) * 0.02
    lin_b = jnp.zeros((1, D), jnp.float32)
    layer_params = [init_encoder_layer_params(k_l1, D, D_FF),
                    init_encoder_layer_params(k_l2, D, D_FF)]

    # deterministic indices (padding_idx == 0 on some qualifier slots)
    h_idx = jnp.array([1, 5], dtype=jnp.int32)
    r_idx = jnp.array([2, 3], dtype=jnp.int32)
    qual_idx = jnp.array([[1, 4, 0, 0, 0, 0],     # one real pair, two padded
                          [2, 7, 3, 9, 0, 0]],    # two real pairs, one padded
                         dtype=jnp.int32)

    out = base_qualifier_forward(h_idx, r_idx, qual_idx,
                                 ent_emb, rel_emb, pos_emb,
                                 layer_params, lin_w, lin_b,
                                 n_heads=N_HEADS)
    out = jax.block_until_ready(out)
    assert out.shape == (B, NUM_ENT), out.shape
    assert bool(jnp.all(jnp.isfinite(out)))
    print("KERNEL_OK")
</pallas_src>

<mosaic_0001>
module attributes {stable_mosaic.version = 11 : i64} {
  func.func @kernel(%arg0: i32, %arg1: i32, %arg2: memref<2x8x32xf32, #tpu.memory_space<vmem>>, %arg3: memref<2x1x8xf32, #tpu.memory_space<vmem>>, %arg4: memref<2x8x1xf32, #tpu.memory_space<vmem>>, %arg5: memref<2x32x96xf32, #tpu.memory_space<vmem>>, %arg6: memref<2x1x96xf32, #tpu.memory_space<vmem>>, %arg7: memref<2x32x32xf32, #tpu.memory_space<vmem>>, %arg8: memref<2x1x32xf32, #tpu.memory_space<vmem>>, %arg9: memref<2x1x32xf32, #tpu.memory_space<vmem>>, %arg10: memref<2x1x32xf32, #tpu.memory_space<vmem>>, %arg11: memref<2x32x64xf32, #tpu.memory_space<vmem>>, %arg12: memref<2x1x64xf32, #tpu.memory_space<vmem>>, %arg13: memref<2x64x32xf32, #tpu.memory_space<vmem>>, %arg14: memref<2x1x32xf32, #tpu.memory_space<vmem>>, %arg15: memref<2x1x32xf32, #tpu.memory_space<vmem>>, %arg16: memref<2x1x32xf32, #tpu.memory_space<vmem>>, %arg17: memref<32x32xf32, #tpu.memory_space<vmem>>, %arg18: memref<1x32xf32, #tpu.memory_space<vmem>>, %arg19: memref<32x16xf32, #tpu.memory_space<vmem>>, %arg20: memref<2x16xf32, #tpu.memory_space<vmem>>, %arg21: memref<2x32xf32, #tpu.memory_space<vmem>>) attributes {dimension_semantics = [#tpu.dimension_semantics<parallel>, #tpu.dimension_semantics<arbitrary>], iteration_bounds = array<i64: 1, 1>, scalar_prefetch = 0 : i64, scratch_operands = 1 : i64, tpu.core_type = #tpu.core_type<tc>, window_params = [{transform_indices = @transform_0, window_bounds = array<i64: 2, 8, 32>}, {transform_indices = @transform_1, window_bounds = array<i64: 2, 1, 8>}, {transform_indices = @transform_2, window_bounds = array<i64: 2, 8, 1>}, {pipeline_mode = #tpu.pipeline_mode<synchronous>, transform_indices = @transform_3, window_bounds = array<i64: 2, 32, 96>}, {pipeline_mode = #tpu.pipeline_mode<synchronous>, transform_indices = @transform_4, window_bounds = array<i64: 2, 1, 96>}, {pipeline_mode = #tpu.pipeline_mode<synchronous>, transform_indices = @transform_5, window_bounds = array<i64: 2, 32, 32>}, {pipeline_mode = #tpu.pipeline_mode<synchronous>, transform_indices = @transform_6, window_bounds = array<i64: 2, 1, 32>}, {pipeline_mode = #tpu.pipeline_mode<synchronous>, transform_indices = @transform_7, window_bounds = array<i64: 2, 1, 32>}, {pipeline_mode = #tpu.pipeline_mode<synchronous>, transform_indices = @transform_8, window_bounds = array<i64: 2, 1, 32>}, {pipeline_mode = #tpu.pipeline_mode<synchronous>, transform_indices = @transform_9, window_bounds = array<i64: 2, 32, 64>}, {pipeline_mode = #tpu.pipeline_mode<synchronous>, transform_indices = @transform_10, window_bounds = array<i64: 2, 1, 64>}, {pipeline_mode = #tpu.pipeline_mode<synchronous>, transform_indices = @transform_11, window_bounds = array<i64: 2, 64, 32>}, {pipeline_mode = #tpu.pipeline_mode<synchronous>, transform_indices = @transform_12, window_bounds = array<i64: 2, 1, 32>}, {pipeline_mode = #tpu.pipeline_mode<synchronous>, transform_indices = @transform_13, window_bounds = array<i64: 2, 1, 32>}, {pipeline_mode = #tpu.pipeline_mode<synchronous>, transform_indices = @transform_14, window_bounds = array<i64: 2, 1, 32>}, {pipeline_mode = #tpu.pipeline_mode<synchronous>, transform_indices = @transform_15, window_bounds = array<i64: 32, 32>}, {pipeline_mode = #tpu.pipeline_mode<synchronous>, transform_indices = @transform_16, window_bounds = array<i64: 1, 32>}, {transform_indices = @transform_17, window_bounds = array<i64: 32, 16>}, {transform_indices = @transform_18, window_bounds = array<i64: 2, 16>}]} {
    %c0_i32 = arith.constant 0 : i32
    %0 = arith.cmpi eq, %arg1, %c0_i32 : i32
    %1 = arith.extui %0 : i1 to i32
    %c0_i32_0 = arith.constant 0 : i32
    %2 = arith.cmpi ne, %1, %c0_i32_0 : i32
    scf.if %2 {
      %c0_6 = arith.constant 0 : index
      %c0_7 = arith.constant 0 : index
      %c0_8 = arith.constant 0 : index
      %7 = vector.load %arg2[%c0_6, %c0_7, %c0_8] : memref<2x8x32xf32, #tpu.memory_space<vmem>>, vector<2x8x32xf32>
      %8 = vector.shape_cast %7 : vector<2x8x32xf32> to vector<16x32xf32>
      %c0_9 = arith.constant 0 : index
      %c0_10 = arith.constant 0 : index
      %c0_11 = arith.constant 0 : index
      %9 = vector.load %arg3[%c0_9, %c0_10, %c0_11] : memref<2x1x8xf32, #tpu.memory_space<vmem>>, vector<2x1x8xf32>
      %10 = vector.shape_cast %9 : vector<2x1x8xf32> to vector<2x1x8xf32>
      %11 = vector.broadcast %10 : vector<2x1x8xf32> to vector<2x8x8xf32>
      %c0_12 = arith.constant 0 : index
      %c0_13 = arith.constant 0 : index
      %c0_14 = arith.constant 0 : index
      %12 = vector.load %arg5[%c0_12, %c0_13, %c0_14] : memref<2x32x96xf32, #tpu.memory_space<vmem>>, vector<1x32x96xf32>
      %13 = vector.shape_cast %12 : vector<1x32x96xf32> to vector<32x96xf32>
      %cst_15 = arith.constant dense<0.000000e+00> : vector<16x96xf32>
      %14 = tpu.matmul %8, %13, %cst_15 {dimension_numbers = #tpu.dot_dimension_numbers<[1], [0], [0], [1], [0, 0, 1, 1], [], []>} : vector<16x32xf32>, vector<32x96xf32>, vector<16x96xf32> -> vector<16x96xf32>
      %c0_16 = arith.constant 0 : index
      %c0_17 = arith.constant 0 : index
      %c0_18 = arith.constant 0 : index
      %15 = vector.load %arg6[%c0_16, %c0_17, %c0_18] : memref<2x1x96xf32, #tpu.memory_space<vmem>>, vector<1x1x96xf32>
      %16 = vector.shape_cast %15 : vector<1x1x96xf32> to vector<1x96xf32>
      %17 = vector.broadcast %16 : vector<1x96xf32> to vector<16x96xf32>
      %18 = arith.addf %14, %17 : vector<16x96xf32>
      %19 = vector.shape_cast %18 : vector<16x96xf32> to vector<2x8x96xf32>
      %20 = vector.extract_strided_slice %19 {offsets = [0, 0, 0], sizes = [2, 8, 8], strides = [1, 1, 1]} : vector<2x8x96xf32> to vector<2x8x8xf32>
      %21 = vector.extract_strided_slice %19 {offsets = [0, 0, 32], sizes = [2, 8, 8], strides = [1, 1, 1]} : vector<2x8x96xf32> to vector<2x8x8xf32>
      %22 = vector.extract_strided_slice %19 {offsets = [0, 0, 64], sizes = [2, 8, 8], strides = [1, 1, 1]} : vector<2x8x96xf32> to vector<2x8x8xf32>
      "tpu.trace_start"() <{level = 10 : i32, message = "bqd,bkd->bqk"}> : () -> ()
      %cst_19 = arith.constant dense<0.000000e+00> : vector<2x8x8xf32>
      %23 = tpu.matmul %20, %21, %cst_19 {dimension_numbers = #tpu.dot_dimension_numbers<[2], [2], [1], [1], [0, 0, 0, 1, 1, 1], [0], [0]>} : vector<2x8x8xf32>, vector<2x8x8xf32>, vector<2x8x8xf32> -> vector<2x8x8xf32>
      "tpu.trace_stop"() : () -> ()
      %cst_20 = arith.constant 0.353553385 : f32
      %24 = vector.broadcast %cst_20 : f32 to vector<2x8x8xf32>
      %25 = arith.mulf %23, %24 : vector<2x8x8xf32>
      %26 = arith.addf %25, %11 : vector<2x8x8xf32>
      %cst_21 = arith.constant dense<0xFF800000> : vector<2x8xf32>
      %27 = vector.multi_reduction <maximumf>, %26, %cst_21 [2] : vector<2x8x8xf32> to vector<2x8xf32>
      %28 = vector.shape_cast %27 : vector<2x8xf32> to vector<2x8x1xf32>
      %29 = vector.broadcast %28 : vector<2x8x1xf32> to vector<2x8x8xf32>
      %30 = arith.subf %26, %29 : vector<2x8x8xf32>
      %31 = math.exp %30 : vector<2x8x8xf32>
      %cst_22 = arith.constant dense<0.000000e+00> : vector<2x8xf32>
      %32 = vector.multi_reduction <add>, %31, %cst_22 [2] : vector<2x8x8xf32> to vector<2x8xf32>
      %33 = vector.shape_cast %32 : vector<2x8xf32> to vector<2x8x1xf32>
      %34 = tpu.reciprocal %33 {approx = true} : vector<2x8x1xf32> -> vector<2x8x1xf32>
      %35 = vector.broadcast %34 : vector<2x8x1xf32> to vector<2x8x8xf32>
      %36 = arith.mulf %31, %35 : vector<2x8x8xf32>
      "tpu.trace_start"() <{level = 10 : i32, message = "bqk,bkd->bqd"}> : () -> ()
      %cst_23 = arith.constant dense<0.000000e+00> : vector<2x8x8xf32>
      %37 = tpu.matmul %36, %22, %cst_23 {dimension_numbers = #tpu.dot_dimension_numbers<[2], [1], [1], [2], [0, 0, 0, 1, 1, 2], [0], [0]>} : vector<2x8x8xf32>, vector<2x8x8xf32>, vector<2x8x8xf32> -> vector<2x8x8xf32>
      "tpu.trace_stop"() : () -> ()
      %38 = vector.extract_strided_slice %19 {offsets = [0, 0, 8], sizes = [2, 8, 8], strides = [1, 1, 1]} : vector<2x8x96xf32> to vector<2x8x8xf32>
      %39 = vector.extract_strided_slice %19 {offsets = [0, 0, 40], sizes = [2, 8, 8], strides = [1, 1, 1]} : vector<2x8x96xf32> to vector<2x8x8xf32>
      %40 = vector.extract_strided_slice %19 {offsets = [0, 0, 72], sizes = [2, 8, 8], strides = [1, 1, 1]} : vector<2x8x96xf32> to vector<2x8x8xf32>
      "tpu.trace_start"() <{level = 10 : i32, message = "bqd,bkd->bqk"}> : () -> ()
      %cst_24 = arith.constant dense<0.000000e+00> : vector<2x8x8xf32>
      %41 = tpu.matmul %38, %39, %cst_24 {dimension_numbers = #tpu.dot_dimension_numbers<[2], [2], [1], [1], [0, 0, 0, 1, 1, 1], [0], [0]>} : vector<2x8x8xf32>, vector<2x8x8xf32>, vector<2x8x8xf32> -> vector<2x8x8xf32>
      "tpu.trace_stop"() : () -> ()
      %cst_25 = arith.constant 0.353553385 : f32
      %42 = vector.broadcast %cst_25 : f32 to vector<2x8x8xf32>
      %43 = arith.mulf %41, %42 : vector<2x8x8xf32>
      %44 = arith.addf %43, %11 : vector<2x8x8xf32>
      %cst_26 = arith.constant dense<0xFF800000> : vector<2x8xf32>
      %45 = vector.multi_reduction <maximumf>, %44, %cst_26 [2] : vector<2x8x8xf32> to vector<2x8xf32>
      %46 = vector.shape_cast %45 : vector<2x8xf32> to vector<2x8x1xf32>
      %47 = vector.broadcast %46 : vector<2x8x1xf32> to vector<2x8x8xf32>
      %48 = arith.subf %44, %47 : vector<2x8x8xf32>
      %49 = math.exp %48 : vector<2x8x8xf32>
      %cst_27 = arith.constant dense<0.000000e+00> : vector<2x8xf32>
      %50 = vector.multi_reduction <add>, %49, %cst_27 [2] : vector<2x8x8xf32> to vector<2x8xf32>
      %51 = vector.shape_cast %50 : vector<2x8xf32> to vector<2x8x1xf32>
      %52 = tpu.reciprocal %51 {approx = true} : vector<2x8x1xf32> -> vector<2x8x1xf32>
      %53 = vector.broadcast %52 : vector<2x8x1xf32> to vector<2x8x8xf32>
      %54 = arith.mulf %49, %53 : vector<2x8x8xf32>
      "tpu.trace_start"() <{level = 10 : i32, message = "bqk,bkd->bqd"}> : () -> ()
      %cst_28 = arith.constant dense<0.000000e+00> : vector<2x8x8xf32>
      %55 = tpu.matmul %54, %40, %cst_28 {dimension_numbers = #tpu.dot_dimension_numbers<[2], [1], [1], [2], [0, 0, 0, 1, 1, 2], [0], [0]>} : vector<2x8x8xf32>, vector<2x8x8xf32>, vector<2x8x8xf32> -> vector<2x8x8xf32>
      "tpu.trace_stop"() : () -> ()
      %56 = vector.extract_strided_slice %19 {offsets = [0, 0, 16], sizes = [2, 8, 8], strides = [1, 1, 1]} : vector<2x8x96xf32> to vector<2x8x8xf32>
      %57 = vector.extract_strided_slice %19 {offsets = [0, 0, 48], sizes = [2, 8, 8], strides = [1, 1, 1]} : vector<2x8x96xf32> to vector<2x8x8xf32>
      %58 = vector.extract_strided_slice %19 {offsets = [0, 0, 80], sizes = [2, 8, 8], strides = [1, 1, 1]} : vector<2x8x96xf32> to vector<2x8x8xf32>
      "tpu.trace_start"() <{level = 10 : i32, message = "bqd,bkd->bqk"}> : () -> ()
      %cst_29 = arith.constant dense<0.000000e+00> : vector<2x8x8xf32>
      %59 = tpu.matmul %56, %57, %cst_29 {dimension_numbers = #tpu.dot_dimension_numbers<[2], [2], [1], [1], [0, 0, 0, 1, 1, 1], [0], [0]>} : vector<2x8x8xf32>, vector<2x8x8xf32>, vector<2x8x8xf32> -> vector<2x8x8xf32>
      "tpu.trace_stop"() : () -> ()
      %cst_30 = arith.constant 0.353553385 : f32
      %60 = vector.broadcast %cst_30 : f32 to vector<2x8x8xf32>
      %61 = arith.mulf %59, %60 : vector<2x8x8xf32>
      %62 = arith.addf %61, %11 : vector<2x8x8xf32>
      %cst_31 = arith.constant dense<0xFF800000> : vector<2x8xf32>
      %63 = vector.multi_reduction <maximumf>, %62, %cst_31 [2] : vector<2x8x8xf32> to vector<2x8xf32>
      %64 = vector.shape_cast %63 : vector<2x8xf32> to vector<2x8x1xf32>
      %65 = vector.broadcast %64 : vector<2x8x1xf32> to vector<2x8x8xf32>
      %66 = arith.subf %62, %65 : vector<2x8x8xf32>
      %67 = math.exp %66 : vector<2x8x8xf32>
      %cst_32 = arith.constant dense<0.000000e+00> : vector<2x8xf32>
      %68 = vector.multi_reduction <add>, %67, %cst_32 [2] : vector<2x8x8xf32> to vector<2x8xf32>
      %69 = vector.shape_cast %68 : vector<2x8xf32> to vector<2x8x1xf32>
      %70 = tpu.reciprocal %69 {approx = true} : vector<2x8x1xf32> -> vector<2x8x1xf32>
      %71 = vector.broadcast %70 : vector<2x8x1xf32> to vector<2x8x8xf32>
      %72 = arith.mulf %67, %71 : vector<2x8x8xf32>
      "tpu.trace_start"() <{level = 10 : i32, message = "bqk,bkd->bqd"}> : () -> ()
      %cst_33 = arith.constant dense<0.000000e+00> : vector<2x8x8xf32>
      %73 = tpu.matmul %72, %58, %cst_33 {dimension_numbers = #tpu.dot_dimension_numbers<[2], [1], [1], [2], [0, 0, 0, 1, 1, 2], [0], [0]>} : vector<2x8x8xf32>, vector<2x8x8xf32>, vector<2x8x8xf32> -> vector<2x8x8xf32>
      "tpu.trace_stop"() : () -> ()
      %74 = vector.extract_strided_slice %19 {offsets = [0, 0, 24], sizes = [2, 8, 8], strides = [1, 1, 1]} : vector<2x8x96xf32> to vector<2x8x8xf32>
      %75 = vector.extract_strided_slice %19 {offsets = [0, 0, 56], sizes = [2, 8, 8], strides = [1, 1, 1]} : vector<2x8x96xf32> to vector<2x8x8xf32>
      %76 = vector.extract_strided_slice %19 {offsets = [0, 0, 88], sizes = [2, 8, 8], strides = [1, 1, 1]} : vector<2x8x96xf32> to vector<2x8x8xf32>
      "tpu.trace_start"() <{level = 10 : i32, message = "bqd,bkd->bqk"}> : () -> ()
      %cst_34 = arith.constant dense<0.000000e+00> : vector<2x8x8xf32>
      %77 = tpu.matmul %74, %75, %cst_34 {dimension_numbers = #tpu.dot_dimension_numbers<[2], [2], [1], [1], [0, 0, 0, 1, 1, 1], [0], [0]>} : vector<2x8x8xf32>, vector<2x8x8xf32>, vector<2x8x8xf32> -> vector<2x8x8xf32>
      "tpu.trace_stop"() : () -> ()
      %cst_35 = arith.constant 0.353553385 : f32
      %78 = vector.broadcast %cst_35 : f32 to vector<2x8x8xf32>
      %79 = arith.mulf %77, %78 : vector<2x8x8xf32>
      %80 = arith.addf %79, %11 : vector<2x8x8xf32>
      %cst_36 = arith.constant dense<0xFF800000> : vector<2x8xf32>
      %81 = vector.multi_reduction <maximumf>, %80, %cst_36 [2] : vector<2x8x8xf32> to vector<2x8xf32>
      %82 = vector.shape_cast %81 : vector<2x8xf32> to vector<2x8x1xf32>
      %83 = vector.broadcast %82 : vector<2x8x1xf32> to vector<2x8x8xf32>
      %84 = arith.subf %80, %83 : vector<2x8x8xf32>
      %85 = math.exp %84 : vector<2x8x8xf32>
      %cst_37 = arith.constant dense<0.000000e+00> : vector<2x8xf32>
      %86 = vector.multi_reduction <add>, %85, %cst_37 [2] : vector<2x8x8xf32> to vector<2x8xf32>
      %87 = vector.shape_cast %86 : vector<2x8xf32> to vector<2x8x1xf32>
      %88 = tpu.reciprocal %87 {approx = true} : vector<2x8x1xf32> -> vector<2x8x1xf32>
      %89 = vector.broadcast %88 : vector<2x8x1xf32> to vector<2x8x8xf32>
      %90 = arith.mulf %85, %89 : vector<2x8x8xf32>
      "tpu.trace_start"() <{level = 10 : i32, message = "bqk,bkd->bqd"}> : () -> ()
      %cst_38 = arith.constant dense<0.000000e+00> : vector<2x8x8xf32>
      %91 = tpu.matmul %90, %76, %cst_38 {dimension_numbers = #tpu.dot_dimension_numbers<[2], [1], [1], [2], [0, 0, 0, 1, 1, 2], [0], [0]>} : vector<2x8x8xf32>, vector<2x8x8xf32>, vector<2x8x8xf32> -> vector<2x8x8xf32>
      "tpu.trace_stop"() : () -> ()
      %92 = tpu.concatenate %37, %55, %73, %91 in 2 : vector<2x8x8xf32>, vector<2x8x8xf32>, vector<2x8x8xf32>, vector<2x8x8xf32> -> vector<2x8x32xf32>
      %93 = vector.shape_cast %92 : vector<2x8x32xf32> to vector<16x32xf32>
      %c0_39 = arith.constant 0 : index
      %c0_40 = arith.constant 0 : index
      %c0_41 = arith.constant 0 : index
      %94 = vector.load %arg7[%c0_39, %c0_40, %c0_41] : memref<2x32x32xf32, #tpu.memory_space<vmem>>, vector<1x32x32xf32>
      %95 = vector.shape_cast %94 : vector<1x32x32xf32> to vector<32x32xf32>
      %cst_42 = arith.constant dense<0.000000e+00> : vector<16x32xf32>
      %96 = tpu.matmul %93, %95, %cst_42 {dimension_numbers = #tpu.dot_dimension_numbers<[1], [0], [0], [1], [0, 0, 1, 1], [], []>} : vector<16x32xf32>, vector<32x32xf32>, vector<16x32xf32> -> vector<16x32xf32>
      %c0_43 = arith.constant 0 : index
      %c0_44 = arith.constant 0 : index
      %c0_45 = arith.constant 0 : index
      %97 = vector.load %arg8[%c0_43, %c0_44, %c0_45] : memref<2x1x32xf32, #tpu.memory_space<vmem>>, vector<1x1x32xf32>
      %98 = vector.shape_cast %97 : vector<1x1x32xf32> to vector<1x32xf32>
      %99 = vector.broadcast %98 : vector<1x32xf32> to vector<16x32xf32>
      %100 = arith.addf %96, %99 : vector<16x32xf32>
      %101 = arith.addf %8, %100 : vector<16x32xf32>
      %c0_46 = arith.constant 0 : index
      %c0_47 = arith.constant 0 : index
      %c0_48 = arith.constant 0 : index
      %102 = vector.load %arg9[%c0_46, %c0_47, %c0_48] : memref<2x1x32xf32, #tpu.memory_space<vmem>>, vector<1x1x32xf32>
      %103 = vector.shape_cast %102 : vector<1x1x32xf32> to vector<1x32xf32>
      %c0_49 = arith.constant 0 : index
      %c0_50 = arith.constant 0 : index
      %c0_51 = arith.constant 0 : index
      %104 = vector.load %arg10[%c0_49, %c0_50, %c0_51] : memref<2x1x32xf32, #tpu.memory_space<vmem>>, vector<1x1x32xf32>
      %105 = vector.shape_cast %104 : vector<1x1x32xf32> to vector<1x32xf32>
      %cst_52 = arith.constant dense<0.000000e+00> : vector<16xf32>
      %106 = vector.multi_reduction <add>, %101, %cst_52 [1] : vector<16x32xf32> to vector<16xf32>
      %107 = vector.shape_cast %106 : vector<16xf32> to vector<16x1xf32>
      %cst_53 = arith.constant 3.200000e+01 : f32
      %108 = vector.broadcast %cst_53 : f32 to vector<16x1xf32>
      %109 = arith.divf %107, %108 : vector<16x1xf32>
      %110 = vector.broadcast %109 : vector<16x1xf32> to vector<16x32xf32>
      %111 = arith.subf %101, %110 : vector<16x32xf32>
      %112 = arith.mulf %111, %111 : vector<16x32xf32>
      %cst_54 = arith.constant dense<0.000000e+00> : vector<16xf32>
      %113 = vector.multi_reduction <add>, %112, %cst_54 [1] : vector<16x32xf32> to vector<16xf32>
      %114 = vector.shape_cast %113 : vector<16xf32> to vector<16x1xf32>
      %cst_55 = arith.constant 3.200000e+01 : f32
      %115 = vector.broadcast %cst_55 : f32 to vector<16x1xf32>
      %116 = arith.divf %114, %115 : vector<16x1xf32>
      %117 = vector.broadcast %109 : vector<16x1xf32> to vector<16x32xf32>
      %118 = arith.subf %101, %117 : vector<16x32xf32>
      %cst_56 = arith.constant 9.99999974E-6 : f32
      %119 = vector.broadcast %cst_56 : f32 to vector<16x1xf32>
      %120 = arith.addf %116, %119 : vector<16x1xf32>
      %121 = math.rsqrt %120 : vector<16x1xf32>
      %122 = vector.broadcast %121 : vector<16x1xf32> to vector<16x32xf32>
      %123 = arith.mulf %118, %122 : vector<16x32xf32>
      %124 = vector.broadcast %103 : vector<1x32xf32> to vector<16x32xf32>
      %125 = arith.mulf %123, %124 : vector<16x32xf32>
      %126 = vector.broadcast %105 : vector<1x32xf32> to vector<16x32xf32>
      %127 = arith.addf %125, %126 : vector<16x32xf32>
      %c0_57 = arith.constant 0 : index
      %c0_58 = arith.constant 0 : index
      %c0_59 = arith.constant 0 : index
      %128 = vector.load %arg11[%c0_57, %c0_58, %c0_59] : memref<2x32x64xf32, #tpu.memory_space<vmem>>, vector<1x32x64xf32>
      %129 = vector.shape_cast %128 : vector<1x32x64xf32> to vector<32x64xf32>
      %cst_60 = arith.constant dense<0.000000e+00> : vector<16x64xf32>
      %130 = tpu.matmul %127, %129, %cst_60 {dimension_numbers = #tpu.dot_dimension_numbers<[1], [0], [0], [1], [0, 0, 1, 1], [], []>} : vector<16x32xf32>, vector<32x64xf32>, vector<16x64xf32> -> vector<16x64xf32>
      %c0_61 = arith.constant 0 : index
      %c0_62 = arith.constant 0 : index
      %c0_63 = arith.constant 0 : index
      %131 = vector.load %arg12[%c0_61, %c0_62, %c0_63] : memref<2x1x64xf32, #tpu.memory_space<vmem>>, vector<1x1x64xf32>
      %132 = vector.shape_cast %131 : vector<1x1x64xf32> to vector<1x64xf32>
      %133 = vector.broadcast %132 : vector<1x64xf32> to vector<16x64xf32>
      %134 = arith.addf %130, %133 : vector<16x64xf32>
      %cst_64 = arith.constant 0.000000e+00 : f32
      %135 = vector.broadcast %cst_64 : f32 to vector<16x64xf32>
      %136 = arith.maximumf %134, %135 : vector<16x64xf32>
      %c0_65 = arith.constant 0 : index
      %c0_66 = arith.constant 0 : index
      %c0_67 = arith.constant 0 : index
      %137 = vector.load %arg13[%c0_65, %c0_66, %c0_67] : memref<2x64x32xf32, #tpu.memory_space<vmem>>, vector<1x64x32xf32>
      %138 = vector.shape_cast %137 : vector<1x64x32xf32> to vector<64x32xf32>
      %cst_68 = arith.constant dense<0.000000e+00> : vector<16x32xf32>
      %139 = tpu.matmul %136, %138, %cst_68 {dimension_numbers = #tpu.dot_dimension_numbers<[1], [0], [0], [1], [0, 0, 1, 1], [], []>} : vector<16x64xf32>, vector<64x32xf32>, vector<16x32xf32> -> vector<16x32xf32>
      %c0_69 = arith.constant 0 : index
      %c0_70 = arith.constant 0 : index
      %c0_71 = arith.constant 0 : index
      %140 = vector.load %arg14[%c0_69, %c0_70, %c0_71] : memref<2x1x32xf32, #tpu.memory_space<vmem>>, vector<1x1x32xf32>
      %141 = vector.shape_cast %140 : vector<1x1x32xf32> to vector<1x32xf32>
      %142 = vector.broadcast %141 : vector<1x32xf32> to vector<16x32xf32>
      %143 = arith.addf %139, %142 : vector<16x32xf32>
      %144 = arith.addf %127, %143 : vector<16x32xf32>
      %c0_72 = arith.constant 0 : index
      %c0_73 = arith.constant 0 : index
      %c0_74 = arith.constant 0 : index
      %145 = vector.load %arg15[%c0_72, %c0_73, %c0_74] : memref<2x1x32xf32, #tpu.memory_space<vmem>>, vector<1x1x32xf32>
      %146 = vector.shape_cast %145 : vector<1x1x32xf32> to vector<1x32xf32>
      %c0_75 = arith.constant 0 : index
      %c0_76 = arith.constant 0 : index
      %c0_77 = arith.constant 0 : index
      %147 = vector.load %arg16[%c0_75, %c0_76, %c0_77] : memref<2x1x32xf32, #tpu.memory_space<vmem>>, vector<1x1x32xf32>
      %148 = vector.shape_cast %147 : vector<1x1x32xf32> to vector<1x32xf32>
      %cst_78 = arith.constant dense<0.000000e+00> : vector<16xf32>
      %149 = vector.multi_reduction <add>, %144, %cst_78 [1] : vector<16x32xf32> to vector<16xf32>
      %150 = vector.shape_cast %149 : vector<16xf32> to vector<16x1xf32>
      %cst_79 = arith.constant 3.200000e+01 : f32
      %151 = vector.broadcast %cst_79 : f32 to vector<16x1xf32>
      %152 = arith.divf %150, %151 : vector<16x1xf32>
      %153 = vector.broadcast %152 : vector<16x1xf32> to vector<16x32xf32>
      %154 = arith.subf %144, %153 : vector<16x32xf32>
      %155 = arith.mulf %154, %154 : vector<16x32xf32>
      %cst_80 = arith.constant dense<0.000000e+00> : vector<16xf32>
      %156 = vector.multi_reduction <add>, %155, %cst_80 [1] : vector<16x32xf32> to vector<16xf32>
      %157 = vector.shape_cast %156 : vector<16xf32> to vector<16x1xf32>
      %cst_81 = arith.constant 3.200000e+01 : f32
      %158 = vector.broadcast %cst_81 : f32 to vector<16x1xf32>
      %159 = arith.divf %157, %158 : vector<16x1xf32>
      %160 = vector.broadcast %152 : vector<16x1xf32> to vector<16x32xf32>
      %161 = arith.subf %144, %160 : vector<16x32xf32>
      %cst_82 = arith.constant 9.99999974E-6 : f32
      %162 = vector.broadcast %cst_82 : f32 to vector<16x1xf32>
      %163 = arith.addf %159, %162 : vector<16x1xf32>
      %164 = math.rsqrt %163 : vector<16x1xf32>
      %165 = vector.broadcast %164 : vector<16x1xf32> to vector<16x32xf32>
      %166 = arith.mulf %161, %165 : vector<16x32xf32>
      %167 = vector.broadcast %146 : vector<1x32xf32> to vector<16x32xf32>
      %168 = arith.mulf %166, %167 : vector<16x32xf32>
      %169 = vector.broadcast %148 : vector<1x32xf32> to vector<16x32xf32>
      %170 = arith.addf %168, %169 : vector<16x32xf32>
      %c1 = arith.constant 1 : index
      %c0_83 = arith.constant 0 : index
      %c0_84 = arith.constant 0 : index
      %171 = vector.load %arg5[%c1, %c0_83, %c0_84] : memref<2x32x96xf32, #tpu.memory_space<vmem>>, vector<1x32x96xf32>
      %172 = vector.shape_cast %171 : vector<1x32x96xf32> to vector<32x96xf32>
      %cst_85 = arith.constant dense<0.000000e+00> : vector<16x96xf32>
      %173 = tpu.matmul %170, %172, %cst_85 {dimension_numbers = #tpu.dot_dimension_numbers<[1], [0], [0], [1], [0, 0, 1, 1], [], []>} : vector<16x32xf32>, vector<32x96xf32>, vector<16x96xf32> -> vector<16x96xf32>
      %c1_86 = arith.constant 1 : index
      %c0_87 = arith.constant 0 : index
      %c0_88 = arith.constant 0 : index
      %174 = vector.load %arg6[%c1_86, %c0_87, %c0_88] : memref<2x1x96xf32, #tpu.memory_space<vmem>>, vector<1x1x96xf32>
      %175 = vector.shape_cast %174 : vector<1x1x96xf32> to vector<1x96xf32>
      %176 = vector.broadcast %175 : vector<1x96xf32> to vector<16x96xf32>
      %177 = arith.addf %173, %176 : vector<16x96xf32>
      %178 = vector.shape_cast %177 : vector<16x96xf32> to vector<2x8x96xf32>
      %179 = vector.extract_strided_slice %178 {offsets = [0, 0, 0], sizes = [2, 8, 8], strides = [1, 1, 1]} : vector<2x8x96xf32> to vector<2x8x8xf32>
      %180 = vector.extract_strided_slice %178 {offsets = [0, 0, 32], sizes = [2, 8, 8], strides = [1, 1, 1]} : vector<2x8x96xf32> to vector<2x8x8xf32>
      %181 = vector.extract_strided_slice %178 {offsets = [0, 0, 64], sizes = [2, 8, 8], strides = [1, 1, 1]} : vector<2x8x96xf32> to vector<2x8x8xf32>
      "tpu.trace_start"() <{level = 10 : i32, message = "bqd,bkd->bqk"}> : () -> ()
      %cst_89 = arith.constant dense<0.000000e+00> : vector<2x8x8xf32>
      %182 = tpu.matmul %179, %180, %cst_89 {dimension_numbers = #tpu.dot_dimension_numbers<[2], [2], [1], [1], [0, 0, 0, 1, 1, 1], [0], [0]>} : vector<2x8x8xf32>, vector<2x8x8xf32>, vector<2x8x8xf32> -> vector<2x8x8xf32>
      "tpu.trace_stop"() : () -> ()
      %cst_90 = arith.constant 0.353553385 : f32
      %183 = vector.broadcast %cst_90 : f32 to vector<2x8x8xf32>
      %184 = arith.mulf %182, %183 : vector<2x8x8xf32>
      %185 = arith.addf %184, %11 : vector<2x8x8xf32>
      %cst_91 = arith.constant dense<0xFF800000> : vector<2x8xf32>
      %186 = vector.multi_reduction <maximumf>, %185, %cst_91 [2] : vector<2x8x8xf32> to vector<2x8xf32>
      %187 = vector.shape_cast %186 : vector<2x8xf32> to vector<2x8x1xf32>
      %188 = vector.broadcast %187 : vector<2x8x1xf32> to vector<2x8x8xf32>
      %189 = arith.subf %185, %188 : vector<2x8x8xf32>
      %190 = math.exp %189 : vector<2x8x8xf32>
      %cst_92 = arith.constant dense<0.000000e+00> : vector<2x8xf32>
      %191 = vector.multi_reduction <add>, %190, %cst_92 [2] : vector<2x8x8xf32> to vector<2x8xf32>
      %192 = vector.shape_cast %191 : vector<2x8xf32> to vector<2x8x1xf32>
      %193 = tpu.reciprocal %192 {approx = true} : vector<2x8x1xf32> -> vector<2x8x1xf32>
      %194 = vector.broadcast %193 : vector<2x8x1xf32> to vector<2x8x8xf32>
      %195 = arith.mulf %190, %194 : vector<2x8x8xf32>
      "tpu.trace_start"() <{level = 10 : i32, message = "bqk,bkd->bqd"}> : () -> ()
      %cst_93 = arith.constant dense<0.000000e+00> : vector<2x8x8xf32>
      %196 = tpu.matmul %195, %181, %cst_93 {dimension_numbers = #tpu.dot_dimension_numbers<[2], [1], [1], [2], [0, 0, 0, 1, 1, 2], [0], [0]>} : vector<2x8x8xf32>, vector<2x8x8xf32>, vector<2x8x8xf32> -> vector<2x8x8xf32>
      "tpu.trace_stop"() : () -> ()
      %197 = vector.extract_strided_slice %178 {offsets = [0, 0, 8], sizes = [2, 8, 8], strides = [1, 1, 1]} : vector<2x8x96xf32> to vector<2x8x8xf32>
      %198 = vector.extract_strided_slice %178 {offsets = [0, 0, 40], sizes = [2, 8, 8], strides = [1, 1, 1]} : vector<2x8x96xf32> to vector<2x8x8xf32>
      %199 = vector.extract_strided_slice %178 {offsets = [0, 0, 72], sizes = [2, 8, 8], strides = [1, 1, 1]} : vector<2x8x96xf32> to vector<2x8x8xf32>
      "tpu.trace_start"() <{level = 10 : i32, message = "bqd,bkd->bqk"}> : () -> ()
      %cst_94 = arith.constant dense<0.000000e+00> : vector<2x8x8xf32>
      %200 = tpu.matmul %197, %198, %cst_94 {dimension_numbers = #tpu.dot_dimension_numbers<[2], [2], [1], [1], [0, 0, 0, 1, 1, 1], [0], [0]>} : vector<2x8x8xf32>, vector<2x8x8xf32>, vector<2x8x8xf32> -> vector<2x8x8xf32>
      "tpu.trace_stop"() : () -> ()
      %cst_95 = arith.constant 0.353553385 : f32
      %201 = vector.broadcast %cst_95 : f32 to vector<2x8x8xf32>
      %202 = arith.mulf %200, %201 : vector<2x8x8xf32>
      %203 = arith.addf %202, %11 : vector<2x8x8xf32>
      %cst_96 = arith.constant dense<0xFF800000> : vector<2x8xf32>
      %204 = vector.multi_reduction <maximumf>, %203, %cst_96 [2] : vector<2x8x8xf32> to vector<2x8xf32>
      %205 = vector.shape_cast %204 : vector<2x8xf32> to vector<2x8x1xf32>
      %206 = vector.broadcast %205 : vector<2x8x1xf32> to vector<2x8x8xf32>
      %207 = arith.subf %203, %206 : vector<2x8x8xf32>
      %208 = math.exp %207 : vector<2x8x8xf32>
      %cst_97 = arith.constant dense<0.000000e+00> : vector<2x8xf32>
      %209 = vector.multi_reduction <add>, %208, %cst_97 [2] : vector<2x8x8xf32> to vector<2x8xf32>
      %210 = vector.shape_cast %209 : vector<2x8xf32> to vector<2x8x1xf32>
      %211 = tpu.reciprocal %210 {approx = true} : vector<2x8x1xf32> -> vector<2x8x1xf32>
      %212 = vector.broadcast %211 : vector<2x8x1xf32> to vector<2x8x8xf32>
      %213 = arith.mulf %208, %212 : vector<2x8x8xf32>
      "tpu.trace_start"() <{level = 10 : i32, message = "bqk,bkd->bqd"}> : () -> ()
      %cst_98 = arith.constant dense<0.000000e+00> : vector<2x8x8xf32>
      %214 = tpu.matmul %213, %199, %cst_98 {dimension_numbers = #tpu.dot_dimension_numbers<[2], [1], [1], [2], [0, 0, 0, 1, 1, 2], [0], [0]>} : vector<2x8x8xf32>, vector<2x8x8xf32>, vector<2x8x8xf32> -> vector<2x8x8xf32>
      "tpu.trace_stop"() : () -> ()
      %215 = vector.extract_strided_slice %178 {offsets = [0, 0, 16], sizes = [2, 8, 8], strides = [1, 1, 1]} : vector<2x8x96xf32> to vector<2x8x8xf32>
      %216 = vector.extract_strided_slice %178 {offsets = [0, 0, 48], sizes = [2, 8, 8], strides = [1, 1, 1]} : vector<2x8x96xf32> to vector<2x8x8xf32>
      %217 = vector.extract_strided_slice %178 {offsets = [0, 0, 80], sizes = [2, 8, 8], strides = [1, 1, 1]} : vector<2x8x96xf32> to vector<2x8x8xf32>
      "tpu.trace_start"() <{level = 10 : i32, message = "bqd,bkd->bqk"}> : () -> ()
      %cst_99 = arith.constant dense<0.000000e+00> : vector<2x8x8xf32>
      %218 = tpu.matmul %215, %216, %cst_99 {dimension_numbers = #tpu.dot_dimension_numbers<[2], [2], [1], [1], [0, 0, 0, 1, 1, 1], [0], [0]>} : vector<2x8x8xf32>, vector<2x8x8xf32>, vector<2x8x8xf32> -> vector<2x8x8xf32>
      "tpu.trace_stop"() : () -> ()
      %cst_100 = arith.constant 0.353553385 : f32
      %219 = vector.broadcast %cst_100 : f32 to vector<2x8x8xf32>
      %220 = arith.mulf %218, %219 : vector<2x8x8xf32>
      %221 = arith.addf %220, %11 : vector<2x8x8xf32>
      %cst_101 = arith.constant dense<0xFF800000> : vector<2x8xf32>
      %222 = vector.multi_reduction <maximumf>, %221, %cst_101 [2] : vector<2x8x8xf32> to vector<2x8xf32>
      %223 = vector.shape_cast %222 : vector<2x8xf32> to vector<2x8x1xf32>
      %224 = vector.broadcast %223 : vector<2x8x1xf32> to vector<2x8x8xf32>
      %225 = arith.subf %221, %224 : vector<2x8x8xf32>
      %226 = math.exp %225 : vector<2x8x8xf32>
      %cst_102 = arith.constant dense<0.000000e+00> : vector<2x8xf32>
      %227 = vector.multi_reduction <add>, %226, %cst_102 [2] : vector<2x8x8xf32> to vector<2x8xf32>
      %228 = vector.shape_cast %227 : vector<2x8xf32> to vector<2x8x1xf32>
      %229 = tpu.reciprocal %228 {approx = true} : vector<2x8x1xf32> -> vector<2x8x1xf32>
      %230 = vector.broadcast %229 : vector<2x8x1xf32> to vector<2x8x8xf32>
      %231 = arith.mulf %226, %230 : vector<2x8x8xf32>
      "tpu.trace_start"() <{level = 10 : i32, message = "bqk,bkd->bqd"}> : () -> ()
      %cst_103 = arith.constant dense<0.000000e+00> : vector<2x8x8xf32>
      %232 = tpu.matmul %231, %217, %cst_103 {dimension_numbers = #tpu.dot_dimension_numbers<[2], [1], [1], [2], [0, 0, 0, 1, 1, 2], [0], [0]>} : vector<2x8x8xf32>, vector<2x8x8xf32>, vector<2x8x8xf32> -> vector<2x8x8xf32>
      "tpu.trace_stop"() : () -> ()
      %233 = vector.extract_strided_slice %178 {offsets = [0, 0, 24], sizes = [2, 8, 8], strides = [1, 1, 1]} : vector<2x8x96xf32> to vector<2x8x8xf32>
      %234 = vector.extract_strided_slice %178 {offsets = [0, 0, 56], sizes = [2, 8, 8], strides = [1, 1, 1]} : vector<2x8x96xf32> to vector<2x8x8xf32>
      %235 = vector.extract_strided_slice %178 {offsets = [0, 0, 88], sizes = [2, 8, 8], strides = [1, 1, 1]} : vector<2x8x96xf32> to vector<2x8x8xf32>
      "tpu.trace_start"() <{level = 10 : i32, message = "bqd,bkd->bqk"}> : () -> ()
      %cst_104 = arith.constant dense<0.000000e+00> : vector<2x8x8xf32>
      %236 = tpu.matmul %233, %234, %cst_104 {dimension_numbers = #tpu.dot_dimension_numbers<[2], [2], [1], [1], [0, 0, 0, 1, 1, 1], [0], [0]>} : vector<2x8x8xf32>, vector<2x8x8xf32>, vector<2x8x8xf32> -> vector<2x8x8xf32>
      "tpu.trace_stop"() : () -> ()
      %cst_105 = arith.constant 0.353553385 : f32
      %237 = vector.broadcast %cst_105 : f32 to vector<2x8x8xf32>
      %238 = arith.mulf %236, %237 : vector<2x8x8xf32>
      %239 = arith.addf %238, %11 : vector<2x8x8xf32>
      %cst_106 = arith.constant dense<0xFF800000> : vector<2x8xf32>
      %240 = vector.multi_reduction <maximumf>, %239, %cst_106 [2] : vector<2x8x8xf32> to vector<2x8xf32>
      %241 = vector.shape_cast %240 : vector<2x8xf32> to vector<2x8x1xf32>
      %242 = vector.broadcast %241 : vector<2x8x1xf32> to vector<2x8x8xf32>
      %243 = arith.subf %239, %242 : vector<2x8x8xf32>
      %244 = math.exp %243 : vector<2x8x8xf32>
      %cst_107 = arith.constant dense<0.000000e+00> : vector<2x8xf32>
      %245 = vector.multi_reduction <add>, %244, %cst_107 [2] : vector<2x8x8xf32> to vector<2x8xf32>
      %246 = vector.shape_cast %245 : vector<2x8xf32> to vector<2x8x1xf32>
      %247 = tpu.reciprocal %246 {approx = true} : vector<2x8x1xf32> -> vector<2x8x1xf32>
      %248 = vector.broadcast %247 : vector<2x8x1xf32> to vector<2x8x8xf32>
      %249 = arith.mulf %244, %248 : vector<2x8x8xf32>
      "tpu.trace_start"() <{level = 10 : i32, message = "bqk,bkd->bqd"}> : () -> ()
      %cst_108 = arith.constant dense<0.000000e+00> : vector<2x8x8xf32>
      %250 = tpu.matmul %249, %235, %cst_108 {dimension_numbers = #tpu.dot_dimension_numbers<[2], [1], [1], [2], [0, 0, 0, 1, 1, 2], [0], [0]>} : vector<2x8x8xf32>, vector<2x8x8xf32>, vector<2x8x8xf32> -> vector<2x8x8xf32>
      "tpu.trace_stop"() : () -> ()
      %251 = tpu.concatenate %196, %214, %232, %250 in 2 : vector<2x8x8xf32>, vector<2x8x8xf32>, vector<2x8x8xf32>, vector<2x8x8xf32> -> vector<2x8x32xf32>
      %252 = vector.shape_cast %251 : vector<2x8x32xf32> to vector<16x32xf32>
      %c1_109 = arith.constant 1 : index
      %c0_110 = arith.constant 0 : index
      %c0_111 = arith.constant 0 : index
      %253 = vector.load %arg7[%c1_109, %c0_110, %c0_111] : memref<2x32x32xf32, #tpu.memory_space<vmem>>, vector<1x32x32xf32>
      %254 = vector.shape_cast %253 : vector<1x32x32xf32> to vector<32x32xf32>
      %cst_112 = arith.constant dense<0.000000e+00> : vector<16x32xf32>
      %255 = tpu.matmul %252, %254, %cst_112 {dimension_numbers = #tpu.dot_dimension_numbers<[1], [0], [0], [1], [0, 0, 1, 1], [], []>} : vector<16x32xf32>, vector<32x32xf32>, vector<16x32xf32> -> vector<16x32xf32>
      %c1_113 = arith.constant 1 : index
      %c0_114 = arith.constant 0 : index
      %c0_115 = arith.constant 0 : index
      %256 = vector.load %arg8[%c1_113, %c0_114, %c0_115] : memref<2x1x32xf32, #tpu.memory_space<vmem>>, vector<1x1x32xf32>
      %257 = vector.shape_cast %256 : vector<1x1x32xf32> to vector<1x32xf32>
      %258 = vector.broadcast %257 : vector<1x32xf32> to vector<16x32xf32>
      %259 = arith.addf %255, %258 : vector<16x32xf32>
      %260 = arith.addf %170, %259 : vector<16x32xf32>
      %c1_116 = arith.constant 1 : index
      %c0_117 = arith.constant 0 : index
      %c0_118 = arith.constant 0 : index
      %261 = vector.load %arg9[%c1_116, %c0_117, %c0_118] : memref<2x1x32xf32, #tpu.memory_space<vmem>>, vector<1x1x32xf32>
      %262 = vector.shape_cast %261 : vector<1x1x32xf32> to vector<1x32xf32>
      %c1_119 = arith.constant 1 : index
      %c0_120 = arith.constant 0 : index
      %c0_121 = arith.constant 0 : index
      %263 = vector.load %arg10[%c1_119, %c0_120, %c0_121] : memref<2x1x32xf32, #tpu.memory_space<vmem>>, vector<1x1x32xf32>
      %264 = vector.shape_cast %263 : vector<1x1x32xf32> to vector<1x32xf32>
      %cst_122 = arith.constant dense<0.000000e+00> : vector<16xf32>
      %265 = vector.multi_reduction <add>, %260, %cst_122 [1] : vector<16x32xf32> to vector<16xf32>
      %266 = vector.shape_cast %265 : vector<16xf32> to vector<16x1xf32>
      %cst_123 = arith.constant 3.200000e+01 : f32
      %267 = vector.broadcast %cst_123 : f32 to vector<16x1xf32>
      %268 = arith.divf %266, %267 : vector<16x1xf32>
      %269 = vector.broadcast %268 : vector<16x1xf32> to vector<16x32xf32>
      %270 = arith.subf %260, %269 : vector<16x32xf32>
      %271 = arith.mulf %270, %270 : vector<16x32xf32>
      %cst_124 = arith.constant dense<0.000000e+00> : vector<16xf32>
      %272 = vector.multi_reduction <add>, %271, %cst_124 [1] : vector<16x32xf32> to vector<16xf32>
      %273 = vector.shape_cast %272 : vector<16xf32> to vector<16x1xf32>
      %cst_125 = arith.constant 3.200000e+01 : f32
      %274 = vector.broadcast %cst_125 : f32 to vector<16x1xf32>
      %275 = arith.divf %273, %274 : vector<16x1xf32>
      %276 = vector.broadcast %268 : vector<16x1xf32> to vector<16x32xf32>
      %277 = arith.subf %260, %276 : vector<16x32xf32>
      %cst_126 = arith.constant 9.99999974E-6 : f32
      %278 = vector.broadcast %cst_126 : f32 to vector<16x1xf32>
      %279 = arith.addf %275, %278 : vector<16x1xf32>
      %280 = math.rsqrt %279 : vector<16x1xf32>
      %281 = vector.broadcast %280 : vector<16x1xf32> to vector<16x32xf32>
      %282 = arith.mulf %277, %281 : vector<16x32xf32>
      %283 = vector.broadcast %262 : vector<1x32xf32> to vector<16x32xf32>
      %284 = arith.mulf %282, %283 : vector<16x32xf32>
      %285 = vector.broadcast %264 : vector<1x32xf32> to vector<16x32xf32>
      %286 = arith.addf %284, %285 : vector<16x32xf32>
      %c1_127 = arith.constant 1 : index
      %c0_128 = arith.constant 0 : index
      %c0_129 = arith.constant 0 : index
      %287 = vector.load %arg11[%c1_127, %c0_128, %c0_129] : memref<2x32x64xf32, #tpu.memory_space<vmem>>, vector<1x32x64xf32>
      %288 = vector.shape_cast %287 : vector<1x32x64xf32> to vector<32x64xf32>
      %cst_130 = arith.constant dense<0.000000e+00> : vector<16x64xf32>
      %289 = tpu.matmul %286, %288, %cst_130 {dimension_numbers = #tpu.dot_dimension_numbers<[1], [0], [0], [1], [0, 0, 1, 1], [], []>} : vector<16x32xf32>, vector<32x64xf32>, vector<16x64xf32> -> vector<16x64xf32>
      %c1_131 = arith.constant 1 : index
      %c0_132 = arith.constant 0 : index
      %c0_133 = arith.constant 0 : index
      %290 = vector.load %arg12[%c1_131, %c0_132, %c0_133] : memref<2x1x64xf32, #tpu.memory_space<vmem>>, vector<1x1x64xf32>
      %291 = vector.shape_cast %290 : vector<1x1x64xf32> to vector<1x64xf32>
      %292 = vector.broadcast %291 : vector<1x64xf32> to vector<16x64xf32>
      %293 = arith.addf %289, %292 : vector<16x64xf32>
      %cst_134 = arith.constant 0.000000e+00 : f32
      %294 = vector.broadcast %cst_134 : f32 to vector<16x64xf32>
      %295 = arith.maximumf %293, %294 : vector<16x64xf32>
      %c1_135 = arith.constant 1 : index
      %c0_136 = arith.constant 0 : index
      %c0_137 = arith.constant 0 : index
      %296 = vector.load %arg13[%c1_135, %c0_136, %c0_137] : memref<2x64x32xf32, #tpu.memory_space<vmem>>, vector<1x64x32xf32>
      %297 = vector.shape_cast %296 : vector<1x64x32xf32> to vector<64x32xf32>
      %cst_138 = arith.constant dense<0.000000e+00> : vector<16x32xf32>
      %298 = tpu.matmul %295, %297, %cst_138 {dimension_numbers = #tpu.dot_dimension_numbers<[1], [0], [0], [1], [0, 0, 1, 1], [], []>} : vector<16x64xf32>, vector<64x32xf32>, vector<16x32xf32> -> vector<16x32xf32>
      %c1_139 = arith.constant 1 : index
      %c0_140 = arith.constant 0 : index
      %c0_141 = arith.constant 0 : index
      %299 = vector.load %arg14[%c1_139, %c0_140, %c0_141] : memref<2x1x32xf32, #tpu.memory_space<vmem>>, vector<1x1x32xf32>
      %300 = vector.shape_cast %299 : vector<1x1x32xf32> to vector<1x32xf32>
      %301 = vector.broadcast %300 : vector<1x32xf32> to vector<16x32xf32>
      %302 = arith.addf %298, %301 : vector<16x32xf32>
      %303 = arith.addf %286, %302 : vector<16x32xf32>
      %c1_142 = arith.constant 1 : index
      %c0_143 = arith.constant 0 : index
      %c0_144 = arith.constant 0 : index
      %304 = vector.load %arg15[%c1_142, %c0_143, %c0_144] : memref<2x1x32xf32, #tpu.memory_space<vmem>>, vector<1x1x32xf32>
      %305 = vector.shape_cast %304 : vector<1x1x32xf32> to vector<1x32xf32>
      %c1_145 = arith.constant 1 : index
      %c0_146 = arith.constant 0 : index
      %c0_147 = arith.constant 0 : index
      %306 = vector.load %arg16[%c1_145, %c0_146, %c0_147] : memref<2x1x32xf32, #tpu.memory_space<vmem>>, vector<1x1x32xf32>
      %307 = vector.shape_cast %306 : vector<1x1x32xf32> to vector<1x32xf32>
      %cst_148 = arith.constant dense<0.000000e+00> : vector<16xf32>
      %308 = vector.multi_reduction <add>, %303, %cst_148 [1] : vector<16x32xf32> to vector<16xf32>
      %309 = vector.shape_cast %308 : vector<16xf32> to vector<16x1xf32>
      %cst_149 = arith.constant 3.200000e+01 : f32
      %310 = vector.broadcast %cst_149 : f32 to vector<16x1xf32>
      %311 = arith.divf %309, %310 : vector<16x1xf32>
      %312 = vector.broadcast %311 : vector<16x1xf32> to vector<16x32xf32>
      %313 = arith.subf %303, %312 : vector<16x32xf32>
      %314 = arith.mulf %313, %313 : vector<16x32xf32>
      %cst_150 = arith.constant dense<0.000000e+00> : vector<16xf32>
      %315 = vector.multi_reduction <add>, %314, %cst_150 [1] : vector<16x32xf32> to vector<16xf32>
      %316 = vector.shape_cast %315 : vector<16xf32> to vector<16x1xf32>
      %cst_151 = arith.constant 3.200000e+01 : f32
      %317 = vector.broadcast %cst_151 : f32 to vector<16x1xf32>
      %318 = arith.divf %316, %317 : vector<16x1xf32>
      %319 = vector.broadcast %311 : vector<16x1xf32> to vector<16x32xf32>
      %320 = arith.subf %303, %319 : vector<16x32xf32>
      %cst_152 = arith.constant 9.99999974E-6 : f32
      %321 = vector.broadcast %cst_152 : f32 to vector<16x1xf32>
      %322 = arith.addf %318, %321 : vector<16x1xf32>
      %323 = math.rsqrt %322 : vector<16x1xf32>
      %324 = vector.broadcast %323 : vector<16x1xf32> to vector<16x32xf32>
      %325 = arith.mulf %320, %324 : vector<16x32xf32>
      %326 = vector.broadcast %305 : vector<1x32xf32> to vector<16x32xf32>
      %327 = arith.mulf %325, %326 : vector<16x32xf32>
      %328 = vector.broadcast %307 : vector<1x32xf32> to vector<16x32xf32>
      %329 = arith.addf %327, %328 : vector<16x32xf32>
      %330 = vector.shape_cast %329 : vector<16x32xf32> to vector<2x8x32xf32>
      %c0_153 = arith.constant 0 : index
      %c0_154 = arith.constant 0 : index
      %c0_155 = arith.constant 0 : index
      %331 = vector.load %arg4[%c0_153, %c0_154, %c0_155] : memref<2x8x1xf32, #tpu.memory_space<vmem>>, vector<2x8x1xf32>
      %cst_156 = arith.constant dense<0.000000e+00> : vector<2x1xf32>
      %332 = vector.multi_reduction <add>, %331, %cst_156 [1] : vector<2x8x1xf32> to vector<2x1xf32>
      %cst_157 = arith.constant 1.000000e+00 : f32
      %333 = vector.broadcast %cst_157 : f32 to vector<2x1xf32>
      %334 = arith.maximumf %332, %333 : vector<2x1xf32>
      %335 = vector.broadcast %331 : vector<2x8x1xf32> to vector<2x8x32xf32>
      %336 = arith.mulf %335, %330 : vector<2x8x32xf32>
      %cst_158 = arith.constant dense<0.000000e+00> : vector<2x32xf32>
      %337 = vector.multi_reduction <add>, %336, %cst_158 [1] : vector<2x8x32xf32> to vector<2x32xf32>
      %338 = tpu.reciprocal %334 {approx = true} : vector<2x1xf32> -> vector<2x1xf32>
      %339 = vector.broadcast %338 : vector<2x1xf32> to vector<2x32xf32>
      %340 = arith.mulf %337, %339 : vector<2x32xf32>
      %c0_159 = arith.constant 0 : index
      %c0_160 = arith.constant 0 : index
      %341 = vector.load %arg17[%c0_159, %c0_160] : memref<32x32xf32, #tpu.memory_space<vmem>>, vector<32x32xf32>
      %cst_161 = arith.constant dense<0.000000e+00> : vector<2x32xf32>
      %342 = tpu.matmul %340, %341, %cst_161 {dimension_numbers = #tpu.dot_dimension_numbers<[1], [0], [0], [1], [0, 0, 1, 1], [], []>} : vector<2x32xf32>, vector<32x32xf32>, vector<2x32xf32> -> vector<2x32xf32>
      %c0_162 = arith.constant 0 : index
      %c0_163 = arith.constant 0 : index
      %343 = vector.load %arg18[%c0_162, %c0_163] : memref<1x32xf32, #tpu.memory_space<vmem>>, vector<1x32xf32>
      %344 = vector.broadcast %343 : vector<1x32xf32> to vector<2x32xf32>
      %345 = arith.addf %342, %344 : vector<2x32xf32>
      %c0_164 = arith.constant 0 : index
      %c0_165 = arith.constant 0 : index
      %346 = vector.load %arg21[%c0_164, %c0_165] : memref<2x32xf32, #tpu.memory_space<vmem>>, vector<2x32xf32>
      tpu.vector_store %arg21[%c0_164, %c0_165], %345 {strides = array<i32>} : memref<2x32xf32, #tpu.memory_space<vmem>>, vector<2x32xf32>,
    } else {
    }
    %c0 = arith.constant 0 : index
    %c0_1 = arith.constant 0 : index
    %3 = vector.load %arg21[%c0, %c0_1] : memref<2x32xf32, #tpu.memory_space<vmem>>, vector<2x32xf32>
    %c0_2 = arith.constant 0 : index
    %c0_3 = arith.constant 0 : index
    %4 = vector.load %arg19[%c0_2, %c0_3] : memref<32x16xf32, #tpu.memory_space<vmem>>, vector<32x16xf32>
    %cst = arith.constant dense<0.000000e+00> : vector<2x16xf32>
    %5 = tpu.matmul %3, %4, %cst {dimension_numbers = #tpu.dot_dimension_numbers<[1], [0], [0], [1], [0, 0, 1, 1], [], []>} : vector<2x32xf32>, vector<32x16xf32>, vector<2x16xf32> -> vector<2x16xf32>
    %c0_4 = arith.constant 0 : index
    %c0_5 = arith.constant 0 : index
    %6 = vector.load %arg20[%c0_4, %c0_5] : memref<2x16xf32, #tpu.memory_space<vmem>>, vector<2x16xf32>
    tpu.vector_store %arg20[%c0_4, %c0_5], %5 {strides = array<i32>} : memref<2x16xf32, #tpu.memory_space<vmem>>, vector<2x16xf32>,
    return
  }
  func.func @transform_0(%arg0: i32, %arg1: i32) -> (i32, i32, i32) {
    %c0_i32 = arith.constant 0 : i32
    %c0_i32_0 = arith.constant 0 : i32
    %c0_i32_1 = arith.constant 0 : i32
    return %arg0, %c0_i32, %c0_i32_0 : i32, i32, i32
  }
  func.func @transform_1(%arg0: i32, %arg1: i32) -> (i32, i32, i32) {
    %c0_i32 = arith.constant 0 : i32
    %c0_i32_0 = arith.constant 0 : i32
    %c0_i32_1 = arith.constant 0 : i32
    return %arg0, %c0_i32, %c0_i32_0 : i32, i32, i32
  }
  func.func @transform_2(%arg0: i32, %arg1: i32) -> (i32, i32, i32) {
    %c0_i32 = arith.constant 0 : i32
    %c0_i32_0 = arith.constant 0 : i32
    %c0_i32_1 = arith.constant 0 : i32
    return %arg0, %c0_i32, %c0_i32_0 : i32, i32, i32
  }
  func.func @transform_3(%arg0: i32, %arg1: i32) -> (i32, i32, i32) {
    %c0_i32 = arith.constant 0 : i32
    %c0_i32_0 = arith.constant 0 : i32
    %c0_i32_1 = arith.constant 0 : i32
    %c0_i32_2 = arith.constant 0 : i32
    return %c0_i32, %c0_i32_0, %c0_i32_1 : i32, i32, i32
  }
  func.func @transform_4(%arg0: i32, %arg1: i32) -> (i32, i32, i32) {
    %c0_i32 = arith.constant 0 : i32
    %c0_i32_0 = arith.constant 0 : i32
    %c0_i32_1 = arith.constant 0 : i32
    %c0_i32_2 = arith.constant 0 : i32
    return %c0_i32, %c0_i32_0, %c0_i32_1 : i32, i32, i32
  }
  func.func @transform_5(%arg0: i32, %arg1: i32) -> (i32, i32, i32) {
    %c0_i32 = arith.constant 0 : i32
    %c0_i32_0 = arith.constant 0 : i32
    %c0_i32_1 = arith.constant 0 : i32
    %c0_i32_2 = arith.constant 0 : i32
    return %c0_i32, %c0_i32_0, %c0_i32_1 : i32, i32, i32
  }
  func.func @transform_6(%arg0: i32, %arg1: i32) -> (i32, i32, i32) {
    %c0_i32 = arith.constant 0 : i32
    %c0_i32_0 = arith.constant 0 : i32
    %c0_i32_1 = arith.constant 0 : i32
    %c0_i32_2 = arith.constant 0 : i32
    return %c0_i32, %c0_i32_0, %c0_i32_1 : i32, i32, i32
  }
  func.func @transform_7(%arg0: i32, %arg1: i32) -> (i32, i32, i32) {
    %c0_i32 = arith.constant 0 : i32
    %c0_i32_0 = arith.constant 0 : i32
    %c0_i32_1 = arith.constant 0 : i32
    %c0_i32_2 = arith.constant 0 : i32
    return %c0_i32, %c0_i32_0, %c0_i32_1 : i32, i32, i32
  }
  func.func @transform_8(%arg0: i32, %arg1: i32) -> (i32, i32, i32) {
    %c0_i32 = arith.constant 0 : i32
    %c0_i32_0 = arith.constant 0 : i32
    %c0_i32_1 = arith.constant 0 : i32
    %c0_i32_2 = arith.constant 0 : i32
    return %c0_i32, %c0_i32_0, %c0_i32_1 : i32, i32, i32
  }
  func.func @transform_9(%arg0: i32, %arg1: i32) -> (i32, i32, i32) {
    %c0_i32 = arith.constant 0 : i32
    %c0_i32_0 = arith.constant 0 : i32
    %c0_i32_1 = arith.constant 0 : i32
    %c0_i32_2 = arith.constant 0 : i32
    return %c0_i32, %c0_i32_0, %c0_i32_1 : i32, i32, i32
  }
  func.func @transform_10(%arg0: i32, %arg1: i32) -> (i32, i32, i32) {
    %c0_i32 = arith.constant 0 : i32
    %c0_i32_0 = arith.constant 0 : i32
    %c0_i32_1 = arith.constant 0 : i32
    %c0_i32_2 = arith.constant 0 : i32
    return %c0_i32, %c0_i32_0, %c0_i32_1 : i32, i32, i32
  }
  func.func @transform_11(%arg0: i32, %arg1: i32) -> (i32, i32, i32) {
    %c0_i32 = arith.constant 0 : i32
    %c0_i32_0 = arith.constant 0 : i32
    %c0_i32_1 = arith.constant 0 : i32
    %c0_i32_2 = arith.constant 0 : i32
    return %c0_i32, %c0_i32_0, %c0_i32_1 : i32, i32, i32
  }
  func.func @transform_12(%arg0: i32, %arg1: i32) -> (i32, i32, i32) {
    %c0_i32 = arith.constant 0 : i32
    %c0_i32_0 = arith.constant 0 : i32
    %c0_i32_1 = arith.constant 0 : i32
    %c0_i32_2 = arith.constant 0 : i32
    return %c0_i32, %c0_i32_0, %c0_i32_1 : i32, i32, i32
  }
  func.func @transform_13(%arg0: i32, %arg1: i32) -> (i32, i32, i32) {
    %c0_i32 = arith.constant 0 : i32
    %c0_i32_0 = arith.constant 0 : i32
    %c0_i32_1 = arith.constant 0 : i32
    %c0_i32_2 = arith.constant 0 : i32
    return %c0_i32, %c0_i32_0, %c0_i32_1 : i32, i32, i32
  }
  func.func @transform_14(%arg0: i32, %arg1: i32) -> (i32, i32, i32) {
    %c0_i32 = arith.constant 0 : i32
    %c0_i32_0 = arith.constant 0 : i32
    %c0_i32_1 = arith.constant 0 : i32
    %c0_i32_2 = arith.constant 0 : i32
    return %c0_i32, %c0_i32_0, %c0_i32_1 : i32, i32, i32
  }
  func.func @transform_15(%arg0: i32, %arg1: i32) -> (i32, i32) {
    %c0_i32 = arith.constant 0 : i32
    %c0_i32_0 = arith.constant 0 : i32
    %c0_i32_1 = arith.constant 0 : i32
    return %c0_i32, %c0_i32_0 : i32, i32
  }
  func.func @transform_16(%arg0: i32, %arg1: i32) -> (i32, i32) {
    %c0_i32 = arith.constant 0 : i32
    %c0_i32_0 = arith.constant 0 : i32
    %c0_i32_1 = arith.constant 0 : i32
    return %c0_i32, %c0_i32_0 : i32, i32
  }
  func.func @transform_17(%arg0: i32, %arg1: i32) -> (i32, i32) {
    %c0_i32 = arith.constant 0 : i32
    %c0_i32_0 = arith.constant 0 : i32
    return %c0_i32, %arg1 : i32, i32
  }
  func.func @transform_18(%arg0: i32, %arg1: i32) -> (i32, i32) {
    %c0_i32 = arith.constant 0 : i32
    return %arg0, %arg1 : i32, i32
  }
}

</mosaic_0001>

<llo_original>
// kernel: base_qualifier_forward.1
$region0: #{base_qualifier_forward.1}
  #allocation0 [shape = 'u32[]', space=smem, size = 0x4, offset = 0x4, fixed_abs, tag = 'smem constant byte address 0x4 - core index']
  #allocation1 [shape = 'u32[144,128]{1,0:T(1,128)}', space=vmem, size = 0x12000, scoped, tag = 'internal scratch']
  #allocation2 [shape = 'f32[2,32]{1,0:T(2,128)}', space=vmem, size = 0x400, scoped, tag = 'scratch operand']
  %s0 = inlined_call_operand.vmem [shape: f32[2,8,32], index: 0, kind: input, shape index: {}]
  %s1 = inlined_call_operand.vmem [shape: f32[2,1,8], index: 1, kind: input, shape index: {}]
  %s2 = inlined_call_operand.vmem [shape: f32[2,8,1], index: 2, kind: input, shape index: {}]
  %s3 = inlined_call_operand.vmem [shape: f32[2,32,96], index: 3, kind: input, shape index: {}]
  %s4 = inlined_call_operand.vmem [shape: f32[2,1,96], index: 4, kind: input, shape index: {}]
  %s5 = inlined_call_operand.vmem [shape: f32[2,32,32], index: 5, kind: input, shape index: {}]
  %s6 = inlined_call_operand.vmem [shape: f32[2,1,32], index: 6, kind: input, shape index: {}]
  %s7 = inlined_call_operand.vmem [shape: f32[2,1,32], index: 7, kind: input, shape index: {}]
  %s8 = inlined_call_operand.vmem [shape: f32[2,1,32], index: 8, kind: input, shape index: {}]
  %s9 = inlined_call_operand.vmem [shape: f32[2,32,64], index: 9, kind: input, shape index: {}]
  %s10 = inlined_call_operand.vmem [shape: f32[2,1,64], index: 10, kind: input, shape index: {}]
  %s11 = inlined_call_operand.vmem [shape: f32[2,64,32], index: 11, kind: input, shape index: {}]
  %s12 = inlined_call_operand.vmem [shape: f32[2,1,32], index: 12, kind: input, shape index: {}]
  %s13 = inlined_call_operand.vmem [shape: f32[2,1,32], index: 13, kind: input, shape index: {}]
  %s14 = inlined_call_operand.vmem [shape: f32[2,1,32], index: 14, kind: input, shape index: {}]
  %s15 = inlined_call_operand.vmem [shape: f32[32,32], index: 15, kind: input, shape index: {}]
  %s16 = inlined_call_operand.vmem [shape: f32[1,32], index: 16, kind: input, shape index: {}]
  %s17 = inlined_call_operand.vmem [shape: f32[32,16], index: 17, kind: input, shape index: {}]
  %s18 = inlined_call_operand.hbm [shape: f32[2,16], index: 18, kind: output, shape index: {}]
  %s19 = sld [smem:[#allocation0]]
  $region86: #{base_qualifier_forward.1} parent=0
    _
  %s21 = ssub.s32 1, %s19
  %s22 = scalar_select 0, %s21, %s19
  $region1: #{base_qualifier_forward.1} parent=0
    #allocation3 [shape = 'u8[1024]{0}', space=vmem, size = 0x400, scoped, tag = 'output window, operand 0, single buffered']
    #allocation4 [shape = 's32[1]{0}', space=sflag, size = 0x4, scoped, tag = 'scoped memory for base_qualifier_forward.1']
    %23 = vsyncpa [#allocation4], 0
    // Predicated region
    $region2: #{base_qualifier_forward.1} parent=1 // pred_check
      _
    $region3: #{base_qualifier_forward.1} parent=1 // pred_check_branch
      %25 = sbr.rel (0) target = $region5
    $region4: #{base_qualifier_forward.1} parent=1 // pred_region
      _
    $region5: #{base_qualifier_forward.1} parent=1 // pred_fallthru
      _
    // Predicated region
    $region6: #{base_qualifier_forward.1} parent=1 // pred_check
      _
    $region7: #{base_qualifier_forward.1} parent=1 // pred_check_branch
      %27 = sbr.rel (0) target = $region9
    $region8: #{base_qualifier_forward.1} parent=1 // pred_region
      _
    $region9: #{base_qualifier_forward.1} parent=1 // pred_fallthru
      _
    // Predicated region
    $region10: #{base_qualifier_forward.1} parent=1 // pred_check
      _
    $region11: #{base_qualifier_forward.1} parent=1 // pred_check_branch
      %29 = sbr.rel (0) target = $region13
    $region12: #{base_qualifier_forward.1} parent=1 // pred_region
      _
    $region13: #{base_qualifier_forward.1} parent=1 // pred_fallthru
      _
    // Predicated region
    $region14: #{base_qualifier_forward.1} parent=1 // pred_check
      _
    $region15: #{base_qualifier_forward.1} parent=1 // pred_check_branch
      %31 = sbr.rel (0) target = $region17
    $region16: #{base_qualifier_forward.1} parent=1 // pred_region
      _
    $region17: #{base_qualifier_forward.1} parent=1 // pred_fallthru
      _
    // Predicated region
    $region18: #{base_qualifier_forward.1} parent=1 // pred_check
      _
    $region19: #{base_qualifier_forward.1} parent=1 // pred_check_branch
      %33 = sbr.rel (0) target = $region21
    $region20: #{base_qualifier_forward.1} parent=1 // pred_region
      _
    $region21: #{base_qualifier_forward.1} parent=1 // pred_fallthru
      _
    // Predicated region
    $region22: #{base_qualifier_forward.1} parent=1 // pred_check
      _
    $region23: #{base_qualifier_forward.1} parent=1 // pred_check_branch
      %35 = sbr.rel (0) target = $region25
    $region24: #{base_qualifier_forward.1} parent=1 // pred_region
      _
    $region25: #{base_qualifier_forward.1} parent=1 // pred_fallthru
      _
    // Predicated region
    $region26: #{base_qualifier_forward.1} parent=1 // pred_check
      _
    $region27: #{base_qualifier_forward.1} parent=1 // pred_check_branch
      %37 = sbr.rel (0) target = $region29
    $region28: #{base_qualifier_forward.1} parent=1 // pred_region
      _
    $region29: #{base_qualifier_forward.1} parent=1 // pred_fallthru
      _
    // Predicated region
    $region30: #{base_qualifier_forward.1} parent=1 // pred_check
      _
    $region31: #{base_qualifier_forward.1} parent=1 // pred_check_branch
      %39 = sbr.rel (0) target = $region33
    $region32: #{base_qualifier_forward.1} parent=1 // pred_region
      _
    $region33: #{base_qualifier_forward.1} parent=1 // pred_fallthru
      _
    // Predicated region
    $region34: #{base_qualifier_forward.1} parent=1 // pred_check
      _
    $region35: #{base_qualifier_forward.1} parent=1 // pred_check_branch
      %41 = sbr.rel (0) target = $region37
    $region36: #{base_qualifier_forward.1} parent=1 // pred_region
      _
    $region37: #{base_qualifier_forward.1} parent=1 // pred_fallthru
      _
    // Predicated region
    $region38: #{base_qualifier_forward.1} parent=1 // pred_check
      _
    $region39: #{base_qualifier_forward.1} parent=1 // pred_check_branch
      %43 = sbr.rel (0) target = $region41
    $region40: #{base_qualifier_forward.1} parent=1 // pred_region
      _
    $region41: #{base_qualifier_forward.1} parent=1 // pred_fallthru
      _
    // Predicated region
    $region42: #{base_qualifier_forward.1} parent=1 // pred_check
      _
    $region43: #{base_qualifier_forward.1} parent=1 // pred_check_branch
      %45 = sbr.rel (0) target = $region45
    $region44: #{base_qualifier_forward.1} parent=1 // pred_region
      _
    $region45: #{base_qualifier_forward.1} parent=1 // pred_fallthru
      _
    // Predicated region
    $region46: #{base_qualifier_forward.1} parent=1 // pred_check
      _
    $region47: #{base_qualifier_forward.1} parent=1 // pred_check_branch
      %47 = sbr.rel (0) target = $region49
    $region48: #{base_qualifier_forward.1} parent=1 // pred_region
      _
    $region49: #{base_qualifier_forward.1} parent=1 // pred_fallthru
      _
    // Predicated region
    $region50: #{base_qualifier_forward.1} parent=1 // pred_check
      _
    $region51: #{base_qualifier_forward.1} parent=1 // pred_check_branch
      %49 = sbr.rel (0) target = $region53
    $region52: #{base_qualifier_forward.1} parent=1 // pred_region
      _
    $region53: #{base_qualifier_forward.1} parent=1 // pred_fallthru
      _
    // Predicated region
    $region54: #{base_qualifier_forward.1} parent=1 // pred_check
      _
    $region55: #{base_qualifier_forward.1} parent=1 // pred_check_branch
      %51 = sbr.rel (0) target = $region57
    $region56: #{base_qualifier_forward.1} parent=1 // pred_region
      _
    $region57: #{base_qualifier_forward.1} parent=1 // pred_fallthru
      _
    // Predicated region
    $region58: #{base_qualifier_forward.1} parent=1 // pred_check
      _
    $region59: #{base_qualifier_forward.1} parent=1 // pred_check_branch
      %53 = sbr.rel (0) target = $region61
    $region60: #{base_qualifier_forward.1} parent=1 // pred_region
      _
    $region61: #{base_qualifier_forward.1} parent=1 // pred_fallthru
      _
    // Predicated region
    $region62: #{base_qualifier_forward.1} parent=1 // pred_check
      _
    $region63: #{base_qualifier_forward.1} parent=1 // pred_check_branch
      %55 = sbr.rel (0) target = $region65
    $region64: #{base_qualifier_forward.1} parent=1 // pred_region
      _
    $region65: #{base_qualifier_forward.1} parent=1 // pred_fallthru
      _
    // Predicated region
    $region66: #{base_qualifier_forward.1} parent=1 // pred_check
      _
    $region67: #{base_qualifier_forward.1} parent=1 // pred_check_branch
      %57 = sbr.rel (0) target = $region69
    $region68: #{base_qualifier_forward.1} parent=1 // pred_region
      _
    $region69: #{base_qualifier_forward.1} parent=1 // pred_fallthru
      _
    // Predicated region
    $region70: #{base_qualifier_forward.1} parent=1 // pred_check
      _
    $region71: #{base_qualifier_forward.1} parent=1 // pred_check_branch
      %59 = sbr.rel (0) target = $region73
    $region72: #{base_qualifier_forward.1} parent=1 // pred_region
      _
    $region73: #{base_qualifier_forward.1} parent=1 // pred_fallthru
      _
    %p60 = scmp.eq.s32.totalorder 0, 0
    // Predicated region
    $region74: #{base_qualifier_forward.1} parent=1 // pred_check
      %p61 = pneg %p60
    $region75: #{base_qualifier_forward.1} parent=1 // pred_check_branch
      %63 = sbr.rel (%p61) target = $region77
    $region76: #{base_qualifier_forward.1} parent=1 // pred_region
      %v64 = vld [vmem:[%s0] sm:$0xff]
      %v65 = vld [vmem:[%s0 + $0x8] sm:$0xff]
      %v66 = vld [vmem:[%s1] sm:$0x1]
      %v67 = vld [vmem:[%s1 + $0x1] sm:$0x1]
      %v70 = vlaneseq
      %v71 = vshrl.u32 %v70, 7
      %v72 = vsub.s32 0, %v71
      %v73 = vrot.slane %v66, %v72
      %v74 = vlaneseq
      %v75 = vshrl.u32 %v74, 7
      %v76 = vsub.s32 0, %v75
      %v77 = vrot.slane %v67, %v76
      %v80 = vld [vmem:[%s3] sm:$0xff]
      %v81 = vld [vmem:[%s3 + $0x8] sm:$0xff]
      %v82 = vld [vmem:[%s3 + $0x10] sm:$0xff]
      %v83 = vld [vmem:[%s3 + $0x18] sm:$0xff]
      %v84 = vld [vmem:[%s4] sm:$0x1]
      %v86 = vlaneseq
      %v87 = vshrl.u32 %v86, 7
      %v88 = vsub.s32 0, %v87
      %v89 = vrot.slane %v84, %v88
      %vm91 = vcmask 261120
      %v93 = vsel %vm91, %v64, 0
      %v96 = vsel %vm91, %v65, 0
      %98 = vmatprep.subr.mxu0 0.0
      %99 = vmatpush1.msra.mxu0 %v80
      %100 = vmatprep.subr.mxu0 0.0
      %101 = vmatpush1.msra.mxu0 %v81
      %102 = vmatprep.subr.mxu0 0.0
      %103 = vmatpush1.msra.mxu0 %v82
      %104 = vmatprep.subr.mxu0 0.0
      %105 = vmatpush1.msra.mxu0 %v83
      %106 = vmatprep.subr.mxu0 0.0
      %107 = vmatpush1.msra.mxu0 0.0
      %108 = vmatprep.subr.mxu0 0.0
      %109 = vmatpush1.msra.mxu0 0.0
      %110 = vmatprep.subr.mxu0 0.0
      %111 = vmatpush1.msra.mxu0 0.0
      %112 = vmatprep.subr.mxu0 0.0
      %113 = vmatpush1.msra.mxu0 0.0
      %114 = vmatprep.subr.mxu0 0.0
      %115 = vmatpush1.msra.mxu0 0.0
      %116 = vmatprep.subr.mxu0 0.0
      %117 = vmatpush1.msra.mxu0 0.0
      %118 = vmatprep.subr.mxu0 0.0
      %119 = vmatpush1.msra.mxu0 0.0
      %120 = vmatprep.subr.mxu0 0.0
      %121 = vmatpush1.msra.mxu0 0.0
      %122 = vmatprep.subr.mxu0 0.0
      %123 = vmatpush1.msra.mxu0 0.0
      %124 = vmatprep.subr.mxu0 0.0
      %125 = vmatpush1.msra.mxu0 0.0
      %126 = vmatprep.subr.mxu0 0.0
      %127 = vmatpush1.msra.mxu0 0.0
      %128 = vmatprep.subr.mxu0 0.0
      %129 = vmatpush1.msra.mxu0 0.0
      %130 = vmatprep.subr.mxu0 0.0
      %131 = vmatpush1.msra.mxu0 0.0
      %132 = vmatprep.subr.mxu0 0.0
      %133 = vmatpush1.msra.mxu0 0.0
      %134 = vmatprep.subr.mxu0 0.0
      %135 = vmatpush1.msra.mxu0 0.0
      %136 = vmatprep.subr.mxu0 0.0
      %137 = vmatpush1.msra.mxu0 0.0
      %138 = vmatprep.subr.mxu0 0.0
      %139 = vmatpush1.msra.mxu0 0.0
      %140 = vmatprep.subr.mxu0 0.0
      %141 = vmatpush1.msra.mxu0 0.0
      %142 = vmatprep.subr.mxu0 0.0
      %143 = vmatpush1.msra.mxu0 0.0
      %144 = vmatprep.subr.mxu0 0.0
      %145 = vmatpush1.msra.mxu0 0.0
      %146 = vmatprep.subr.mxu0 0.0
      %147 = vmatpush1.msra.mxu0 0.0
      %148 = vmatprep.subr.mxu0 0.0
      %149 = vmatpush1.msra.mxu0 0.0
      %150 = vmatprep.subr.mxu0 0.0
      %151 = vmatpush1.msra.mxu0 0.0
      %152 = vmatprep.subr.mxu0 0.0
      %153 = vmatpush1.msra.mxu0 0.0
      %154 = vmatprep.subr.mxu0 0.0
      %155 = vmatpush1.msra.mxu0 0.0
      %156 = vmatprep.subr.mxu0 0.0
      %157 = vmatpush1.msra.mxu0 0.0
      %158 = vmatprep.subr.mxu0 0.0
      %159 = vmatpush1.msra.mxu0 0.0
      %160 = vmatprep.subr.mxu0 0.0
      %161 = vmatpush1.msra.mxu0 0.0
      %162 = vmatprep.mubr.f32.mxu0 0.0
      %163 = vmatmul.mubr.f32.gmra.mrb[0].mxu0 %v93
      %v164 = vpop.f32.mrb[0].mxu0
      %v165 = vadd.f32 %v89, %v164
      %v166 = vpop.f32.mrb[0].mxu0
      %167 = vmatprep.mubr.f32.mxu0 0.0
      %168 = vmatmul.mubr.f32.gmra.mrb[0].mxu0 %v96
      %v169 = vpop.f32.mrb[0].mxu0
      %v170 = vadd.f32 %v89, %v169
      %v171 = vpop.f32.mrb[0].mxu0
      %172 = vdwg.mxu0
      %174 = vrot.lane.b32.xlu0 %v165, 96
      %v175 = vpop.permute.xlu0 %174
      %vm176 = vcmask 64512
      %v177 = vsel %vm176, %v165, 0
      %v179 = vsel %vm176, %v175, 0
      %181 = vmatprep.subr.mxu0 0.0
      %182 = vmatpush1.xpose.msra.mxu0 %v179
      %183 = vmatprep.subr.mxu0 0.0
      %184 = vmatpush1.xpose.msra.mxu0 0.0
      %185 = vmatprep.subr.mxu0 0.0
      %186 = vmatpush1.xpose.msra.mxu0 0.0
      %187 = vmatprep.subr.mxu0 0.0
      %188 = vmatpush1.xpose.msra.mxu0 0.0
      %189 = vmatprep.subr.mxu0 0.0
      %190 = vmatpush1.xpose.msra.mxu0 0.0
      %191 = vmatprep.subr.mxu0 0.0
      %192 = vmatpush1.xpose.msra.mxu0 0.0
      %193 = vmatprep.subr.mxu0 0.0
      %194 = vmatpush1.xpose.msra.mxu0 0.0
      %195 = vmatprep.subr.mxu0 0.0
      %196 = vmatpush1.xpose.msra.mxu0 0.0
      %197 = vmatprep.subr.mxu0 0.0
      %198 = vmatpush1.xpose.msra.mxu0 0.0
      %199 = vmatprep.subr.mxu0 0.0
      %200 = vmatpush1.xpose.msra.mxu0 0.0
      %201 = vmatprep.subr.mxu0 0.0
      %202 = vmatpush1.xpose.msra.mxu0 0.0
      %203 = vmatprep.subr.mxu0 0.0
      %204 = vmatpush1.xpose.msra.mxu0 0.0
      %205 = vmatprep.subr.mxu0 0.0
      %206 = vmatpush1.xpose.msra.mxu0 0.0
      %207 = vmatprep.subr.mxu0 0.0
      %208 = vmatpush1.xpose.msra.mxu0 0.0
      %209 = vmatprep.subr.mxu0 0.0
      %210 = vmatpush1.xpose.msra.mxu0 0.0
      %211 = vmatprep.subr.mxu0 0.0
      %212 = vmatpush1.xpose.msra.mxu0 0.0
      %213 = vmatprep.subr.mxu0 0.0
      %214 = vmatpush1.xpose.msra.mxu0 0.0
      %215 = vmatprep.subr.mxu0 0.0
      %216 = vmatpush1.xpose.msra.mxu0 0.0
      %217 = vmatprep.subr.mxu0 0.0
      %218 = vmatpush1.xpose.msra.mxu0 0.0
      %219 = vmatprep.subr.mxu0 0.0
      %220 = vmatpush1.xpose.msra.mxu0 0.0
      %221 = vmatprep.subr.mxu0 0.0
      %222 = vmatpush1.xpose.msra.mxu0 0.0
      %223 = vmatprep.subr.mxu0 0.0
      %224 = vmatpush1.xpose.msra.mxu0 0.0
      %225 = vmatprep.subr.mxu0 0.0
      %226 = vmatpush1.xpose.msra.mxu0 0.0
      %227 = vmatprep.subr.mxu0 0.0
      %228 = vmatpush1.xpose.msra.mxu0 0.0
      %229 = vmatprep.subr.mxu0 0.0
      %230 = vmatpush1.xpose.msra.mxu0 0.0
      %231 = vmatprep.subr.mxu0 0.0
      %232 = vmatpush1.xpose.msra.mxu0 0.0
      %233 = vmatprep.subr.mxu0 0.0
      %234 = vmatpush1.xpose.msra.mxu0 0.0
      %235 = vmatprep.subr.mxu0 0.0
      %236 = vmatpush1.xpose.msra.mxu0 0.0
      %237 = vmatprep.subr.mxu0 0.0
      %238 = vmatpush1.xpose.msra.mxu0 0.0
      %239 = vmatprep.subr.mxu0 0.0
      %240 = vmatpush1.xpose.msra.mxu0 0.0
      %241 = vmatprep.subr.mxu0 0.0
      %242 = vmatpush1.xpose.msra.mxu0 0.0
      %243 = vmatprep.subr.mxu0 0.0
      %244 = vmatpush1.xpose.msra.mxu0 0.0
      %245 = vmatprep.mubr.f32.mxu0 0.0
      %246 = vmatmul.mubr.f32.gmra.mrb[0].mxu0 %v177
      %v247 = vpop.f32.mrb[0].mxu0
      %v248 = vadd.f32 0.0, %v247
      %v249 = vpop.f32.mrb[0].mxu0
      %250 = vdwg.mxu0
      %252 = vrot.lane.b32.xlu0 %v170, 96
      %v253 = vpop.permute.xlu0 %252
      %v254 = vsel %vm176, %v170, 0
      %v256 = vsel %vm176, %v253, 0
      %258 = vmatprep.subr.mxu0 0.0
      %259 = vmatpush1.xpose.msra.mxu0 %v256
      %260 = vmatprep.subr.mxu0 0.0
      %261 = vmatpush1.xpose.msra.mxu0 0.0
      %262 = vmatprep.subr.mxu0 0.0
      %263 = vmatpush1.xpose.msra.mxu0 0.0
      %264 = vmatprep.subr.mxu0 0.0
      %265 = vmatpush1.xpose.msra.mxu0 0.0
      %266 = vmatprep.subr.mxu0 0.0
      %267 = vmatpush1.xpose.msra.mxu0 0.0
      %268 = vmatprep.subr.mxu0 0.0
      %269 = vmatpush1.xpose.msra.mxu0 0.0
      %270 = vmatprep.subr.mxu0 0.0
      %271 = vmatpush1.xpose.msra.mxu0 0.0
      %272 = vmatprep.subr.mxu0 0.0
      %273 = vmatpush1.xpose.msra.mxu0 0.0
      %274 = vmatprep.subr.mxu0 0.0
      %275 = vmatpush1.xpose.msra.mxu0 0.0
      %276 = vmatprep.subr.mxu0 0.0
      %277 = vmatpush1.xpose.msra.mxu0 0.0
      %278 = vmatprep.subr.mxu0 0.0
      %279 = vmatpush1.xpose.msra.mxu0 0.0
      %280 = vmatprep.subr.mxu0 0.0
      %281 = vmatpush1.xpose.msra.mxu0 0.0
      %282 = vmatprep.subr.mxu0 0.0
      %283 = vmatpush1.xpose.msra.mxu0 0.0
      %284 = vmatprep.subr.mxu0 0.0
      %285 = vmatpush1.xpose.msra.mxu0 0.0
      %286 = vmatprep.subr.mxu0 0.0
      %287 = vmatpush1.xpose.msra.mxu0 0.0
      %288 = vmatprep.subr.mxu0 0.0
      %289 = vmatpush1.xpose.msra.mxu0 0.0
      %290 = vmatprep.subr.mxu0 0.0
      %291 = vmatpush1.xpose.msra.mxu0 0.0
      %292 = vmatprep.subr.mxu0 0.0
      %293 = vmatpush1.xpose.msra.mxu0 0.0
      %294 = vmatprep.subr.mxu0 0.0
      %295 = vmatpush1.xpose.msra.mxu0 0.0
      %296 = vmatprep.subr.mxu0 0.0
      %297 = vmatpush1.xpose.msra.mxu0 0.0
      %298 = vmatprep.subr.mxu0 0.0
      %299 = vmatpush1.xpose.msra.mxu0 0.0
      %300 = vmatprep.subr.mxu0 0.0
      %301 = vmatpush1.xpose.msra.mxu0 0.0
      %302 = vmatprep.subr.mxu0 0.0
      %303 = vmatpush1.xpose.msra.mxu0 0.0
      %304 = vmatprep.subr.mxu0 0.0
      %305 = vmatpush1.xpose.msra.mxu0 0.0
      %306 = vmatprep.subr.mxu0 0.0
      %307 = vmatpush1.xpose.msra.mxu0 0.0
      %308 = vmatprep.subr.mxu0 0.0
      %309 = vmatpush1.xpose.msra.mxu0 0.0
      %310 = vmatprep.subr.mxu0 0.0
      %311 = vmatpush1.xpose.msra.mxu0 0.0
      %312 = vmatprep.subr.mxu0 0.0
      %313 = vmatpush1.xpose.msra.mxu0 0.0
      %314 = vmatprep.subr.mxu0 0.0
      %315 = vmatpush1.xpose.msra.mxu0 0.0
      %316 = vmatprep.subr.mxu0 0.0
      %317 = vmatpush1.xpose.msra.mxu0 0.0
      %318 = vmatprep.subr.mxu0 0.0
      %319 = vmatpush1.xpose.msra.mxu0 0.0
      %320 = vmatprep.subr.mxu0 0.0
      %321 = vmatpush1.xpose.msra.mxu0 0.0
      %322 = vmatprep.mubr.f32.mxu0 0.0
      %323 = vmatmul.mubr.f32.gmra.mrb[0].mxu0 %v254
      %v324 = vpop.f32.mrb[0].mxu0
      %v325 = vadd.f32 0.0, %v324
      %v326 = vpop.f32.mrb[0].mxu0
      %327 = vdwg.mxu0
      %v328 = vmul.f32 %v248, 0.35355338
      %v329 = vmul.f32 %v325, 0.35355338
      %v330 = vadd.f32 %v328, %v73
      %v331 = vadd.f32 %v329, %v77
      %v332 = vsel %vm176, %v330, -inf
      %333 = vmax.xlane.f32.xlu0 %v332
      %v334 = vpop.xlane.xlu0 %333
      %v335 = vsel %vm176, %v331, -inf
      %336 = vmax.xlane.f32.xlu0 %v335
      %v337 = vpop.xlane.xlu0 %336
      %v338 = vsub.f32 %v330, %v334
      %v339 = vsub.f32 %v331, %v337
      %v340 = vmul.f32 %v338, 1.442695
      %v341 = vpow.pop %v340
      %v342 = vmul.f32 %v339, 1.442695
      %v343 = vpow.pop %v342
      %v344 = vsel %vm176, %v341, 0.0
      %345 = vadd.xlane.f32.xlu0 %v344
      %v346 = vpop.xlane.xlu0 %345
      %v347 = vsel %vm176, %v343, 0.0
      %348 = vadd.xlane.f32.xlu0 %v347
      %v349 = vpop.xlane.xlu0 %348
      %v350 = vrcp.pop %v346
      %v351 = vrcp.pop %v349
      %v352 = vmul.f32 %v341, %v350
      %v353 = vmul.f32 %v343, %v351
      %354 = vrot.lane.b32.xlu0 %v165, 64
      %v355 = vpop.permute.xlu0 %354
      %v358 = vsel %vm176, %v352, 0
      %360 = vmatprep.subr.mxu0 0.0
      %361 = vmatpush1.msra.mxu0 %v355
      %362 = vmatprep.subr.mxu0 0.0
      %363 = vmatpush1.msra.mxu0 0.0
      %364 = vmatprep.subr.mxu0 0.0
      %365 = vmatpush1.msra.mxu0 0.0
      %366 = vmatprep.subr.mxu0 0.0
      %367 = vmatpush1.msra.mxu0 0.0
      %368 = vmatprep.subr.mxu0 0.0
      %369 = vmatpush1.msra.mxu0 0.0
      %370 = vmatprep.subr.mxu0 0.0
      %371 = vmatpush1.msra.mxu0 0.0
      %372 = vmatprep.subr.mxu0 0.0
      %373 = vmatpush1.msra.mxu0 0.0
      %374 = vmatprep.subr.mxu0 0.0
      %375 = vmatpush1.msra.mxu0 0.0
      %376 = vmatprep.subr.mxu0 0.0
      %377 = vmatpush1.msra.mxu0 0.0
      %378 = vmatprep.subr.mxu0 0.0
      %379 = vmatpush1.msra.mxu0 0.0
      %380 = vmatprep.subr.mxu0 0.0
      %381 = vmatpush1.msra.mxu0 0.0
      %382 = vmatprep.subr.mxu0 0.0
      %383 = vmatpush1.msra.mxu0 0.0
      %384 = vmatprep.subr.mxu0 0.0
      %385 = vmatpush1.msra.mxu0 0.0
      %386 = vmatprep.subr.mxu0 0.0
      %387 = vmatpush1.msra.mxu0 0.0
      %388 = vmatprep.subr.mxu0 0.0
      %389 = vmatpush1.msra.mxu0 0.0
      %390 = vmatprep.subr.mxu0 0.0
      %391 = vmatpush1.msra.mxu0 0.0
      %392 = vmatprep.subr.mxu0 0.0
      %393 = vmatpush1.msra.mxu0 0.0
      %394 = vmatprep.subr.mxu0 0.0
      %395 = vmatpush1.msra.mxu0 0.0
      %396 = vmatprep.subr.mxu0 0.0
      %397 = vmatpush1.msra.mxu0 0.0
      %398 = vmatprep.subr.mxu0 0.0
      %399 = vmatpush1.msra.mxu0 0.0
      %400 = vmatprep.subr.mxu0 0.0
      %401 = vmatpush1.msra.mxu0 0.0
      %402 = vmatprep.subr.mxu0 0.0
      %403 = vmatpush1.msra.mxu0 0.0
      %404 = vmatprep.subr.mxu0 0.0
      %405 = vmatpush1.msra.mxu0 0.0
      %406 = vmatprep.subr.mxu0 0.0
      %407 = vmatpush1.msra.mxu0 0.0
      %408 = vmatprep.subr.mxu0 0.0
      %409 = vmatpush1.msra.mxu0 0.0
      %410 = vmatprep.subr.mxu0 0.0
      %411 = vmatpush1.msra.mxu0 0.0
      %412 = vmatprep.subr.mxu0 0.0
      %413 = vmatpush1.msra.mxu0 0.0
      %414 = vmatprep.subr.mxu0 0.0
      %415 = vmatpush1.msra.mxu0 0.0
      %416 = vmatprep.subr.mxu0 0.0
      %417 = vmatpush1.msra.mxu0 0.0
      %418 = vmatprep.subr.mxu0 0.0
      %419 = vmatpush1.msra.mxu0 0.0
      %420 = vmatprep.subr.mxu0 0.0
      %421 = vmatpush1.msra.mxu0 0.0
      %422 = vmatprep.subr.mxu0 0.0
      %423 = vmatpush1.msra.mxu0 0.0
      %424 = vmatprep.mubr.f32.mxu0 0.0
      %425 = vmatmul.mubr.f32.gmra.mrb[0].mxu0 %v358
      %v426 = vpop.f32.mrb[0].mxu0
      %v427 = vadd.f32 0.0, %v426
      %v428 = vpop.f32.mrb[0].mxu0
      %429 = vdwg.mxu0
      %430 = vrot.lane.b32.xlu0 %v170, 64
      %v431 = vpop.permute.xlu0 %430
      %v434 = vsel %vm176, %v353, 0
      %436 = vmatprep.subr.mxu0 0.0
      %437 = vmatpush1.msra.mxu0 %v431
      %438 = vmatprep.subr.mxu0 0.0
      %439 = vmatpush1.msra.mxu0 0.0
      %440 = vmatprep.subr.mxu0 0.0
      %441 = vmatpush1.msra.mxu0 0.0
      %442 = vmatprep.subr.mxu0 0.0
      %443 = vmatpush1.msra.mxu0 0.0
      %444 = vmatprep.subr.mxu0 0.0
      %445 = vmatpush1.msra.mxu0 0.0
      %446 = vmatprep.subr.mxu0 0.0
      %447 = vmatpush1.msra.mxu0 0.0
      %448 = vmatprep.subr.mxu0 0.0
      %449 = vmatpush1.msra.mxu0 0.0
      %450 = vmatprep.subr.mxu0 0.0
      %451 = vmatpush1.msra.mxu0 0.0
      %452 = vmatprep.subr.mxu0 0.0
      %453 = vmatpush1.msra.mxu0 0.0
      %454 = vmatprep.subr.mxu0 0.0
      %455 = vmatpush1.msra.mxu0 0.0
      %456 = vmatprep.subr.mxu0 0.0
      %457 = vmatpush1.msra.mxu0 0.0
      %458 = vmatprep.subr.mxu0 0.0
      %459 = vmatpush1.msra.mxu0 0.0
      %460 = vmatprep.subr.mxu0 0.0
      %461 = vmatpush1.msra.mxu0 0.0
      %462 = vmatprep.subr.mxu0 0.0
      %463 = vmatpush1.msra.mxu0 0.0
      %464 = vmatprep.subr.mxu0 0.0
      %465 = vmatpush1.msra.mxu0 0.0
      %466 = vmatprep.subr.mxu0 0.0
      %467 = vmatpush1.msra.mxu0 0.0
      %468 = vmatprep.subr.mxu0 0.0
      %469 = vmatpush1.msra.mxu0 0.0
      %470 = vmatprep.subr.mxu0 0.0
      %471 = vmatpush1.msra.mxu0 0.0
      %472 = vmatprep.subr.mxu0 0.0
      %473 = vmatpush1.msra.mxu0 0.0
      %474 = vmatprep.subr.mxu0 0.0
      %475 = vmatpush1.msra.mxu0 0.0
      %476 = vmatprep.subr.mxu0 0.0
      %477 = vmatpush1.msra.mxu0 0.0
      %478 = vmatprep.subr.mxu0 0.0
      %479 = vmatpush1.msra.mxu0 0.0
      %480 = vmatprep.subr.mxu0 0.0
      %481 = vmatpush1.msra.mxu0 0.0
      %482 = vmatprep.subr.mxu0 0.0
      %483 = vmatpush1.msra.mxu0 0.0
      %484 = vmatprep.subr.mxu0 0.0
      %485 = vmatpush1.msra.mxu0 0.0
      %486 = vmatprep.subr.mxu0 0.0
      %487 = vmatpush1.msra.mxu0 0.0
      %488 = vmatprep.subr.mxu0 0.0
      %489 = vmatpush1.msra.mxu0 0.0
      %490 = vmatprep.subr.mxu0 0.0
      %491 = vmatpush1.msra.mxu0 0.0
      %492 = vmatprep.subr.mxu0 0.0
      %493 = vmatpush1.msra.mxu0 0.0
      %494 = vmatprep.subr.mxu0 0.0
      %495 = vmatpush1.msra.mxu0 0.0
      %496 = vmatprep.subr.mxu0 0.0
      %497 = vmatpush1.msra.mxu0 0.0
      %498 = vmatprep.subr.mxu0 0.0
      %499 = vmatpush1.msra.mxu0 0.0
      %500 = vmatprep.mubr.f32.mxu0 0.0
      %501 = vmatmul.mubr.f32.gmra.mrb[0].mxu0 %v434
      %v502 = vpop.f32.mrb[0].mxu0
      %v503 = vadd.f32 0.0, %v502
      %v504 = vpop.f32.mrb[0].mxu0
      %505 = vdwg.mxu0
      %506 = vrot.lane.b32.xlu0 %v165, 120
      %v507 = vpop.permute.xlu0 %506
      %508 = vrot.lane.b32.xlu0 %v165, 88
      %v509 = vpop.permute.xlu0 %508
      %v510 = vsel %vm176, %v507, 0
      %v512 = vsel %vm176, %v509, 0
      %514 = vmatprep.subr.mxu0 0.0
      %515 = vmatpush1.xpose.msra.mxu0 %v512
      %516 = vmatprep.subr.mxu0 0.0
      %517 = vmatpush1.xpose.msra.mxu0 0.0
      %518 = vmatprep.subr.mxu0 0.0
      %519 = vmatpush1.xpose.msra.mxu0 0.0
      %520 = vmatprep.subr.mxu0 0.0
      %521 = vmatpush1.xpose.msra.mxu0 0.0
      %522 = vmatprep.subr.mxu0 0.0
      %523 = vmatpush1.xpose.msra.mxu0 0.0
      %524 = vmatprep.subr.mxu0 0.0
      %525 = vmatpush1.xpose.msra.mxu0 0.0
      %526 = vmatprep.subr.mxu0 0.0
      %527 = vmatpush1.xpose.msra.mxu0 0.0
      %528 = vmatprep.subr.mxu0 0.0
      %529 = vmatpush1.xpose.msra.mxu0 0.0
      %530 = vmatprep.subr.mxu0 0.0
      %531 = vmatpush1.xpose.msra.mxu0 0.0
      %532 = vmatprep.subr.mxu0 0.0
      %533 = vmatpush1.xpose.msra.mxu0 0.0
      %534 = vmatprep.subr.mxu0 0.0
      %535 = vmatpush1.xpose.msra.mxu0 0.0
      %536 = vmatprep.subr.mxu0 0.0
      %537 = vmatpush1.xpose.msra.mxu0 0.0
      %538 = vmatprep.subr.mxu0 0.0
      %539 = vmatpush1.xpose.msra.mxu0 0.0
      %540 = vmatprep.subr.mxu0 0.0
      %541 = vmatpush1.xpose.msra.mxu0 0.0
      %542 = vmatprep.subr.mxu0 0.0
      %543 = vmatpush1.xpose.msra.mxu0 0.0
      %544 = vmatprep.subr.mxu0 0.0
      %545 = vmatpush1.xpose.msra.mxu0 0.0
      %546 = vmatprep.subr.mxu0 0.0
      %547 = vmatpush1.xpose.msra.mxu0 0.0
      %548 = vmatprep.subr.mxu0 0.0
      %549 = vmatpush1.xpose.msra.mxu0 0.0
      %550 = vmatprep.subr.mxu0 0.0
      %551 = vmatpush1.xpose.msra.mxu0 0.0
      %552 = vmatprep.subr.mxu0 0.0
      %553 = vmatpush1.xpose.msra.mxu0 0.0
      %554 = vmatprep.subr.mxu0 0.0
      %555 = vmatpush1.xpose.msra.mxu0 0.0
      %556 = vmatprep.subr.mxu0 0.0
      %557 = vmatpush1.xpose.msra.mxu0 0.0
      %558 = vmatprep.subr.mxu0 0.0
      %559 = vmatpush1.xpose.msra.mxu0 0.0
      %560 = vmatprep.subr.mxu0 0.0
      %561 = vmatpush1.xpose.msra.mxu0 0.0
      %562 = vmatprep.subr.mxu0 0.0
      %563 = vmatpush1.xpose.msra.mxu0 0.0
      %564 = vmatprep.subr.mxu0 0.0
      %565 = vmatpush1.xpose.msra.mxu0 0.0
      %566 = vmatprep.subr.mxu0 0.0
      %567 = vmatpush1.xpose.msra.mxu0 0.0
      %568 = vmatprep.subr.mxu0 0.0
      %569 = vmatpush1.xpose.msra.mxu0 0.0
      %570 = vmatprep.subr.mxu0 0.0
      %571 = vmatpush1.xpose.msra.mxu0 0.0
      %572 = vmatprep.subr.mxu0 0.0
      %573 = vmatpush1.xpose.msra.mxu0 0.0
      %574 = vmatprep.subr.mxu0 0.0
      %575 = vmatpush1.xpose.msra.mxu0 0.0
      %576 = vmatprep.subr.mxu0 0.0
      %577 = vmatpush1.xpose.msra.mxu0 0.0
      %578 = vmatprep.mubr.f32.mxu0 0.0
      %579 = vmatmul.mubr.f32.gmra.mrb[0].mxu0 %v510
      %v580 = vpop.f32.mrb[0].mxu0
      %v581 = vadd.f32 0.0, %v580
      %v582 = vpop.f32.mrb[0].mxu0
      %583 = vdwg.mxu0
      %584 = vrot.lane.b32.xlu0 %v170, 120
      %v585 = vpop.permute.xlu0 %584
      %586 = vrot.lane.b32.xlu0 %v170, 88
      %v587 = vpop.permute.xlu0 %586
      %v588 = vsel %vm176, %v585, 0
      %v590 = vsel %vm176, %v587, 0
      %592 = vmatprep.subr.mxu0 0.0
      %593 = vmatpush1.xpose.msra.mxu0 %v590
      %594 = vmatprep.subr.mxu0 0.0
      %595 = vmatpush1.xpose.msra.mxu0 0.0
      %596 = vmatprep.subr.mxu0 0.0
      %597 = vmatpush1.xpose.msra.mxu0 0.0
      %598 = vmatprep.subr.mxu0 0.0
      %599 = vmatpush1.xpose.msra.mxu0 0.0
      %600 = vmatprep.subr.mxu0 0.0
      %601 = vmatpush1.xpose.msra.mxu0 0.0
      %602 = vmatprep.subr.mxu0 0.0
      %603 = vmatpush1.xpose.msra.mxu0 0.0
      %604 = vmatprep.subr.mxu0 0.0
      %605 = vmatpush1.xpose.msra.mxu0 0.0
      %606 = vmatprep.subr.mxu0 0.0
      %607 = vmatpush1.xpose.msra.mxu0 0.0
      %608 = vmatprep.subr.mxu0 0.0
      %609 = vmatpush1.xpose.msra.mxu0 0.0
      %610 = vmatprep.subr.mxu0 0.0
      %611 = vmatpush1.xpose.msra.mxu0 0.0
      %612 = vmatprep.subr.mxu0 0.0
      %613 = vmatpush1.xpose.msra.mxu0 0.0
      %614 = vmatprep.subr.mxu0 0.0
      %615 = vmatpush1.xpose.msra.mxu0 0.0
      %616 = vmatprep.subr.mxu0 0.0
      %617 = vmatpush1.xpose.msra.mxu0 0.0
      %618 = vmatprep.subr.mxu0 0.0
      %619 = vmatpush1.xpose.msra.mxu0 0.0
      %620 = vmatprep.subr.mxu0 0.0
      %621 = vmatpush1.xpose.msra.mxu0 0.0
      %622 = vmatprep.subr.mxu0 0.0
      %623 = vmatpush1.xpose.msra.mxu0 0.0
      %624 = vmatprep.subr.mxu0 0.0
      %625 = vmatpush1.xpose.msra.mxu0 0.0
      %626 = vmatprep.subr.mxu0 0.0
      %627 = vmatpush1.xpose.msra.mxu0 0.0
      %628 = vmatprep.subr.mxu0 0.0
      %629 = vmatpush1.xpose.msra.mxu0 0.0
      %630 = vmatprep.subr.mxu0 0.0
      %631 = vmatpush1.xpose.msra.mxu0 0.0
      %632 = vmatprep.subr.mxu0 0.0
      %633 = vmatpush1.xpose.msra.mxu0 0.0
      %634 = vmatprep.subr.mxu0 0.0
      %635 = vmatpush1.xpose.msra.mxu0 0.0
      %636 = vmatprep.subr.mxu0 0.0
      %637 = vmatpush1.xpose.msra.mxu0 0.0
      %638 = vmatprep.subr.mxu0 0.0
      %639 = vmatpush1.xpose.msra.mxu0 0.0
      %640 = vmatprep.subr.mxu0 0.0
      %641 = vmatpush1.xpose.msra.mxu0 0.0
      %642 = vmatprep.subr.mxu0 0.0
      %643 = vmatpush1.xpose.msra.mxu0 0.0
      %644 = vmatprep.subr.mxu0 0.0
      %645 = vmatpush1.xpose.msra.mxu0 0.0
      %646 = vmatprep.subr.mxu0 0.0
      %647 = vmatpush1.xpose.msra.mxu0 0.0
      %648 = vmatprep.subr.mxu0 0.0
      %649 = vmatpush1.xpose.msra.mxu0 0.0
      %650 = vmatprep.subr.mxu0 0.0
      %651 = vmatpush1.xpose.msra.mxu0 0.0
      %652 = vmatprep.subr.mxu0 0.0
      %653 = vmatpush1.xpose.msra.mxu0 0.0
      %654 = vmatprep.subr.mxu0 0.0
      %655 = vmatpush1.xpose.msra.mxu0 0.0
      %656 = vmatprep.mubr.f32.mxu0 0.0
      %657 = vmatmul.mubr.f32.gmra.mrb[0].mxu0 %v588
      %v658 = vpop.f32.mrb[0].mxu0
      %v659 = vadd.f32 0.0, %v658
      %v660 = vpop.f32.mrb[0].mxu0
      %661 = vdwg.mxu0
      %v662 = vmul.f32 %v581, 0.35355338
      %v663 = vmul.f32 %v659, 0.35355338
      %v664 = vadd.f32 %v662, %v73
      %v665 = vadd.f32 %v663, %v77
      %v666 = vsel %vm176, %v664, -inf
      %667 = vmax.xlane.f32.xlu0 %v666
      %v668 = vpop.xlane.xlu0 %667
      %v669 = vsel %vm176, %v665, -inf
      %670 = vmax.xlane.f32.xlu0 %v669
      %v671 = vpop.xlane.xlu0 %670
      %v672 = vsub.f32 %v664, %v668
      %v673 = vsub.f32 %v665, %v671
      %v674 = vmul.f32 %v672, 1.442695
      %v675 = vpow.pop %v674
      %v676 = vmul.f32 %v673, 1.442695
      %v677 = vpow.pop %v676
      %v678 = vsel %vm176, %v675, 0.0
      %679 = vadd.xlane.f32.xlu0 %v678
      %v680 = vpop.xlane.xlu0 %679
      %v681 = vsel %vm176, %v677, 0.0
      %682 = vadd.xlane.f32.xlu0 %v681
      %v683 = vpop.xlane.xlu0 %682
      %v684 = vrcp.pop %v680
      %v685 = vrcp.pop %v683
      %v686 = vmul.f32 %v675, %v684
      %v687 = vmul.f32 %v677, %v685
      %688 = vrot.lane.b32.xlu0 %v165, 56
      %v689 = vpop.permute.xlu0 %688
      %v692 = vsel %vm176, %v686, 0
      %694 = vmatprep.subr.mxu0 0.0
      %695 = vmatpush1.msra.mxu0 %v689
      %696 = vmatprep.subr.mxu0 0.0
      %697 = vmatpush1.msra.mxu0 0.0
      %698 = vmatprep.subr.mxu0 0.0
      %699 = vmatpush1.msra.mxu0 0.0
      %700 = vmatprep.subr.mxu0 0.0
      %701 = vmatpush1.msra.mxu0 0.0
      %702 = vmatprep.subr.mxu0 0.0
      %703 = vmatpush1.msra.mxu0 0.0
      %704 = vmatprep.subr.mxu0 0.0
      %705 = vmatpush1.msra.mxu0 0.0
      %706 = vmatprep.subr.mxu0 0.0
      %707 = vmatpush1.msra.mxu0 0.0
      %708 = vmatprep.subr.mxu0 0.0
      %709 = vmatpush1.msra.mxu0 0.0
      %710 = vmatprep.subr.mxu0 0.0
      %711 = vmatpush1.msra.mxu0 0.0
      %712 = vmatprep.subr.mxu0 0.0
      %713 = vmatpush1.msra.mxu0 0.0
      %714 = vmatprep.subr.mxu0 0.0
      %715 = vmatpush1.msra.mxu0 0.0
      %716 = vmatprep.subr.mxu0 0.0
      %717 = vmatpush1.msra.mxu0 0.0
      %718 = vmatprep.subr.mxu0 0.0
      %719 = vmatpush1.msra.mxu0 0.0
      %720 = vmatprep.subr.mxu0 0.0
      %721 = vmatpush1.msra.mxu0 0.0
      %722 = vmatprep.subr.mxu0 0.0
      %723 = vmatpush1.msra.mxu0 0.0
      %724 = vmatprep.subr.mxu0 0.0
      %725 = vmatpush1.msra.mxu0 0.0
      %726 = vmatprep.subr.mxu0 0.0
      %727 = vmatpush1.msra.mxu0 0.0
      %728 = vmatprep.subr.mxu0 0.0
      %729 = vmatpush1.msra.mxu0 0.0
      %730 = vmatprep.subr.mxu0 0.0
      %731 = vmatpush1.msra.mxu0 0.0
      %732 = vmatprep.subr.mxu0 0.0
      %733 = vmatpush1.msra.mxu0 0.0
      %734 = vmatprep.subr.mxu0 0.0
      %735 = vmatpush1.msra.mxu0 0.0
      %736 = vmatprep.subr.mxu0 0.0
      %737 = vmatpush1.msra.mxu0 0.0
      %738 = vmatprep.subr.mxu0 0.0
      %739 = vmatpush1.msra.mxu0 0.0
      %740 = vmatprep.subr.mxu0 0.0
      %741 = vmatpush1.msra.mxu0 0.0
      %742 = vmatprep.subr.mxu0 0.0
      %743 = vmatpush1.msra.mxu0 0.0
      %744 = vmatprep.subr.mxu0 0.0
      %745 = vmatpush1.msra.mxu0 0.0
      %746 = vmatprep.subr.mxu0 0.0
      %747 = vmatpush1.msra.mxu0 0.0
      %748 = vmatprep.subr.mxu0 0.0
      %749 = vmatpush1.msra.mxu0 0.0
      %750 = vmatprep.subr.mxu0 0.0
      %751 = vmatpush1.msra.mxu0 0.0
      %752 = vmatprep.subr.mxu0 0.0
      %753 = vmatpush1.msra.mxu0 0.0
      %754 = vmatprep.subr.mxu0 0.0
      %755 = vmatpush1.msra.mxu0 0.0
      %756 = vmatprep.subr.mxu0 0.0
      %757 = vmatpush1.msra.mxu0 0.0
      %758 = vmatprep.mubr.f32.mxu0 0.0
      %759 = vmatmul.mubr.f32.gmra.mrb[0].mxu0 %v692
      %v760 = vpop.f32.mrb[0].mxu0
      %v761 = vadd.f32 0.0, %v760
      %v762 = vpop.f32.mrb[0].mxu0
      %763 = vdwg.mxu0
      %764 = vrot.lane.b32.xlu0 %v170, 56
      %v765 = vpop.permute.xlu0 %764
      %v768 = vsel %vm176, %v687, 0
      %770 = vmatprep.subr.mxu0 0.0
      %771 = vmatpush1.msra.mxu0 %v765
      %772 = vmatprep.subr.mxu0 0.0
      %773 = vmatpush1.msra.mxu0 0.0
      %774 = vmatprep.subr.mxu0 0.0
      %775 = vmatpush1.msra.mxu0 0.0
      %776 = vmatprep.subr.mxu0 0.0
      %777 = vmatpush1.msra.mxu0 0.0
      %778 = vmatprep.subr.mxu0 0.0
      %779 = vmatpush1.msra.mxu0 0.0
      %780 = vmatprep.subr.mxu0 0.0
      %781 = vmatpush1.msra.mxu0 0.0
      %782 = vmatprep.subr.mxu0 0.0
      %783 = vmatpush1.msra.mxu0 0.0
      %784 = vmatprep.subr.mxu0 0.0
      %785 = vmatpush1.msra.mxu0 0.0
      %786 = vmatprep.subr.mxu0 0.0
      %787 = vmatpush1.msra.mxu0 0.0
      %788 = vmatprep.subr.mxu0 0.0
      %789 = vmatpush1.msra.mxu0 0.0
      %790 = vmatprep.subr.mxu0 0.0
      %791 = vmatpush1.msra.mxu0 0.0
      %792 = vmatprep.subr.mxu0 0.0
      %793 = vmatpush1.msra.mxu0 0.0
      %794 = vmatprep.subr.mxu0 0.0
      %795 = vmatpush1.msra.mxu0 0.0
      %796 = vmatprep.subr.mxu0 0.0
      %797 = vmatpush1.msra.mxu0 0.0
      %798 = vmatprep.subr.mxu0 0.0
      %799 = vmatpush1.msra.mxu0 0.0
      %800 = vmatprep.subr.mxu0 0.0
      %801 = vmatpush1.msra.mxu0 0.0
      %802 = vmatprep.subr.mxu0 0.0
      %803 = vmatpush1.msra.mxu0 0.0
      %804 = vmatprep.subr.mxu0 0.0
      %805 = vmatpush1.msra.mxu0 0.0
      %806 = vmatprep.subr.mxu0 0.0
      %807 = vmatpush1.msra.mxu0 0.0
      %808 = vmatprep.subr.mxu0 0.0
      %809 = vmatpush1.msra.mxu0 0.0
      %810 = vmatprep.subr.mxu0 0.0
      %811 = vmatpush1.msra.mxu0 0.0
      %812 = vmatprep.subr.mxu0 0.0
      %813 = vmatpush1.msra.mxu0 0.0
      %814 = vmatprep.subr.mxu0 0.0
      %815 = vmatpush1.msra.mxu0 0.0
      %816 = vmatprep.subr.mxu0 0.0
      %817 = vmatpush1.msra.mxu0 0.0
      %818 = vmatprep.subr.mxu0 0.0
      %819 = vmatpush1.msra.mxu0 0.0
      %820 = vmatprep.subr.mxu0 0.0
      %821 = vmatpush1.msra.mxu0 0.0
      %822 = vmatprep.subr.mxu0 0.0
      %823 = vmatpush1.msra.mxu0 0.0
      %824 = vmatprep.subr.mxu0 0.0
      %825 = vmatpush1.msra.mxu0 0.0
      %826 = vmatprep.subr.mxu0 0.0
      %827 = vmatpush1.msra.mxu0 0.0
      %828 = vmatprep.subr.mxu0 0.0
      %829 = vmatpush1.msra.mxu0 0.0
      %830 = vmatprep.subr.mxu0 0.0
      %831 = vmatpush1.msra.mxu0 0.0
      %832 = vmatprep.subr.mxu0 0.0
      %833 = vmatpush1.msra.mxu0 0.0
      %834 = vmatprep.mubr.f32.mxu0 0.0
      %835 = vmatmul.mubr.f32.gmra.mrb[0].mxu0 %v768
      %v836 = vpop.f32.mrb[0].mxu0
      %v837 = vadd.f32 0.0, %v836
      %v838 = vpop.f32.mrb[0].mxu0
      %839 = vdwg.mxu0
      %840 = vrot.lane.b32.xlu0 %v165, 112
      %v841 = vpop.permute.xlu0 %840
      %842 = vrot.lane.b32.xlu0 %v165, 80
      %v843 = vpop.permute.xlu0 %842
      %v844 = vsel %vm176, %v841, 0
      %v846 = vsel %vm176, %v843, 0
      %848 = vmatprep.subr.mxu0 0.0
      %849 = vmatpush1.xpose.msra.mxu0 %v846
      %850 = vmatprep.subr.mxu0 0.0
      %851 = vmatpush1.xpose.msra.mxu0 0.0
      %852 = vmatprep.subr.mxu0 0.0
      %853 = vmatpush1.xpose.msra.mxu0 0.0
      %854 = vmatprep.subr.mxu0 0.0
      %855 = vmatpush1.xpose.msra.mxu0 0.0
      %856 = vmatprep.subr.mxu0 0.0
      %857 = vmatpush1.xpose.msra.mxu0 0.0
      %858 = vmatprep.subr.mxu0 0.0
      %859 = vmatpush1.xpose.msra.mxu0 0.0
      %860 = vmatprep.subr.mxu0 0.0
      %861 = vmatpush1.xpose.msra.mxu0 0.0
      %862 = vmatprep.subr.mxu0 0.0
      %863 = vmatpush1.xpose.msra.mxu0 0.0
      %864 = vmatprep.subr.mxu0 0.0
      %865 = vmatpush1.xpose.msra.mxu0 0.0
      %866 = vmatprep.subr.mxu0 0.0
      %867 = vmatpush1.xpose.msra.mxu0 0.0
      %868 = vmatprep.subr.mxu0 0.0
      %869 = vmatpush1.xpose.msra.mxu0 0.0
      %870 = vmatprep.subr.mxu0 0.0
      %871 = vmatpush1.xpose.msra.mxu0 0.0
      %872 = vmatprep.subr.mxu0 0.0
      %873 = vmatpush1.xpose.msra.mxu0 0.0
      %874 = vmatprep.subr.mxu0 0.0
      %875 = vmatpush1.xpose.msra.mxu0 0.0
      %876 = vmatprep.subr.mxu0 0.0
      %877 = vmatpush1.xpose.msra.mxu0 0.0
      %878 = vmatprep.subr.mxu0 0.0
      %879 = vmatpush1.xpose.msra.mxu0 0.0
      %880 = vmatprep.subr.mxu0 0.0
      %881 = vmatpush1.xpose.msra.mxu0 0.0
      %882 = vmatprep.subr.mxu0 0.0
      %883 = vmatpush1.xpose.msra.mxu0 0.0
      %884 = vmatprep.subr.mxu0 0.0
      %885 = vmatpush1.xpose.msra.mxu0 0.0
      %886 = vmatprep.subr.mxu0 0.0
      %887 = vmatpush1.xpose.msra.mxu0 0.0
      %888 = vmatprep.subr.mxu0 0.0
      %889 = vmatpush1.xpose.msra.mxu0 0.0
      %890 = vmatprep.subr.mxu0 0.0
      %891 = vmatpush1.xpose.msra.mxu0 0.0
      %892 = vmatprep.subr.mxu0 0.0
      %893 = vmatpush1.xpose.msra.mxu0 0.0
      %894 = vmatprep.subr.mxu0 0.0
      %895 = vmatpush1.xpose.msra.mxu0 0.0
      %896 = vmatprep.subr.mxu0 0.0
      %897 = vmatpush1.xpose.msra.mxu0 0.0
      %898 = vmatprep.subr.mxu0 0.0
      %899 = vmatpush1.xpose.msra.mxu0 0.0
      %900 = vmatprep.subr.mxu0 0.0
      %901 = vmatpush1.xpose.msra.mxu0 0.0
      %902 = vmatprep.subr.mxu0 0.0
      %903 = vmatpush1.xpose.msra.mxu0 0.0
      %904 = vmatprep.subr.mxu0 0.0
      %905 = vmatpush1.xpose.msra.mxu0 0.0
      %906 = vmatprep.subr.mxu0 0.0
      %907 = vmatpush1.xpose.msra.mxu0 0.0
      %908 = vmatprep.subr.mxu0 0.0
      %909 = vmatpush1.xpose.msra.mxu0 0.0
      %910 = vmatprep.subr.mxu0 0.0
      %911 = vmatpush1.xpose.msra.mxu0 0.0
      %912 = vmatprep.mubr.f32.mxu0 0.0
      %913 = vmatmul.mubr.f32.gmra.mrb[0].mxu0 %v844
      %v914 = vpop.f32.mrb[0].mxu0
      %v915 = vadd.f32 0.0, %v914
      %v916 = vpop.f32.mrb[0].mxu0
      %917 = vdwg.mxu0
      %918 = vrot.lane.b32.xlu0 %v170, 112
      %v919 = vpop.permute.xlu0 %918
      %920 = vrot.lane.b32.xlu0 %v170, 80
      %v921 = vpop.permute.xlu0 %920
      %v922 = vsel %vm176, %v919, 0
      %v924 = vsel %vm176, %v921, 0
      %926 = vmatprep.subr.mxu0 0.0
      %927 = vmatpush1.xpose.msra.mxu0 %v924
      %928 = vmatprep.subr.mxu0 0.0
      %929 = vmatpush1.xpose.msra.mxu0 0.0
      %930 = vmatprep.subr.mxu0 0.0
      %931 = vmatpush1.xpose.msra.mxu0 0.0
      %932 = vmatprep.subr.mxu0 0.0
      %933 = vmatpush1.xpose.msra.mxu0 0.0
      %934 = vmatprep.subr.mxu0 0.0
      %935 = vmatpush1.xpose.msra.mxu0 0.0
      %936 = vmatprep.subr.mxu0 0.0
      %937 = vmatpush1.xpose.msra.mxu0 0.0
      %938 = vmatprep.subr.mxu0 0.0
      %939 = vmatpush1.xpose.msra.mxu0 0.0
      %940 = vmatprep.subr.mxu0 0.0
      %941 = vmatpush1.xpose.msra.mxu0 0.0
      %942 = vmatprep.subr.mxu0 0.0
      %943 = vmatpush1.xpose.msra.mxu0 0.0
      %944 = vmatprep.subr.mxu0 0.0
      %945 = vmatpush1.xpose.msra.mxu0 0.0
      %946 = vmatprep.subr.mxu0 0.0
      %947 = vmatpush1.xpose.msra.mxu0 0.0
      %948 = vmatprep.subr.mxu0 0.0
      %949 = vmatpush1.xpose.msra.mxu0 0.0
      %950 = vmatprep.subr.mxu0 0.0
      %951 = vmatpush1.xpose.msra.mxu0 0.0
      %952 = vmatprep.subr.mxu0 0.0
      %953 = vmatpush1.xpose.msra.mxu0 0.0
      %954 = vmatprep.subr.mxu0 0.0
      %955 = vmatpush1.xpose.msra.mxu0 0.0
      %956 = vmatprep.subr.mxu0 0.0
      %957 = vmatpush1.xpose.msra.mxu0 0.0
      %958 = vmatprep.subr.mxu0 0.0
      %959 = vmatpush1.xpose.msra.mxu0 0.0
      %960 = vmatprep.subr.mxu0 0.0
      %961 = vmatpush1.xpose.msra.mxu0 0.0
      %962 = vmatprep.subr.mxu0 0.0
      %963 = vmatpush1.xpose.msra.mxu0 0.0
      %964 = vmatprep.subr.mxu0 0.0
      %965 = vmatpush1.xpose.msra.mxu0 0.0
      %966 = vmatprep.subr.mxu0 0.0
      %967 = vmatpush1.xpose.msra.mxu0 0.0
      %968 = vmatprep.subr.mxu0 0.0
      %969 = vmatpush1.xpose.msra.mxu0 0.0
      %970 = vmatprep.subr.mxu0 0.0
      %971 = vmatpush1.xpose.msra.mxu0 0.0
      %972 = vmatprep.subr.mxu0 0.0
      %973 = vmatpush1.xpose.msra.mxu0 0.0
      %974 = vmatprep.subr.mxu0 0.0
      %975 = vmatpush1.xpose.msra.mxu0 0.0
      %976 = vmatprep.subr.mxu0 0.0
      %977 = vmatpush1.xpose.msra.mxu0 0.0
      %978 = vmatprep.subr.mxu0 0.0
      %979 = vmatpush1.xpose.msra.mxu0 0.0
      %980 = vmatprep.subr.mxu0 0.0
      %981 = vmatpush1.xpose.msra.mxu0 0.0
      %982 = vmatprep.subr.mxu0 0.0
      %983 = vmatpush1.xpose.msra.mxu0 0.0
      %984 = vmatprep.subr.mxu0 0.0
      %985 = vmatpush1.xpose.msra.mxu0 0.0
      %986 = vmatprep.subr.mxu0 0.0
      %987 = vmatpush1.xpose.msra.mxu0 0.0
      %988 = vmatprep.subr.mxu0 0.0
      %989 = vmatpush1.xpose.msra.mxu0 0.0
      %990 = vmatprep.mubr.f32.mxu0 0.0
      %991 = vmatmul.mubr.f32.gmra.mrb[0].mxu0 %v922
      %v992 = vpop.f32.mrb[0].mxu0
      %v993 = vadd.f32 0.0, %v992
      %v994 = vpop.f32.mrb[0].mxu0
      %995 = vdwg.mxu0
      %v996 = vmul.f32 %v915, 0.35355338
      %v997 = vmul.f32 %v993, 0.35355338
      %v998 = vadd.f32 %v996, %v73
      %v999 = vadd.f32 %v997, %v77
      %v1000 = vsel %vm176, %v998, -inf
      %1001 = vmax.xlane.f32.xlu0 %v1000
      %v1002 = vpop.xlane.xlu0 %1001
      %v1003 = vsel %vm176, %v999, -inf
      %1004 = vmax.xlane.f32.xlu0 %v1003
      %v1005 = vpop.xlane.xlu0 %1004
      %v1006 = vsub.f32 %v998, %v1002
      %v1007 = vsub.f32 %v999, %v1005
      %v1008 = vmul.f32 %v1006, 1.442695
      %v1009 = vpow.pop %v1008
      %v1010 = vmul.f32 %v1007, 1.442695
      %v1011 = vpow.pop %v1010
      %v1012 = vsel %vm176, %v1009, 0.0
      %1013 = vadd.xlane.f32.xlu0 %v1012
      %v1014 = vpop.xlane.xlu0 %1013
      %v1015 = vsel %vm176, %v1011, 0.0
      %1016 = vadd.xlane.f32.xlu0 %v1015
      %v1017 = vpop.xlane.xlu0 %1016
      %v1018 = vrcp.pop %v1014
      %v1019 = vrcp.pop %v1017
      %v1020 = vmul.f32 %v1009, %v1018
      %v1021 = vmul.f32 %v1011, %v1019
      %1022 = vrot.lane.b32.xlu0 %v165, 48
      %v1023 = vpop.permute.xlu0 %1022
      %v1026 = vsel %vm176, %v1020, 0
      %1028 = vmatprep.subr.mxu0 0.0
      %1029 = vmatpush1.msra.mxu0 %v1023
      %1030 = vmatprep.subr.mxu0 0.0
      %1031 = vmatpush1.msra.mxu0 0.0
      %1032 = vmatprep.subr.mxu0 0.0
      %1033 = vmatpush1.msra.mxu0 0.0
      %1034 = vmatprep.subr.mxu0 0.0
      %1035 = vmatpush1.msra.mxu0 0.0
      %1036 = vmatprep.subr.mxu0 0.0
      %1037 = vmatpush1.msra.mxu0 0.0
      %1038 = vmatprep.subr.mxu0 0.0
      %1039 = vmatpush1.msra.mxu0 0.0
      %1040 = vmatprep.subr.mxu0 0.0
      %1041 = vmatpush1.msra.mxu0 0.0
      %1042 = vmatprep.subr.mxu0 0.0
      %1043 = vmatpush1.msra.mxu0 0.0
      %1044 = vmatprep.subr.mxu0 0.0
      %1045 = vmatpush1.msra.mxu0 0.0
      %1046 = vmatprep.subr.mxu0 0.0
      %1047 = vmatpush1.msra.mxu0 0.0
      %1048 = vmatprep.subr.mxu0 0.0
      %1049 = vmatpush1.msra.mxu0 0.0
      %1050 = vmatprep.subr.mxu0 0.0
      %1051 = vmatpush1.msra.mxu0 0.0
      %1052 = vmatprep.subr.mxu0 0.0
      %1053 = vmatpush1.msra.mxu0 0.0
      %1054 = vmatprep.subr.mxu0 0.0
      %1055 = vmatpush1.msra.mxu0 0.0
      %1056 = vmatprep.subr.mxu0 0.0
      %1057 = vmatpush1.msra.mxu0 0.0
      %1058 = vmatprep.subr.mxu0 0.0
      %1059 = vmatpush1.msra.mxu0 0.0
      %1060 = vmatprep.subr.mxu0 0.0
      %1061 = vmatpush1.msra.mxu0 0.0
      %1062 = vmatprep.subr.mxu0 0.0
      %1063 = vmatpush1.msra.mxu0 0.0
      %1064 = vmatprep.subr.mxu0 0.0
      %1065 = vmatpush1.msra.mxu0 0.0
      %1066 = vmatprep.subr.mxu0 0.0
      %1067 = vmatpush1.msra.mxu0 0.0
      %1068 = vmatprep.subr.mxu0 0.0
      %1069 = vmatpush1.msra.mxu0 0.0
      %1070 = vmatprep.subr.mxu0 0.0
      %1071 = vmatpush1.msra.mxu0 0.0
      %1072 = vmatprep.subr.mxu0 0.0
      %1073 = vmatpush1.msra.mxu0 0.0
      %1074 = vmatprep.subr.mxu0 0.0
      %1075 = vmatpush1.msra.mxu0 0.0
      %1076 = vmatprep.subr.mxu0 0.0
      %1077 = vmatpush1.msra.mxu0 0.0
      %1078 = vmatprep.subr.mxu0 0.0
      %1079 = vmatpush1.msra.mxu0 0.0
      %1080 = vmatprep.subr.mxu0 0.0
      %1081 = vmatpush1.msra.mxu0 0.0
      %1082 = vmatprep.subr.mxu0 0.0
      %1083 = vmatpush1.msra.mxu0 0.0
      %1084 = vmatprep.subr.mxu0 0.0
      %1085 = vmatpush1.msra.mxu0 0.0
      %1086 = vmatprep.subr.mxu0 0.0
      %1087 = vmatpush1.msra.mxu0 0.0
      %1088 = vmatprep.subr.mxu0 0.0
      %1089 = vmatpush1.msra.mxu0 0.0
      %1090 = vmatprep.subr.mxu0 0.0
      %1091 = vmatpush1.msra.mxu0 0.0
      %1092 = vmatprep.mubr.f32.mxu0 0.0
      %1093 = vmatmul.mubr.f32.gmra.mrb[0].mxu0 %v1026
      %v1094 = vpop.f32.mrb[0].mxu0
      %v1095 = vadd.f32 0.0, %v1094
      %v1096 = vpop.f32.mrb[0].mxu0
      %1097 = vdwg.mxu0
      %1098 = vrot.lane.b32.xlu0 %v170, 48
      %v1099 = vpop.permute.xlu0 %1098
      %v1102 = vsel %vm176, %v1021, 0
      %1104 = vmatprep.subr.mxu0 0.0
      %1105 = vmatpush1.msra.mxu0 %v1099
      %1106 = vmatprep.subr.mxu0 0.0
      %1107 = vmatpush1.msra.mxu0 0.0
      %1108 = vmatprep.subr.mxu0 0.0
      %1109 = vmatpush1.msra.mxu0 0.0
      %1110 = vmatprep.subr.mxu0 0.0
      %1111 = vmatpush1.msra.mxu0 0.0
      %1112 = vmatprep.subr.mxu0 0.0
      %1113 = vmatpush1.msra.mxu0 0.0
      %1114 = vmatprep.subr.mxu0 0.0
      %1115 = vmatpush1.msra.mxu0 0.0
      %1116 = vmatprep.subr.mxu0 0.0
      %1117 = vmatpush1.msra.mxu0 0.0
      %1118 = vmatprep.subr.mxu0 0.0
      %1119 = vmatpush1.msra.mxu0 0.0
      %1120 = vmatprep.subr.mxu0 0.0
      %1121 = vmatpush1.msra.mxu0 0.0
      %1122 = vmatprep.subr.mxu0 0.0
      %1123 = vmatpush1.msra.mxu0 0.0
      %1124 = vmatprep.subr.mxu0 0.0
      %1125 = vmatpush1.msra.mxu0 0.0
      %1126 = vmatprep.subr.mxu0 0.0
      %1127 = vmatpush1.msra.mxu0 0.0
      %1128 = vmatprep.subr.mxu0 0.0
      %1129 = vmatpush1.msra.mxu0 0.0
      %1130 = vmatprep.subr.mxu0 0.0
      %1131 = vmatpush1.msra.mxu0 0.0
      %1132 = vmatprep.subr.mxu0 0.0
      %1133 = vmatpush1.msra.mxu0 0.0
      %1134 = vmatprep.subr.mxu0 0.0
      %1135 = vmatpush1.msra.mxu0 0.0
      %1136 = vmatprep.subr.mxu0 0.0
      %1137 = vmatpush1.msra.mxu0 0.0
      %1138 = vmatprep.subr.mxu0 0.0
      %1139 = vmatpush1.msra.mxu0 0.0
      %1140 = vmatprep.subr.mxu0 0.0
      %1141 = vmatpush1.msra.mxu0 0.0
      %1142 = vmatprep.subr.mxu0 0.0
      %1143 = vmatpush1.msra.mxu0 0.0
      %1144 = vmatprep.subr.mxu0 0.0
      %1145 = vmatpush1.msra.mxu0 0.0
      %1146 = vmatprep.subr.mxu0 0.0
      %1147 = vmatpush1.msra.mxu0 0.0
      %1148 = vmatprep.subr.mxu0 0.0
      %1149 = vmatpush1.msra.mxu0 0.0
      %1150 = vmatprep.subr.mxu0 0.0
      %1151 = vmatpush1.msra.mxu0 0.0
      %1152 = vmatprep.subr.mxu0 0.0
      %1153 = vmatpush1.msra.mxu0 0.0
      %1154 = vmatprep.subr.mxu0 0.0
      %1155 = vmatpush1.msra.mxu0 0.0
      %1156 = vmatprep.subr.mxu0 0.0
      %1157 = vmatpush1.msra.mxu0 0.0
      %1158 = vmatprep.subr.mxu0 0.0
      %1159 = vmatpush1.msra.mxu0 0.0
      %1160 = vmatprep.subr.mxu0 0.0
      %1161 = vmatpush1.msra.mxu0 0.0
      %1162 = vmatprep.subr.mxu0 0.0
      %1163 = vmatpush1.msra.mxu0 0.0
      %1164 = vmatprep.subr.mxu0 0.0
      %1165 = vmatpush1.msra.mxu0 0.0
      %1166 = vmatprep.subr.mxu0 0.0
      %1167 = vmatpush1.msra.mxu0 0.0
      %1168 = vmatprep.mubr.f32.mxu0 0.0
      %1169 = vmatmul.mubr.f32.gmra.mrb[0].mxu0 %v1102
      %v1170 = vpop.f32.mrb[0].mxu0
      %v1171 = vadd.f32 0.0, %v1170
      %v1172 = vpop.f32.mrb[0].mxu0
      %1173 = vdwg.mxu0
      %1174 = vrot.lane.b32.xlu0 %v165, 104
      %v1175 = vpop.permute.xlu0 %1174
      %1176 = vrot.lane.b32.xlu0 %v165, 72
      %v1177 = vpop.permute.xlu0 %1176
      %v1178 = vsel %vm176, %v1175, 0
      %v1180 = vsel %vm176, %v1177, 0
      %1182 = vmatprep.subr.mxu0 0.0
      %1183 = vmatpush1.xpose.msra.mxu0 %v1180
      %1184 = vmatprep.subr.mxu0 0.0
      %1185 = vmatpush1.xpose.msra.mxu0 0.0
      %1186 = vmatprep.subr.mxu0 0.0
      %1187 = vmatpush1.xpose.msra.mxu0 0.0
      %1188 = vmatprep.subr.mxu0 0.0
      %1189 = vmatpush1.xpose.msra.mxu0 0.0
      %1190 = vmatprep.subr.mxu0 0.0
      %1191 = vmatpush1.xpose.msra.mxu0 0.0
      %1192 = vmatprep.subr.mxu0 0.0
      %1193 = vmatpush1.xpose.msra.mxu0 0.0
      %1194 = vmatprep.subr.mxu0 0.0
      %1195 = vmatpush1.xpose.msra.mxu0 0.0
      %1196 = vmatprep.subr.mxu0 0.0
      %1197 = vmatpush1.xpose.msra.mxu0 0.0
      %1198 = vmatprep.subr.mxu0 0.0
      %1199 = vmatpush1.xpose.msra.mxu0 0.0
      %1200 = vmatprep.subr.mxu0 0.0
      %1201 = vmatpush1.xpose.msra.mxu0 0.0
      %1202 = vmatprep.subr.mxu0 0.0
      %1203 = vmatpush1.xpose.msra.mxu0 0.0
      %1204 = vmatprep.subr.mxu0 0.0
      %1205 = vmatpush1.xpose.msra.mxu0 0.0
      %1206 = vmatprep.subr.mxu0 0.0
      %1207 = vmatpush1.xpose.msra.mxu0 0.0
      %1208 = vmatprep.subr.mxu0 0.0
      %1209 = vmatpush1.xpose.msra.mxu0 0.0
      %1210 = vmatprep.subr.mxu0 0.0
      %1211 = vmatpush1.xpose.msra.mxu0 0.0
      %1212 = vmatprep.subr.mxu0 0.0
      %1213 = vmatpush1.xpose.msra.mxu0 0.0
      %1214 = vmatprep.subr.mxu0 0.0
      %1215 = vmatpush1.xpose.msra.mxu0 0.0
      %1216 = vmatprep.subr.mxu0 0.0
      %1217 = vmatpush1.xpose.msra.mxu0 0.0
      %1218 = vmatprep.subr.mxu0 0.0
      %1219 = vmatpush1.xpose.msra.mxu0 0.0
      %1220 = vmatprep.subr.mxu0 0.0
      %1221 = vmatpush1.xpose.msra.mxu0 0.0
      %1222 = vmatprep.subr.mxu0 0.0
      %1223 = vmatpush1.xpose.msra.mxu0 0.0
      %1224 = vmatprep.subr.mxu0 0.0
      %1225 = vmatpush1.xpose.msra.mxu0 0.0
      %1226 = vmatprep.subr.mxu0 0.0
      %1227 = vmatpush1.xpose.msra.mxu0 0.0
      %1228 = vmatprep.subr.mxu0 0.0
      %1229 = vmatpush1.xpose.msra.mxu0 0.0
      %1230 = vmatprep.subr.mxu0 0.0
      %1231 = vmatpush1.xpose.msra.mxu0 0.0
      %1232 = vmatprep.subr.mxu0 0.0
      %1233 = vmatpush1.xpose.msra.mxu0 0.0
      %1234 = vmatprep.subr.mxu0 0.0
      %1235 = vmatpush1.xpose.msra.mxu0 0.0
      %1236 = vmatprep.subr.mxu0 0.0
      %1237 = vmatpush1.xpose.msra.mxu0 0.0
      %1238 = vmatprep.subr.mxu0 0.0
      %1239 = vmatpush1.xpose.msra.mxu0 0.0
      %1240 = vmatprep.subr.mxu0 0.0
      %1241 = vmatpush1.xpose.msra.mxu0 0.0
      %1242 = vmatprep.subr.mxu0 0.0
      %1243 = vmatpush1.xpose.msra.mxu0 0.0
      %1244 = vmatprep.subr.mxu0 0.0
      %1245 = vmatpush1.xpose.msra.mxu0 0.0
      %1246 = vmatprep.mubr.f32.mxu0 0.0
      %1247 = vmatmul.mubr.f32.gmra.mrb[0].mxu0 %v1178
      %v1248 = vpop.f32.mrb[0].mxu0
      %v1249 = vadd.f32 0.0, %v1248
      %v1250 = vpop.f32.mrb[0].mxu0
      %1251 = vdwg.mxu0
      %1252 = vrot.lane.b32.xlu0 %v170, 104
      %v1253 = vpop.permute.xlu0 %1252
      %1254 = vrot.lane.b32.xlu0 %v170, 72
      %v1255 = vpop.permute.xlu0 %1254
      %v1256 = vsel %vm176, %v1253, 0
      %v1258 = vsel %vm176, %v1255, 0
      %1260 = vmatprep.subr.mxu0 0.0
      %1261 = vmatpush1.xpose.msra.mxu0 %v1258
      %1262 = vmatprep.subr.mxu0 0.0
      %1263 = vmatpush1.xpose.msra.mxu0 0.0
      %1264 = vmatprep.subr.mxu0 0.0
      %1265 = vmatpush1.xpose.msra.mxu0 0.0
      %1266 = vmatprep.subr.mxu0 0.0
      %1267 = vmatpush1.xpose.msra.mxu0 0.0
      %1268 = vmatprep.subr.mxu0 0.0
      %1269 = vmatpush1.xpose.msra.mxu0 0.0
      %1270 = vmatprep.subr.mxu0 0.0
      %1271 = vmatpush1.xpose.msra.mxu0 0.0
      %1272 = vmatprep.subr.mxu0 0.0
      %1273 = vmatpush1.xpose.msra.mxu0 0.0
      %1274 = vmatprep.subr.mxu0 0.0
      %1275 = vmatpush1.xpose.msra.mxu0 0.0
      %1276 = vmatprep.subr.mxu0 0.0
      %1277 = vmatpush1.xpose.msra.mxu0 0.0
      %1278 = vmatprep.subr.mxu0 0.0
      %1279 = vmatpush1.xpose.msra.mxu0 0.0
      %1280 = vmatprep.subr.mxu0 0.0
      %1281 = vmatpush1.xpose.msra.mxu0 0.0
      %1282 = vmatprep.subr.mxu0 0.0
      %1283 = vmatpush1.xpose.msra.mxu0 0.0
      %1284 = vmatprep.subr.mxu0 0.0
      %1285 = vmatpush1.xpose.msra.mxu0 0.0
      %1286 = vmatprep.subr.mxu0 0.0
      %1287 = vmatpush1.xpose.msra.mxu0 0.0
      %1288 = vmatprep.subr.mxu0 0.0
      %1289 = vmatpush1.xpose.msra.mxu0 0.0
      %1290 = vmatprep.subr.mxu0 0.0
      %1291 = vmatpush1.xpose.msra.mxu0 0.0
      %1292 = vmatprep.subr.mxu0 0.0
      %1293 = vmatpush1.xpose.msra.mxu0 0.0
      %1294 = vmatprep.subr.mxu0 0.0
      %1295 = vmatpush1.xpose.msra.mxu0 0.0
      %1296 = vmatprep.subr.mxu0 0.0
      %1297 = vmatpush1.xpose.msra.mxu0 0.0
      %1298 = vmatprep.subr.mxu0 0.0
      %1299 = vmatpush1.xpose.msra.mxu0 0.0
      %1300 = vmatprep.subr.mxu0 0.0
      %1301 = vmatpush1.xpose.msra.mxu0 0.0
      %1302 = vmatprep.subr.mxu0 0.0
      %1303 = vmatpush1.xpose.msra.mxu0 0.0
      %1304 = vmatprep.subr.mxu0 0.0
      %1305 = vmatpush1.xpose.msra.mxu0 0.0
      %1306 = vmatprep.subr.mxu0 0.0
      %1307 = vmatpush1.xpose.msra.mxu0 0.0
      %1308 = vmatprep.subr.mxu0 0.0
      %1309 = vmatpush1.xpose.msra.mxu0 0.0
      %1310 = vmatprep.subr.mxu0 0.0
      %1311 = vmatpush1.xpose.msra.mxu0 0.0
      %1312 = vmatprep.subr.mxu0 0.0
      %1313 = vmatpush1.xpose.msra.mxu0 0.0
      %1314 = vmatprep.subr.mxu0 0.0
      %1315 = vmatpush1.xpose.msra.mxu0 0.0
      %1316 = vmatprep.subr.mxu0 0.0
      %1317 = vmatpush1.xpose.msra.mxu0 0.0
      %1318 = vmatprep.subr.mxu0 0.0
      %1319 = vmatpush1.xpose.msra.mxu0 0.0
      %1320 = vmatprep.subr.mxu0 0.0
      %1321 = vmatpush1.xpose.msra.mxu0 0.0
      %1322 = vmatprep.subr.mxu0 0.0
      %1323 = vmatpush1.xpose.msra.mxu0 0.0
      %1324 = vmatprep.mubr.f32.mxu0 0.0
      %1325 = vmatmul.mubr.f32.gmra.mrb[0].mxu0 %v1256
      %v1326 = vpop.f32.mrb[0].mxu0
      %v1327 = vadd.f32 0.0, %v1326
      %v1328 = vpop.f32.mrb[0].mxu0
      %1329 = vdwg.mxu0
      %v1330 = vmul.f32 %v1249, 0.35355338
      %v1331 = vmul.f32 %v1327, 0.35355338
      %v1332 = vadd.f32 %v1330, %v73
      %v1333 = vadd.f32 %v1331, %v77
      %v1334 = vsel %vm176, %v1332, -inf
      %1335 = vmax.xlane.f32.xlu0 %v1334
      %v1336 = vpop.xlane.xlu0 %1335
      %v1337 = vsel %vm176, %v1333, -inf
      %1338 = vmax.xlane.f32.xlu0 %v1337
      %v1339 = vpop.xlane.xlu0 %1338
      %v1340 = vsub.f32 %v1332, %v1336
      %v1341 = vsub.f32 %v1333, %v1339
      %v1342 = vmul.f32 %v1340, 1.442695
      %v1343 = vpow.pop %v1342
      %v1344 = vmul.f32 %v1341, 1.442695
      %v1345 = vpow.pop %v1344
      %v1346 = vsel %vm176, %v1343, 0.0
      %1347 = vadd.xlane.f32.xlu0 %v1346
      %v1348 = vpop.xlane.xlu0 %1347
      %v1349 = vsel %vm176, %v1345, 0.0
      %1350 = vadd.xlane.f32.xlu0 %v1349
      %v1351 = vpop.xlane.xlu0 %1350
      %v1352 = vrcp.pop %v1348
      %v1353 = vrcp.pop %v1351
      %v1354 = vmul.f32 %v1343, %v1352
      %v1355 = vmul.f32 %v1345, %v1353
      %1356 = vrot.lane.b32.xlu0 %v165, 40
      %v1357 = vpop.permute.xlu0 %1356
      %v1360 = vsel %vm176, %v1354, 0
      %1362 = vmatprep.subr.mxu0 0.0
      %1363 = vmatpush1.msra.mxu0 %v1357
      %1364 = vmatprep.subr.mxu0 0.0
      %1365 = vmatpush1.msra.mxu0 0.0
      %1366 = vmatprep.subr.mxu0 0.0
      %1367 = vmatpush1.msra.mxu0 0.0
      %1368 = vmatprep.subr.mxu0 0.0
      %1369 = vmatpush1.msra.mxu0 0.0
      %1370 = vmatprep.subr.mxu0 0.0
      %1371 = vmatpush1.msra.mxu0 0.0
      %1372 = vmatprep.subr.mxu0 0.0
      %1373 = vmatpush1.msra.mxu0 0.0
      %1374 = vmatprep.subr.mxu0 0.0
      %1375 = vmatpush1.msra.mxu0 0.0
      %1376 = vmatprep.subr.mxu0 0.0
      %1377 = vmatpush1.msra.mxu0 0.0
      %1378 = vmatprep.subr.mxu0 0.0
      %1379 = vmatpush1.msra.mxu0 0.0
      %1380 = vmatprep.subr.mxu0 0.0
      %1381 = vmatpush1.msra.mxu0 0.0
      %1382 = vmatprep.subr.mxu0 0.0
      %1383 = vmatpush1.msra.mxu0 0.0
      %1384 = vmatprep.subr.mxu0 0.0
      %1385 = vmatpush1.msra.mxu0 0.0
      %1386 = vmatprep.subr.mxu0 0.0
      %1387 = vmatpush1.msra.mxu0 0.0
      %1388 = vmatprep.subr.mxu0 0.0
      %1389 = vmatpush1.msra.mxu0 0.0
      %1390 = vmatprep.subr.mxu0 0.0
      %1391 = vmatpush1.msra.mxu0 0.0
      %1392 = vmatprep.subr.mxu0 0.0
      %1393 = vmatpush1.msra.mxu0 0.0
      %1394 = vmatprep.subr.mxu0 0.0
      %1395 = vmatpush1.msra.mxu0 0.0
      %1396 = vmatprep.subr.mxu0 0.0
      %1397 = vmatpush1.msra.mxu0 0.0
      %1398 = vmatprep.subr.mxu0 0.0
      %1399 = vmatpush1.msra.mxu0 0.0
      %1400 = vmatprep.subr.mxu0 0.0
      %1401 = vmatpush1.msra.mxu0 0.0
      %1402 = vmatprep.subr.mxu0 0.0
      %1403 = vmatpush1.msra.mxu0 0.0
      %1404 = vmatprep.subr.mxu0 0.0
      %1405 = vmatpush1.msra.mxu0 0.0
      %1406 = vmatprep.subr.mxu0 0.0
      %1407 = vmatpush1.msra.mxu0 0.0
      %1408 = vmatprep.subr.mxu0 0.0
      %1409 = vmatpush1.msra.mxu0 0.0
      %1410 = vmatprep.subr.mxu0 0.0
      %1411 = vmatpush1.msra.mxu0 0.0
      %1412 = vmatprep.subr.mxu0 0.0
      %1413 = vmatpush1.msra.mxu0 0.0
      %1414 = vmatprep.subr.mxu0 0.0
      %1415 = vmatpush1.msra.mxu0 0.0
      %1416 = vmatprep.subr.mxu0 0.0
      %1417 = vmatpush1.msra.mxu0 0.0
      %1418 = vmatprep.subr.mxu0 0.0
      %1419 = vmatpush1.msra.mxu0 0.0
      %1420 = vmatprep.subr.mxu0 0.0
      %1421 = vmatpush1.msra.mxu0 0.0
      %1422 = vmatprep.subr.mxu0 0.0
      %1423 = vmatpush1.msra.mxu0 0.0
      %1424 = vmatprep.subr.mxu0 0.0
      %1425 = vmatpush1.msra.mxu0 0.0
      %1426 = vmatprep.mubr.f32.mxu0 0.0
      %1427 = vmatmul.mubr.f32.gmra.mrb[0].mxu0 %v1360
      %v1428 = vpop.f32.mrb[0].mxu0
      %v1429 = vadd.f32 0.0, %v1428
      %v1430 = vpop.f32.mrb[0].mxu0
      %1431 = vdwg.mxu0
      %1432 = vrot.lane.b32.xlu0 %v170, 40
      %v1433 = vpop.permute.xlu0 %1432
      %v1436 = vsel %vm176, %v1355, 0
      %1438 = vmatprep.subr.mxu0 0.0
      %1439 = vmatpush1.msra.mxu0 %v1433
      %1440 = vmatprep.subr.mxu0 0.0
      %1441 = vmatpush1.msra.mxu0 0.0
      %1442 = vmatprep.subr.mxu0 0.0
      %1443 = vmatpush1.msra.mxu0 0.0
      %1444 = vmatprep.subr.mxu0 0.0
      %1445 = vmatpush1.msra.mxu0 0.0
      %1446 = vmatprep.subr.mxu0 0.0
      %1447 = vmatpush1.msra.mxu0 0.0
      %1448 = vmatprep.subr.mxu0 0.0
      %1449 = vmatpush1.msra.mxu0 0.0
      %1450 = vmatprep.subr.mxu0 0.0
      %1451 = vmatpush1.msra.mxu0 0.0
      %1452 = vmatprep.subr.mxu0 0.0
      %1453 = vmatpush1.msra.mxu0 0.0
      %1454 = vmatprep.subr.mxu0 0.0
      %1455 = vmatpush1.msra.mxu0 0.0
      %1456 = vmatprep.subr.mxu0 0.0
      %1457 = vmatpush1.msra.mxu0 0.0
      %1458 = vmatprep.subr.mxu0 0.0
      %1459 = vmatpush1.msra.mxu0 0.0
      %1460 = vmatprep.subr.mxu0 0.0
      %1461 = vmatpush1.msra.mxu0 0.0
      %1462 = vmatprep.subr.mxu0 0.0
      %1463 = vmatpush1.msra.mxu0 0.0
      %1464 = vmatprep.subr.mxu0 0.0
      %1465 = vmatpush1.msra.mxu0 0.0
      %1466 = vmatprep.subr.mxu0 0.0
      %1467 = vmatpush1.msra.mxu0 0.0
      %1468 = vmatprep.subr.mxu0 0.0
      %1469 = vmatpush1.msra.mxu0 0.0
      %1470 = vmatprep.subr.mxu0 0.0
      %1471 = vmatpush1.msra.mxu0 0.0
      %1472 = vmatprep.subr.mxu0 0.0
      %1473 = vmatpush1.msra.mxu0 0.0
      %1474 = vmatprep.subr.mxu0 0.0
      %1475 = vmatpush1.msra.mxu0 0.0
      %1476 = vmatprep.subr.mxu0 0.0
      %1477 = vmatpush1.msra.mxu0 0.0
      %1478 = vmatprep.subr.mxu0 0.0
      %1479 = vmatpush1.msra.mxu0 0.0
      %1480 = vmatprep.subr.mxu0 0.0
      %1481 = vmatpush1.msra.mxu0 0.0
      %1482 = vmatprep.subr.mxu0 0.0
      %1483 = vmatpush1.msra.mxu0 0.0
      %1484 = vmatprep.subr.mxu0 0.0
      %1485 = vmatpush1.msra.mxu0 0.0
      %1486 = vmatprep.subr.mxu0 0.0
      %1487 = vmatpush1.msra.mxu0 0.0
      %1488 = vmatprep.subr.mxu0 0.0
      %1489 = vmatpush1.msra.mxu0 0.0
      %1490 = vmatprep.subr.mxu0 0.0
      %1491 = vmatpush1.msra.mxu0 0.0
      %1492 = vmatprep.subr.mxu0 0.0
      %1493 = vmatpush1.msra.mxu0 0.0
      %1494 = vmatprep.subr.mxu0 0.0
      %1495 = vmatpush1.msra.mxu0 0.0
      %1496 = vmatprep.subr.mxu0 0.0
      %1497 = vmatpush1.msra.mxu0 0.0
      %1498 = vmatprep.subr.mxu0 0.0
      %1499 = vmatpush1.msra.mxu0 0.0
      %1500 = vmatprep.subr.mxu0 0.0
      %1501 = vmatpush1.msra.mxu0 0.0
      %1502 = vmatprep.mubr.f32.mxu0 0.0
      %1503 = vmatmul.mubr.f32.gmra.mrb[0].mxu0 %v1436
      %v1504 = vpop.f32.mrb[0].mxu0
      %v1505 = vadd.f32 0.0, %v1504
      %v1506 = vpop.f32.mrb[0].mxu0
      %1507 = vdwg.mxu0
      %1510 = vrot.lane.b32.xlu0 %v761, 8
      %v1511 = vpop.permute.xlu0 %1510
      %1512 = vrot.lane.b32.xlu0 %v837, 8
      %v1513 = vpop.permute.xlu0 %1512
      %1518 = vrot.lane.b32.xlu0 %v1095, 16
      %v1519 = vpop.permute.xlu0 %1518
      %1520 = vrot.lane.b32.xlu0 %v1171, 16
      %v1521 = vpop.permute.xlu0 %1520
      %1526 = vrot.lane.b32.xlu0 %v1429, 24
      %v1527 = vpop.permute.xlu0 %1526
      %1528 = vrot.lane.b32.xlu0 %v1505, 24
      %v1529 = vpop.permute.xlu0 %1528
      %v1532 = vsel %vm176, %v427, %v1511
      %v1533 = vsel %vm176, %v503, %v1513
      %vm1534 = vcmask 130048
      %v1535 = vsel %vm1534, %v1532, %v1519
      %v1536 = vsel %vm1534, %v1533, %v1521
      %vm1537 = vcmask 195584
      %v1538 = vsel %vm1537, %v1535, %v1527
      %v1539 = vsel %vm1537, %v1536, %v1529
      %v1540 = vld [vmem:[%s5] sm:$0xff]
      %v1541 = vld [vmem:[%s5 + $0x8] sm:$0xff]
      %v1542 = vld [vmem:[%s5 + $0x10] sm:$0xff]
      %v1543 = vld [vmem:[%s5 + $0x18] sm:$0xff]
      %v1544 = vld [vmem:[%s6] sm:$0x1]
      %v1546 = vlaneseq
      %v1547 = vshrl.u32 %v1546, 7
      %v1548 = vsub.s32 0, %v1547
      %v1549 = vrot.slane %v1544, %v1548
      %v1552 = vsel %vm91, %v1538, 0
      %v1555 = vsel %vm91, %v1539, 0
      %1557 = vmatprep.subr.mxu0 0.0
      %1558 = vmatpush1.msra.mxu0 %v1540
      %1559 = vmatprep.subr.mxu0 0.0
      %1560 = vmatpush1.msra.mxu0 %v1541
      %1561 = vmatprep.subr.mxu0 0.0
      %1562 = vmatpush1.msra.mxu0 %v1542
      %1563 = vmatprep.subr.mxu0 0.0
      %1564 = vmatpush1.msra.mxu0 %v1543
      %1565 = vmatprep.subr.mxu0 0.0
      %1566 = vmatpush1.msra.mxu0 0.0
      %1567 = vmatprep.subr.mxu0 0.0
      %1568 = vmatpush1.msra.mxu0 0.0
      %1569 = vmatprep.subr.mxu0 0.0
      %1570 = vmatpush1.msra.mxu0 0.0
      %1571 = vmatprep.subr.mxu0 0.0
      %1572 = vmatpush1.msra.mxu0 0.0
      %1573 = vmatprep.subr.mxu0 0.0
      %1574 = vmatpush1.msra.mxu0 0.0
      %1575 = vmatprep.subr.mxu0 0.0
      %1576 = vmatpush1.msra.mxu0 0.0
      %1577 = vmatprep.subr.mxu0 0.0
      %1578 = vmatpush1.msra.mxu0 0.0
      %1579 = vmatprep.subr.mxu0 0.0
      %1580 = vmatpush1.msra.mxu0 0.0
      %1581 = vmatprep.subr.mxu0 0.0
      %1582 = vmatpush1.msra.mxu0 0.0
      %1583 = vmatprep.subr.mxu0 0.0
      %1584 = vmatpush1.msra.mxu0 0.0
      %1585 = vmatprep.subr.mxu0 0.0
      %1586 = vmatpush1.msra.mxu0 0.0
      %1587 = vmatprep.subr.mxu0 0.0
      %1588 = vmatpush1.msra.mxu0 0.0
      %1589 = vmatprep.subr.mxu0 0.0
      %1590 = vmatpush1.msra.mxu0 0.0
      %1591 = vmatprep.subr.mxu0 0.0
      %1592 = vmatpush1.msra.mxu0 0.0
      %1593 = vmatprep.subr.mxu0 0.0
      %1594 = vmatpush1.msra.mxu0 0.0
      %1595 = vmatprep.subr.mxu0 0.0
      %1596 = vmatpush1.msra.mxu0 0.0
      %1597 = vmatprep.subr.mxu0 0.0
      %1598 = vmatpush1.msra.mxu0 0.0
      %1599 = vmatprep.subr.mxu0 0.0
      %1600 = vmatpush1.msra.mxu0 0.0
      %1601 = vmatprep.subr.mxu0 0.0
      %1602 = vmatpush1.msra.mxu0 0.0
      %1603 = vmatprep.subr.mxu0 0.0
      %1604 = vmatpush1.msra.mxu0 0.0
      %1605 = vmatprep.subr.mxu0 0.0
      %1606 = vmatpush1.msra.mxu0 0.0
      %1607 = vmatprep.subr.mxu0 0.0
      %1608 = vmatpush1.msra.mxu0 0.0
      %1609 = vmatprep.subr.mxu0 0.0
      %1610 = vmatpush1.msra.mxu0 0.0
      %1611 = vmatprep.subr.mxu0 0.0
      %1612 = vmatpush1.msra.mxu0 0.0
      %1613 = vmatprep.subr.mxu0 0.0
      %1614 = vmatpush1.msra.mxu0 0.0
      %1615 = vmatprep.subr.mxu0 0.0
      %1616 = vmatpush1.msra.mxu0 0.0
      %1617 = vmatprep.subr.mxu0 0.0
      %1618 = vmatpush1.msra.mxu0 0.0
      %1619 = vmatprep.subr.mxu0 0.0
      %1620 = vmatpush1.msra.mxu0 0.0
      %1621 = vmatprep.mubr.f32.mxu0 0.0
      %1622 = vmatmul.mubr.f32.gmra.mrb[0].mxu0 %v1552
      %v1623 = vpop.f32.mrb[0].mxu0
      %v1624 = vadd.f32 %v1549, %v1623
      %v1625 = vpop.f32.mrb[0].mxu0
      %1626 = vmatprep.mubr.f32.mxu0 0.0
      %1627 = vmatmul.mubr.f32.gmra.mrb[0].mxu0 %v1555
      %v1628 = vpop.f32.mrb[0].mxu0
      %v1629 = vadd.f32 %v1549, %v1628
      %v1630 = vpop.f32.mrb[0].mxu0
      %1631 = vdwg.mxu0
      %v1632 = vadd.f32 %v64, %v1624
      %v1633 = vadd.f32 %v65, %v1629
      %v1634 = vld [vmem:[%s7] sm:$0x1]
      %v1635 = vld [vmem:[%s8] sm:$0x1]
      %v1636 = vsel %vm91, %v1632, 0.0
      %1637 = vadd.xlane.f32.xlu0 %v1636
      %v1638 = vpop.xlane.xlu0 %1637
      %v1639 = vsel %vm91, %v1633, 0.0
      %1640 = vadd.xlane.f32.xlu0 %v1639
      %v1641 = vpop.xlane.xlu0 %1640
      %v1642 = vrcp.pop 32.0
      %v1643 = vmul.f32 %v1638, %v1642
      %v1644 = vmul.f32 %v1641, %v1642
      %v1645 = vsub.f32 %v1632, %v1643
      %v1646 = vsub.f32 %v1633, %v1644
      %v1647 = vmul.f32 %v1645, %v1645
      %v1648 = vmul.f32 %v1646, %v1646
      %v1649 = vsel %vm91, %v1647, 0.0
      %1650 = vadd.xlane.f32.xlu0 %v1649
      %v1651 = vpop.xlane.xlu0 %1650
      %v1652 = vsel %vm91, %v1648, 0.0
      %1653 = vadd.xlane.f32.xlu0 %v1652
      %v1654 = vpop.xlane.xlu0 %1653
      %v1655 = vmul.f32 %v1651, %v1642
      %v1656 = vmul.f32 %v1654, %v1642
      %v1657 = vadd.f32 %v1655, 1e-05
      %v1658 = vadd.f32 %v1656, 1e-05
      %v1659 = vrsqrt.pop %v1657
      %v1660 = vrsqrt.pop %v1658
      %v1661 = vmul.f32 %v1645, %v1659
      %v1662 = vmul.f32 %v1646, %v1660
      %v1664 = vlaneseq
      %v1665 = vshrl.u32 %v1664, 7
      %v1666 = vsub.s32 0, %v1665
      %v1667 = vrot.slane %v1634, %v1666
      %v1669 = vmul.f32 %v1661, %v1667
      %v1670 = vmul.f32 %v1662, %v1667
      %v1672 = vlaneseq
      %v1673 = vshrl.u32 %v1672, 7
      %v1674 = vsub.s32 0, %v1673
      %v1675 = vrot.slane %v1635, %v1674
      %v1677 = vadd.f32 %v1669, %v1675
      %v1678 = vadd.f32 %v1670, %v1675
      %v1679 = vld [vmem:[%s9] sm:$0xff]
      %v1680 = vld [vmem:[%s9 + $0x8] sm:$0xff]
      %v1681 = vld [vmem:[%s9 + $0x10] sm:$0xff]
      %v1682 = vld [vmem:[%s9 + $0x18] sm:$0xff]
      %v1683 = vld [vmem:[%s10] sm:$0x1]
      %v1685 = vlaneseq
      %v1686 = vshrl.u32 %v1685, 7
      %v1687 = vsub.s32 0, %v1686
      %v1688 = vrot.slane %v1683, %v1687
      %v1691 = vsel %vm91, %v1677, 0
      %v1694 = vsel %vm91, %v1678, 0
      %1696 = vmatprep.subr.mxu0 0.0
      %1697 = vmatpush1.msra.mxu0 %v1679
      %1698 = vmatprep.subr.mxu0 0.0
      %1699 = vmatpush1.msra.mxu0 %v1680
      %1700 = vmatprep.subr.mxu0 0.0
      %1701 = vmatpush1.msra.mxu0 %v1681
      %1702 = vmatprep.subr.mxu0 0.0
      %1703 = vmatpush1.msra.mxu0 %v1682
      %1704 = vmatprep.subr.mxu0 0.0
      %1705 = vmatpush1.msra.mxu0 0.0
      %1706 = vmatprep.subr.mxu0 0.0
      %1707 = vmatpush1.msra.mxu0 0.0
      %1708 = vmatprep.subr.mxu0 0.0
      %1709 = vmatpush1.msra.mxu0 0.0
      %1710 = vmatprep.subr.mxu0 0.0
      %1711 = vmatpush1.msra.mxu0 0.0
      %1712 = vmatprep.subr.mxu0 0.0
      %1713 = vmatpush1.msra.mxu0 0.0
      %1714 = vmatprep.subr.mxu0 0.0
      %1715 = vmatpush1.msra.mxu0 0.0
      %1716 = vmatprep.subr.mxu0 0.0
      %1717 = vmatpush1.msra.mxu0 0.0
      %1718 = vmatprep.subr.mxu0 0.0
      %1719 = vmatpush1.msra.mxu0 0.0
      %1720 = vmatprep.subr.mxu0 0.0
      %1721 = vmatpush1.msra.mxu0 0.0
      %1722 = vmatprep.subr.mxu0 0.0
      %1723 = vmatpush1.msra.mxu0 0.0
      %1724 = vmatprep.subr.mxu0 0.0
      %1725 = vmatpush1.msra.mxu0 0.0
      %1726 = vmatprep.subr.mxu0 0.0
      %1727 = vmatpush1.msra.mxu0 0.0
      %1728 = vmatprep.subr.mxu0 0.0
      %1729 = vmatpush1.msra.mxu0 0.0
      %1730 = vmatprep.subr.mxu0 0.0
      %1731 = vmatpush1.msra.mxu0 0.0
      %1732 = vmatprep.subr.mxu0 0.0
      %1733 = vmatpush1.msra.mxu0 0.0
      %1734 = vmatprep.subr.mxu0 0.0
      %1735 = vmatpush1.msra.mxu0 0.0
      %1736 = vmatprep.subr.mxu0 0.0
      %1737 = vmatpush1.msra.mxu0 0.0
      %1738 = vmatprep.subr.mxu0 0.0
      %1739 = vmatpush1.msra.mxu0 0.0
      %1740 = vmatprep.subr.mxu0 0.0
      %1741 = vmatpush1.msra.mxu0 0.0
      %1742 = vmatprep.subr.mxu0 0.0
      %1743 = vmatpush1.msra.mxu0 0.0
      %1744 = vmatprep.subr.mxu0 0.0
      %1745 = vmatpush1.msra.mxu0 0.0
      %1746 = vmatprep.subr.mxu0 0.0
      %1747 = vmatpush1.msra.mxu0 0.0
      %1748 = vmatprep.subr.mxu0 0.0
      %1749 = vmatpush1.msra.mxu0 0.0
      %1750 = vmatprep.subr.mxu0 0.0
      %1751 = vmatpush1.msra.mxu0 0.0
      %1752 = vmatprep.subr.mxu0 0.0
      %1753 = vmatpush1.msra.mxu0 0.0
      %1754 = vmatprep.subr.mxu0 0.0
      %1755 = vmatpush1.msra.mxu0 0.0
      %1756 = vmatprep.subr.mxu0 0.0
      %1757 = vmatpush1.msra.mxu0 0.0
      %1758 = vmatprep.subr.mxu0 0.0
      %1759 = vmatpush1.msra.mxu0 0.0
      %1760 = vmatprep.mubr.f32.mxu0 0.0
      %1761 = vmatmul.mubr.f32.gmra.mrb[0].mxu0 %v1691
      %v1762 = vpop.f32.mrb[0].mxu0
      %v1763 = vadd.f32 %v1688, %v1762
      %v1764 = vpop.f32.mrb[0].mxu0
      %1765 = vmatprep.mubr.f32.mxu0 0.0
      %1766 = vmatmul.mubr.f32.gmra.mrb[0].mxu0 %v1694
      %v1767 = vpop.f32.mrb[0].mxu0
      %v1768 = vadd.f32 %v1688, %v1767
      %v1769 = vpop.f32.mrb[0].mxu0
      %1770 = vdwg.mxu0
      %v1771 = vmax.f32 %v1763, 0.0
      %v1772 = vmax.f32 %v1768, 0.0
      %v1773 = vld [vmem:[%s11] sm:$0xff]
      %v1774 = vld [vmem:[%s11 + $0x8] sm:$0xff]
      %v1775 = vld [vmem:[%s11 + $0x10] sm:$0xff]
      %v1776 = vld [vmem:[%s11 + $0x18] sm:$0xff]
      %v1777 = vld [vmem:[%s11 + $0x20] sm:$0xff]
      %v1778 = vld [vmem:[%s11 + $0x28] sm:$0xff]
      %v1779 = vld [vmem:[%s11 + $0x30] sm:$0xff]
      %v1780 = vld [vmem:[%s11 + $0x38] sm:$0xff]
      %v1781 = vld [vmem:[%s12] sm:$0x1]
      %v1783 = vlaneseq
      %v1784 = vshrl.u32 %v1783, 7
      %v1785 = vsub.s32 0, %v1784
      %v1786 = vrot.slane %v1781, %v1785
      %vm1788 = vcmask 523264
      %v1790 = vsel %vm1788, %v1771, 0
      %v1793 = vsel %vm1788, %v1772, 0
      %1795 = vmatprep.subr.mxu0 0.0
      %1796 = vmatpush1.msra.mxu0 %v1773
      %1797 = vmatprep.subr.mxu0 0.0
      %1798 = vmatpush1.msra.mxu0 %v1774
      %1799 = vmatprep.subr.mxu0 0.0
      %1800 = vmatpush1.msra.mxu0 %v1775
      %1801 = vmatprep.subr.mxu0 0.0
      %1802 = vmatpush1.msra.mxu0 %v1776
      %1803 = vmatprep.subr.mxu0 0.0
      %1804 = vmatpush1.msra.mxu0 %v1777
      %1805 = vmatprep.subr.mxu0 0.0
      %1806 = vmatpush1.msra.mxu0 %v1778
      %1807 = vmatprep.subr.mxu0 0.0
      %1808 = vmatpush1.msra.mxu0 %v1779
      %1809 = vmatprep.subr.mxu0 0.0
      %1810 = vmatpush1.msra.mxu0 %v1780
      %1811 = vmatprep.subr.mxu0 0.0
      %1812 = vmatpush1.msra.mxu0 0.0
      %1813 = vmatprep.subr.mxu0 0.0
      %1814 = vmatpush1.msra.mxu0 0.0
      %1815 = vmatprep.subr.mxu0 0.0
      %1816 = vmatpush1.msra.mxu0 0.0
      %1817 = vmatprep.subr.mxu0 0.0
      %1818 = vmatpush1.msra.mxu0 0.0
      %1819 = vmatprep.subr.mxu0 0.0
      %1820 = vmatpush1.msra.mxu0 0.0
      %1821 = vmatprep.subr.mxu0 0.0
      %1822 = vmatpush1.msra.mxu0 0.0
      %1823 = vmatprep.subr.mxu0 0.0
      %1824 = vmatpush1.msra.mxu0 0.0
      %1825 = vmatprep.subr.mxu0 0.0
      %1826 = vmatpush1.msra.mxu0 0.0
      %1827 = vmatprep.subr.mxu0 0.0
      %1828 = vmatpush1.msra.mxu0 0.0
      %1829 = vmatprep.subr.mxu0 0.0
      %1830 = vmatpush1.msra.mxu0 0.0
      %1831 = vmatprep.subr.mxu0 0.0
      %1832 = vmatpush1.msra.mxu0 0.0
      %1833 = vmatprep.subr.mxu0 0.0
      %1834 = vmatpush1.msra.mxu0 0.0
      %1835 = vmatprep.subr.mxu0 0.0
      %1836 = vmatpush1.msra.mxu0 0.0
      %1837 = vmatprep.subr.mxu0 0.0
      %1838 = vmatpush1.msra.mxu0 0.0
      %1839 = vmatprep.subr.mxu0 0.0
      %1840 = vmatpush1.msra.mxu0 0.0
      %1841 = vmatprep.subr.mxu0 0.0
      %1842 = vmatpush1.msra.mxu0 0.0
      %1843 = vmatprep.subr.mxu0 0.0
      %1844 = vmatpush1.msra.mxu0 0.0
      %1845 = vmatprep.subr.mxu0 0.0
      %1846 = vmatpush1.msra.mxu0 0.0
      %1847 = vmatprep.subr.mxu0 0.0
      %1848 = vmatpush1.msra.mxu0 0.0
      %1849 = vmatprep.subr.mxu0 0.0
      %1850 = vmatpush1.msra.mxu0 0.0
      %1851 = vmatprep.subr.mxu0 0.0
      %1852 = vmatpush1.msra.mxu0 0.0
      %1853 = vmatprep.subr.mxu0 0.0
      %1854 = vmatpush1.msra.mxu0 0.0
      %1855 = vmatprep.subr.mxu0 0.0
      %1856 = vmatpush1.msra.mxu0 0.0
      %1857 = vmatprep.subr.mxu0 0.0
      %1858 = vmatpush1.msra.mxu0 0.0
      %1859 = vmatprep.mubr.f32.mxu0 0.0
      %1860 = vmatmul.mubr.f32.gmra.mrb[0].mxu0 %v1790
      %v1861 = vpop.f32.mrb[0].mxu0
      %v1862 = vadd.f32 %v1786, %v1861
      %v1863 = vpop.f32.mrb[0].mxu0
      %1864 = vmatprep.mubr.f32.mxu0 0.0
      %1865 = vmatmul.mubr.f32.gmra.mrb[0].mxu0 %v1793
      %v1866 = vpop.f32.mrb[0].mxu0
      %v1867 = vadd.f32 %v1786, %v1866
      %v1868 = vpop.f32.mrb[0].mxu0
      %1869 = vdwg.mxu0
      %v1870 = vadd.f32 %v1677, %v1862
      %v1871 = vadd.f32 %v1678, %v1867
      %v1872 = vld [vmem:[%s13] sm:$0x1]
      %v1873 = vld [vmem:[%s14] sm:$0x1]
      %v1874 = vsel %vm91, %v1870, 0.0
      %1875 = vadd.xlane.f32.xlu0 %v1874
      %v1876 = vpop.xlane.xlu0 %1875
      %v1877 = vsel %vm91, %v1871, 0.0
      %1878 = vadd.xlane.f32.xlu0 %v1877
      %v1879 = vpop.xlane.xlu0 %1878
      %v1880 = vmul.f32 %v1876, %v1642
      %v1881 = vmul.f32 %v1879, %v1642
      %v1882 = vsub.f32 %v1870, %v1880
      %v1883 = vsub.f32 %v1871, %v1881
      %v1884 = vmul.f32 %v1882, %v1882
      %v1885 = vmul.f32 %v1883, %v1883
      %v1886 = vsel %vm91, %v1884, 0.0
      %1887 = vadd.xlane.f32.xlu0 %v1886
      %v1888 = vpop.xlane.xlu0 %1887
      %v1889 = vsel %vm91, %v1885, 0.0
      %1890 = vadd.xlane.f32.xlu0 %v1889
      %v1891 = vpop.xlane.xlu0 %1890
      %v1892 = vmul.f32 %v1888, %v1642
      %v1893 = vmul.f32 %v1891, %v1642
      %v1894 = vadd.f32 %v1892, 1e-05
      %v1895 = vadd.f32 %v1893, 1e-05
      %v1896 = vrsqrt.pop %v1894
      %v1897 = vrsqrt.pop %v1895
      %v1898 = vmul.f32 %v1882, %v1896
      %v1899 = vmul.f32 %v1883, %v1897
      %v1901 = vlaneseq
      %v1902 = vshrl.u32 %v1901, 7
      %v1903 = vsub.s32 0, %v1902
      %v1904 = vrot.slane %v1872, %v1903
      %v1906 = vmul.f32 %v1898, %v1904
      %v1907 = vmul.f32 %v1899, %v1904
      %v1909 = vlaneseq
      %v1910 = vshrl.u32 %v1909, 7
      %v1911 = vsub.s32 0, %v1910
      %v1912 = vrot.slane %v1873, %v1911
      %v1914 = vadd.f32 %v1906, %v1912
      %v1915 = vadd.f32 %v1907, %v1912
      %s1916 = scalar_lea.vmem %s3, 32
      %v1917 = vld [vmem:[%s1916] sm:$0xff]
      %v1918 = vld [vmem:[%s1916 + $0x8] sm:$0xff]
      %v1919 = vld [vmem:[%s1916 + $0x10] sm:$0xff]
      %v1920 = vld [vmem:[%s1916 + $0x18] sm:$0xff]
      %s1921 = scalar_lea.vmem %s4, 1
      %v1922 = vld [vmem:[%s1921] sm:$0x1]
      %v1924 = vlaneseq
      %v1925 = vshrl.u32 %v1924, 7
      %v1926 = vsub.s32 0, %v1925
      %v1927 = vrot.slane %v1922, %v1926
      %v1930 = vsel %vm91, %v1914, 0
      %v1933 = vsel %vm91, %v1915, 0
      %1935 = vmatprep.subr.mxu0 0.0
      %1936 = vmatpush1.msra.mxu0 %v1917
      %1937 = vmatprep.subr.mxu0 0.0
      %1938 = vmatpush1.msra.mxu0 %v1918
      %1939 = vmatprep.subr.mxu0 0.0
      %1940 = vmatpush1.msra.mxu0 %v1919
      %1941 = vmatprep.subr.mxu0 0.0
      %1942 = vmatpush1.msra.mxu0 %v1920
      %1943 = vmatprep.subr.mxu0 0.0
      %1944 = vmatpush1.msra.mxu0 0.0
      %1945 = vmatprep.subr.mxu0 0.0
      %1946 = vmatpush1.msra.mxu0 0.0
      %1947 = vmatprep.subr.mxu0 0.0
      %1948 = vmatpush1.msra.mxu0 0.0
      %1949 = vmatprep.subr.mxu0 0.0
      %1950 = vmatpush1.msra.mxu0 0.0
      %1951 = vmatprep.subr.mxu0 0.0
      %1952 = vmatpush1.msra.mxu0 0.0
      %1953 = vmatprep.subr.mxu0 0.0
      %1954 = vmatpush1.msra.mxu0 0.0
      %1955 = vmatprep.subr.mxu0 0.0
      %1956 = vmatpush1.msra.mxu0 0.0
      %1957 = vmatprep.subr.mxu0 0.0
      %1958 = vmatpush1.msra.mxu0 0.0
      %1959 = vmatprep.subr.mxu0 0.0
      %1960 = vmatpush1.msra.mxu0 0.0
      %1961 = vmatprep.subr.mxu0 0.0
      %1962 = vmatpush1.msra.mxu0 0.0
      %1963 = vmatprep.subr.mxu0 0.0
      %1964 = vmatpush1.msra.mxu0 0.0
      %1965 = vmatprep.subr.mxu0 0.0
      %1966 = vmatpush1.msra.mxu0 0.0
      %1967 = vmatprep.subr.mxu0 0.0
      %1968 = vmatpush1.msra.mxu0 0.0
      %1969 = vmatprep.subr.mxu0 0.0
      %1970 = vmatpush1.msra.mxu0 0.0
      %1971 = vmatprep.subr.mxu0 0.0
      %1972 = vmatpush1.msra.mxu0 0.0
      %1973 = vmatprep.subr.mxu0 0.0
      %1974 = vmatpush1.msra.mxu0 0.0
      %1975 = vmatprep.subr.mxu0 0.0
      %1976 = vmatpush1.msra.mxu0 0.0
      %1977 = vmatprep.subr.mxu0 0.0
      %1978 = vmatpush1.msra.mxu0 0.0
      %1979 = vmatprep.subr.mxu0 0.0
      %1980 = vmatpush1.msra.mxu0 0.0
      %1981 = vmatprep.subr.mxu0 0.0
      %1982 = vmatpush1.msra.mxu0 0.0
      %1983 = vmatprep.subr.mxu0 0.0
      %1984 = vmatpush1.msra.mxu0 0.0
      %1985 = vmatprep.subr.mxu0 0.0
      %1986 = vmatpush1.msra.mxu0 0.0
      %1987 = vmatprep.subr.mxu0 0.0
      %1988 = vmatpush1.msra.mxu0 0.0
      %1989 = vmatprep.subr.mxu0 0.0
      %1990 = vmatpush1.msra.mxu0 0.0
      %1991 = vmatprep.subr.mxu0 0.0
      %1992 = vmatpush1.msra.mxu0 0.0
      %1993 = vmatprep.subr.mxu0 0.0
      %1994 = vmatpush1.msra.mxu0 0.0
      %1995 = vmatprep.subr.mxu0 0.0
      %1996 = vmatpush1.msra.mxu0 0.0
      %1997 = vmatprep.subr.mxu0 0.0
      %1998 = vmatpush1.msra.mxu0 0.0
      %1999 = vmatprep.mubr.f32.mxu0 0.0
      %2000 = vmatmul.mubr.f32.gmra.mrb[0].mxu0 %v1930
      %v2001 = vpop.f32.mrb[0].mxu0
      %v2002 = vadd.f32 %v1927, %v2001
      %v2003 = vpop.f32.mrb[0].mxu0
      %2004 = vmatprep.mubr.f32.mxu0 0.0
      %2005 = vmatmul.mubr.f32.gmra.mrb[0].mxu0 %v1933
      %v2006 = vpop.f32.mrb[0].mxu0
      %v2007 = vadd.f32 %v1927, %v2006
      %v2008 = vpop.f32.mrb[0].mxu0
      %2009 = vdwg.mxu0
      %2011 = vrot.lane.b32.xlu0 %v2002, 96
      %v2012 = vpop.permute.xlu0 %2011
      %v2013 = vsel %vm176, %v2002, 0
      %v2015 = vsel %vm176, %v2012, 0
      %2017 = vmatprep.subr.mxu0 0.0
      %2018 = vmatpush1.xpose.msra.mxu0 %v2015
      %2019 = vmatprep.subr.mxu0 0.0
      %2020 = vmatpush1.xpose.msra.mxu0 0.0
      %2021 = vmatprep.subr.mxu0 0.0
      %2022 = vmatpush1.xpose.msra.mxu0 0.0
      %2023 = vmatprep.subr.mxu0 0.0
      %2024 = vmatpush1.xpose.msra.mxu0 0.0
      %2025 = vmatprep.subr.mxu0 0.0
      %2026 = vmatpush1.xpose.msra.mxu0 0.0
      %2027 = vmatprep.subr.mxu0 0.0
      %2028 = vmatpush1.xpose.msra.mxu0 0.0
      %2029 = vmatprep.subr.mxu0 0.0
      %2030 = vmatpush1.xpose.msra.mxu0 0.0
      %2031 = vmatprep.subr.mxu0 0.0
      %2032 = vmatpush1.xpose.msra.mxu0 0.0
      %2033 = vmatprep.subr.mxu0 0.0
      %2034 = vmatpush1.xpose.msra.mxu0 0.0
      %2035 = vmatprep.subr.mxu0 0.0
      %2036 = vmatpush1.xpose.msra.mxu0 0.0
      %2037 = vmatprep.subr.mxu0 0.0
      %2038 = vmatpush1.xpose.msra.mxu0 0.0
      %2039 = vmatprep.subr.mxu0 0.0
      %2040 = vmatpush1.xpose.msra.mxu0 0.0
      %2041 = vmatprep.subr.mxu0 0.0
      %2042 = vmatpush1.xpose.msra.mxu0 0.0
      %2043 = vmatprep.subr.mxu0 0.0
      %2044 = vmatpush1.xpose.msra.mxu0 0.0
      %2045 = vmatprep.subr.mxu0 0.0
      %2046 = vmatpush1.xpose.msra.mxu0 0.0
      %2047 = vmatprep.subr.mxu0 0.0
      %2048 = vmatpush1.xpose.msra.mxu0 0.0
      %2049 = vmatprep.subr.mxu0 0.0
      %2050 = vmatpush1.xpose.msra.mxu0 0.0
      %2051 = vmatprep.subr.mxu0 0.0
      %2052 = vmatpush1.xpose.msra.mxu0 0.0
      %2053 = vmatprep.subr.mxu0 0.0
      %2054 = vmatpush1.xpose.msra.mxu0 0.0
      %2055 = vmatprep.subr.mxu0 0.0
      %2056 = vmatpush1.xpose.msra.mxu0 0.0
      %2057 = vmatprep.subr.mxu0 0.0
      %2058 = vmatpush1.xpose.msra.mxu0 0.0
      %2059 = vmatprep.subr.mxu0 0.0
      %2060 = vmatpush1.xpose.msra.mxu0 0.0
      %2061 = vmatprep.subr.mxu0 0.0
      %2062 = vmatpush1.xpose.msra.mxu0 0.0
      %2063 = vmatprep.subr.mxu0 0.0
      %2064 = vmatpush1.xpose.msra.mxu0 0.0
      %2065 = vmatprep.subr.mxu0 0.0
      %2066 = vmatpush1.xpose.msra.mxu0 0.0
      %2067 = vmatprep.subr.mxu0 0.0
      %2068 = vmatpush1.xpose.msra.mxu0 0.0
      %2069 = vmatprep.subr.mxu0 0.0
      %2070 = vmatpush1.xpose.msra.mxu0 0.0
      %2071 = vmatprep.subr.mxu0 0.0
      %2072 = vmatpush1.xpose.msra.mxu0 0.0
      %2073 = vmatprep.subr.mxu0 0.0
      %2074 = vmatpush1.xpose.msra.mxu0 0.0
      %2075 = vmatprep.subr.mxu0 0.0
      %2076 = vmatpush1.xpose.msra.mxu0 0.0
      %2077 = vmatprep.subr.mxu0 0.0
      %2078 = vmatpush1.xpose.msra.mxu0 0.0
      %2079 = vmatprep.subr.mxu0 0.0
      %2080 = vmatpush1.xpose.msra.mxu0 0.0
      %2081 = vmatprep.mubr.f32.mxu0 0.0
      %2082 = vmatmul.mubr.f32.gmra.mrb[0].mxu0 %v2013
      %v2083 = vpop.f32.mrb[0].mxu0
      %v2084 = vadd.f32 0.0, %v2083
      %v2085 = vpop.f32.mrb[0].mxu0
      %2086 = vdwg.mxu0
      %2088 = vrot.lane.b32.xlu0 %v2007, 96
      %v2089 = vpop.permute.xlu0 %2088
      %v2090 = vsel %vm176, %v2007, 0
      %v2092 = vsel %vm176, %v2089, 0
      %2094 = vmatprep.subr.mxu0 0.0
      %2095 = vmatpush1.xpose.msra.mxu0 %v2092
      %2096 = vmatprep.subr.mxu0 0.0
      %2097 = vmatpush1.xpose.msra.mxu0 0.0
      %2098 = vmatprep.subr.mxu0 0.0
      %2099 = vmatpush1.xpose.msra.mxu0 0.0
      %2100 = vmatprep.subr.mxu0 0.0
      %2101 = vmatpush1.xpose.msra.mxu0 0.0
      %2102 = vmatprep.subr.mxu0 0.0
      %2103 = vmatpush1.xpose.msra.mxu0 0.0
      %2104 = vmatprep.subr.mxu0 0.0
      %2105 = vmatpush1.xpose.msra.mxu0 0.0
      %2106 = vmatprep.subr.mxu0 0.0
      %2107 = vmatpush1.xpose.msra.mxu0 0.0
      %2108 = vmatprep.subr.mxu0 0.0
      %2109 = vmatpush1.xpose.msra.mxu0 0.0
      %2110 = vmatprep.subr.mxu0 0.0
      %2111 = vmatpush1.xpose.msra.mxu0 0.0
      %2112 = vmatprep.subr.mxu0 0.0
      %2113 = vmatpush1.xpose.msra.mxu0 0.0
      %2114 = vmatprep.subr.mxu0 0.0
      %2115 = vmatpush1.xpose.msra.mxu0 0.0
      %2116 = vmatprep.subr.mxu0 0.0
      %2117 = vmatpush1.xpose.msra.mxu0 0.0
      %2118 = vmatprep.subr.mxu0 0.0
      %2119 = vmatpush1.xpose.msra.mxu0 0.0
      %2120 = vmatprep.subr.mxu0 0.0
      %2121 = vmatpush1.xpose.msra.mxu0 0.0
      %2122 = vmatprep.subr.mxu0 0.0
      %2123 = vmatpush1.xpose.msra.mxu0 0.0
      %2124 = vmatprep.subr.mxu0 0.0
      %2125 = vmatpush1.xpose.msra.mxu0 0.0
      %2126 = vmatprep.subr.mxu0 0.0
      %2127 = vmatpush1.xpose.msra.mxu0 0.0
      %2128 = vmatprep.subr.mxu0 0.0
      %2129 = vmatpush1.xpose.msra.mxu0 0.0
      %2130 = vmatprep.subr.mxu0 0.0
      %2131 = vmatpush1.xpose.msra.mxu0 0.0
      %2132 = vmatprep.subr.mxu0 0.0
      %2133 = vmatpush1.xpose.msra.mxu0 0.0
      %2134 = vmatprep.subr.mxu0 0.0
      %2135 = vmatpush1.xpose.msra.mxu0 0.0
      %2136 = vmatprep.subr.mxu0 0.0
      %2137 = vmatpush1.xpose.msra.mxu0 0.0
      %2138 = vmatprep.subr.mxu0 0.0
      %2139 = vmatpush1.xpose.msra.mxu0 0.0
      %2140 = vmatprep.subr.mxu0 0.0
      %2141 = vmatpush1.xpose.msra.mxu0 0.0
      %2142 = vmatprep.subr.mxu0 0.0
      %2143 = vmatpush1.xpose.msra.mxu0 0.0
      %2144 = vmatprep.subr.mxu0 0.0
      %2145 = vmatpush1.xpose.msra.mxu0 0.0
      %2146 = vmatprep.subr.mxu0 0.0
      %2147 = vmatpush1.xpose.msra.mxu0 0.0
      %2148 = vmatprep.subr.mxu0 0.0
      %2149 = vmatpush1.xpose.msra.mxu0 0.0
      %2150 = vmatprep.subr.mxu0 0.0
      %2151 = vmatpush1.xpose.msra.mxu0 0.0
      %2152 = vmatprep.subr.mxu0 0.0
      %2153 = vmatpush1.xpose.msra.mxu0 0.0
      %2154 = vmatprep.subr.mxu0 0.0
      %2155 = vmatpush1.xpose.msra.mxu0 0.0
      %2156 = vmatprep.subr.mxu0 0.0
      %2157 = vmatpush1.xpose.msra.mxu0 0.0
      %2158 = vmatprep.mubr.f32.mxu0 0.0
      %2159 = vmatmul.mubr.f32.gmra.mrb[0].mxu0 %v2090
      %v2160 = vpop.f32.mrb[0].mxu0
      %v2161 = vadd.f32 0.0, %v2160
      %v2162 = vpop.f32.mrb[0].mxu0
      %2163 = vdwg.mxu0
      %v2164 = vmul.f32 %v2084, 0.35355338
      %v2165 = vmul.f32 %v2161, 0.35355338
      %v2166 = vadd.f32 %v2164, %v73
      %v2167 = vadd.f32 %v2165, %v77
      %v2168 = vsel %vm176, %v2166, -inf
      %2169 = vmax.xlane.f32.xlu0 %v2168
      %v2170 = vpop.xlane.xlu0 %2169
      %v2171 = vsel %vm176, %v2167, -inf
      %2172 = vmax.xlane.f32.xlu0 %v2171
      %v2173 = vpop.xlane.xlu0 %2172
      %v2174 = vsub.f32 %v2166, %v2170
      %v2175 = vsub.f32 %v2167, %v2173
      %v2176 = vmul.f32 %v2174, 1.442695
      %v2177 = vpow.pop %v2176
      %v2178 = vmul.f32 %v2175, 1.442695
      %v2179 = vpow.pop %v2178
      %v2180 = vsel %vm176, %v2177, 0.0
      %2181 = vadd.xlane.f32.xlu0 %v2180
      %v2182 = vpop.xlane.xlu0 %2181
      %v2183 = vsel %vm176, %v2179, 0.0
      %2184 = vadd.xlane.f32.xlu0 %v2183
      %v2185 = vpop.xlane.xlu0 %2184
      %v2186 = vrcp.pop %v2182
      %v2187 = vrcp.pop %v2185
      %v2188 = vmul.f32 %v2177, %v2186
      %v2189 = vmul.f32 %v2179, %v2187
      %2190 = vrot.lane.b32.xlu0 %v2002, 64
      %v2191 = vpop.permute.xlu0 %2190
      %v2194 = vsel %vm176, %v2188, 0
      %2196 = vmatprep.subr.mxu0 0.0
      %2197 = vmatpush1.msra.mxu0 %v2191
      %2198 = vmatprep.subr.mxu0 0.0
      %2199 = vmatpush1.msra.mxu0 0.0
      %2200 = vmatprep.subr.mxu0 0.0
      %2201 = vmatpush1.msra.mxu0 0.0
      %2202 = vmatprep.subr.mxu0 0.0
      %2203 = vmatpush1.msra.mxu0 0.0
      %2204 = vmatprep.subr.mxu0 0.0
      %2205 = vmatpush1.msra.mxu0 0.0
      %2206 = vmatprep.subr.mxu0 0.0
      %2207 = vmatpush1.msra.mxu0 0.0
      %2208 = vmatprep.subr.mxu0 0.0
      %2209 = vmatpush1.msra.mxu0 0.0
      %2210 = vmatprep.subr.mxu0 0.0
      %2211 = vmatpush1.msra.mxu0 0.0
      %2212 = vmatprep.subr.mxu0 0.0
      %2213 = vmatpush1.msra.mxu0 0.0
      %2214 = vmatprep.subr.mxu0 0.0
      %2215 = vmatpush1.msra.mxu0 0.0
      %2216 = vmatprep.subr.mxu0 0.0
      %2217 = vmatpush1.msra.mxu0 0.0
      %2218 = vmatprep.subr.mxu0 0.0
      %2219 = vmatpush1.msra.mxu0 0.0
      %2220 = vmatprep.subr.mxu0 0.0
      %2221 = vmatpush1.msra.mxu0 0.0
      %2222 = vmatprep.subr.mxu0 0.0
      %2223 = vmatpush1.msra.mxu0 0.0
      %2224 = vmatprep.subr.mxu0 0.0
      %2225 = vmatpush1.msra.mxu0 0.0
      %2226 = vmatprep.subr.mxu0 0.0
      %2227 = vmatpush1.msra.mxu0 0.0
      %2228 = vmatprep.subr.mxu0 0.0
      %2229 = vmatpush1.msra.mxu0 0.0
      %2230 = vmatprep.subr.mxu0 0.0
      %2231 = vmatpush1.msra.mxu0 0.0
      %2232 = vmatprep.subr.mxu0 0.0
      %2233 = vmatpush1.msra.mxu0 0.0
      %2234 = vmatprep.subr.mxu0 0.0
      %2235 = vmatpush1.msra.mxu0 0.0
      %2236 = vmatprep.subr.mxu0 0.0
      %2237 = vmatpush1.msra.mxu0 0.0
      %2238 = vmatprep.subr.mxu0 0.0
      %2239 = vmatpush1.msra.mxu0 0.0
      %2240 = vmatprep.subr.mxu0 0.0
      %2241 = vmatpush1.msra.mxu0 0.0
      %2242 = vmatprep.subr.mxu0 0.0
      %2243 = vmatpush1.msra.mxu0 0.0
      %2244 = vmatprep.subr.mxu0 0.0
      %2245 = vmatpush1.msra.mxu0 0.0
      %2246 = vmatprep.subr.mxu0 0.0
      %2247 = vmatpush1.msra.mxu0 0.0
      %2248 = vmatprep.subr.mxu0 0.0
      %2249 = vmatpush1.msra.mxu0 0.0
      %2250 = vmatprep.subr.mxu0 0.0
      %2251 = vmatpush1.msra.mxu0 0.0
      %2252 = vmatprep.subr.mxu0 0.0
      %2253 = vmatpush1.msra.mxu0 0.0
      %2254 = vmatprep.subr.mxu0 0.0
      %2255 = vmatpush1.msra.mxu0 0.0
      %2256 = vmatprep.subr.mxu0 0.0
      %2257 = vmatpush1.msra.mxu0 0.0
      %2258 = vmatprep.subr.mxu0 0.0
      %2259 = vmatpush1.msra.mxu0 0.0
      %2260 = vmatprep.mubr.f32.mxu0 0.0
      %2261 = vmatmul.mubr.f32.gmra.mrb[0].mxu0 %v2194
      %v2262 = vpop.f32.mrb[0].mxu0
      %v2263 = vadd.f32 0.0, %v2262
      %v2264 = vpop.f32.mrb[0].mxu0
      %2265 = vdwg.mxu0
      %2266 = vrot.lane.b32.xlu0 %v2007, 64
      %v2267 = vpop.permute.xlu0 %2266
      %v2270 = vsel %vm176, %v2189, 0
      %2272 = vmatprep.subr.mxu0 0.0
      %2273 = vmatpush1.msra.mxu0 %v2267
      %2274 = vmatprep.subr.mxu0 0.0
      %2275 = vmatpush1.msra.mxu0 0.0
      %2276 = vmatprep.subr.mxu0 0.0
      %2277 = vmatpush1.msra.mxu0 0.0
      %2278 = vmatprep.subr.mxu0 0.0
      %2279 = vmatpush1.msra.mxu0 0.0
      %2280 = vmatprep.subr.mxu0 0.0
      %2281 = vmatpush1.msra.mxu0 0.0
      %2282 = vmatprep.subr.mxu0 0.0
      %2283 = vmatpush1.msra.mxu0 0.0
      %2284 = vmatprep.subr.mxu0 0.0
      %2285 = vmatpush1.msra.mxu0 0.0
      %2286 = vmatprep.subr.mxu0 0.0
      %2287 = vmatpush1.msra.mxu0 0.0
      %2288 = vmatprep.subr.mxu0 0.0
      %2289 = vmatpush1.msra.mxu0 0.0
      %2290 = vmatprep.subr.mxu0 0.0
      %2291 = vmatpush1.msra.mxu0 0.0
      %2292 = vmatprep.subr.mxu0 0.0
      %2293 = vmatpush1.msra.mxu0 0.0
      %2294 = vmatprep.subr.mxu0 0.0
      %2295 = vmatpush1.msra.mxu0 0.0
      %2296 = vmatprep.subr.mxu0 0.0
      %2297 = vmatpush1.msra.mxu0 0.0
      %2298 = vmatprep.subr.mxu0 0.0
      %2299 = vmatpush1.msra.mxu0 0.0
      %2300 = vmatprep.subr.mxu0 0.0
      %2301 = vmatpush1.msra.mxu0 0.0
      %2302 = vmatprep.subr.mxu0 0.0
      %2303 = vmatpush1.msra.mxu0 0.0
      %2304 = vmatprep.subr.mxu0 0.0
      %2305 = vmatpush1.msra.mxu0 0.0
      %2306 = vmatprep.subr.mxu0 0.0
      %2307 = vmatpush1.msra.mxu0 0.0
      %2308 = vmatprep.subr.mxu0 0.0
      %2309 = vmatpush1.msra.mxu0 0.0
      %2310 = vmatprep.subr.mxu0 0.0
      %2311 = vmatpush1.msra.mxu0 0.0
      %2312 = vmatprep.subr.mxu0 0.0
      %2313 = vmatpush1.msra.mxu0 0.0
      %2314 = vmatprep.subr.mxu0 0.0
      %2315 = vmatpush1.msra.mxu0 0.0
      %2316 = vmatprep.subr.mxu0 0.0
      %2317 = vmatpush1.msra.mxu0 0.0
      %2318 = vmatprep.subr.mxu0 0.0
      %2319 = vmatpush1.msra.mxu0 0.0
      %2320 = vmatprep.subr.mxu0 0.0
      %2321 = vmatpush1.msra.mxu0 0.0
      %2322 = vmatprep.subr.mxu0 0.0
      %2323 = vmatpush1.msra.mxu0 0.0
      %2324 = vmatprep.subr.mxu0 0.0
      %2325 = vmatpush1.msra.mxu0 0.0
      %2326 = vmatprep.subr.mxu0 0.0
      %2327 = vmatpush1.msra.mxu0 0.0
      %2328 = vmatprep.subr.mxu0 0.0
      %2329 = vmatpush1.msra.mxu0 0.0
      %2330 = vmatprep.subr.mxu0 0.0
      %2331 = vmatpush1.msra.mxu0 0.0
      %2332 = vmatprep.subr.mxu0 0.0
      %2333 = vmatpush1.msra.mxu0 0.0
      %2334 = vmatprep.subr.mxu0 0.0
      %2335 = vmatpush1.msra.mxu0 0.0
      %2336 = vmatprep.mubr.f32.mxu0 0.0
      %2337 = vmatmul.mubr.f32.gmra.mrb[0].mxu0 %v2270
      %v2338 = vpop.f32.mrb[0].mxu0
      %v2339 = vadd.f32 0.0, %v2338
      %v2340 = vpop.f32.mrb[0].mxu0
      %2341 = vdwg.mxu0
      %2342 = vrot.lane.b32.xlu0 %v2002, 120
      %v2343 = vpop.permute.xlu0 %2342
      %2344 = vrot.lane.b32.xlu0 %v2002, 88
      %v2345 = vpop.permute.xlu0 %2344
      %v2346 = vsel %vm176, %v2343, 0
      %v2348 = vsel %vm176, %v2345, 0
      %2350 = vmatprep.subr.mxu0 0.0
      %2351 = vmatpush1.xpose.msra.mxu0 %v2348
      %2352 = vmatprep.subr.mxu0 0.0
      %2353 = vmatpush1.xpose.msra.mxu0 0.0
      %2354 = vmatprep.subr.mxu0 0.0
      %2355 = vmatpush1.xpose.msra.mxu0 0.0
      %2356 = vmatprep.subr.mxu0 0.0
      %2357 = vmatpush1.xpose.msra.mxu0 0.0
      %2358 = vmatprep.subr.mxu0 0.0
      %2359 = vmatpush1.xpose.msra.mxu0 0.0
      %2360 = vmatprep.subr.mxu0 0.0
      %2361 = vmatpush1.xpose.msra.mxu0 0.0
      %2362 = vmatprep.subr.mxu0 0.0
      %2363 = vmatpush1.xpose.msra.mxu0 0.0
      %2364 = vmatprep.subr.mxu0 0.0
      %2365 = vmatpush1.xpose.msra.mxu0 0.0
      %2366 = vmatprep.subr.mxu0 0.0
      %2367 = vmatpush1.xpose.msra.mxu0 0.0
      %2368 = vmatprep.subr.mxu0 0.0
      %2369 = vmatpush1.xpose.msra.mxu0 0.0
      %2370 = vmatprep.subr.mxu0 0.0
      %2371 = vmatpush1.xpose.msra.mxu0 0.0
      %2372 = vmatprep.subr.mxu0 0.0
      %2373 = vmatpush1.xpose.msra.mxu0 0.0
      %2374 = vmatprep.subr.mxu0 0.0
      %2375 = vmatpush1.xpose.msra.mxu0 0.0
      %2376 = vmatprep.subr.mxu0 0.0
      %2377 = vmatpush1.xpose.msra.mxu0 0.0
      %2378 = vmatprep.subr.mxu0 0.0
      %2379 = vmatpush1.xpose.msra.mxu0 0.0
      %2380 = vmatprep.subr.mxu0 0.0
      %2381 = vmatpush1.xpose.msra.mxu0 0.0
      %2382 = vmatprep.subr.mxu0 0.0
      %2383 = vmatpush1.xpose.msra.mxu0 0.0
      %2384 = vmatprep.subr.mxu0 0.0
      %2385 = vmatpush1.xpose.msra.mxu0 0.0
      %2386 = vmatprep.subr.mxu0 0.0
      %2387 = vmatpush1.xpose.msra.mxu0 0.0
      %2388 = vmatprep.subr.mxu0 0.0
      %2389 = vmatpush1.xpose.msra.mxu0 0.0
      %2390 = vmatprep.subr.mxu0 0.0
      %2391 = vmatpush1.xpose.msra.mxu0 0.0
      %2392 = vmatprep.subr.mxu0 0.0
      %2393 = vmatpush1.xpose.msra.mxu0 0.0
      %2394 = vmatprep.subr.mxu0 0.0
      %2395 = vmatpush1.xpose.msra.mxu0 0.0
      %2396 = vmatprep.subr.mxu0 0.0
      %2397 = vmatpush1.xpose.msra.mxu0 0.0
      %2398 = vmatprep.subr.mxu0 0.0
      %2399 = vmatpush1.xpose.msra.mxu0 0.0
      %2400 = vmatprep.subr.mxu0 0.0
      %2401 = vmatpush1.xpose.msra.mxu0 0.0
      %2402 = vmatprep.subr.mxu0 0.0
      %2403 = vmatpush1.xpose.msra.mxu0 0.0
      %2404 = vmatprep.subr.mxu0 0.0
      %2405 = vmatpush1.xpose.msra.mxu0 0.0
      %2406 = vmatprep.subr.mxu0 0.0
      %2407 = vmatpush1.xpose.msra.mxu0 0.0
      %2408 = vmatprep.subr.mxu0 0.0
      %2409 = vmatpush1.xpose.msra.mxu0 0.0
      %2410 = vmatprep.subr.mxu0 0.0
      %2411 = vmatpush1.xpose.msra.mxu0 0.0
      %2412 = vmatprep.subr.mxu0 0.0
      %2413 = vmatpush1.xpose.msra.mxu0 0.0
      %2414 = vmatprep.mubr.f32.mxu0 0.0
      %2415 = vmatmul.mubr.f32.gmra.mrb[0].mxu0 %v2346
      %v2416 = vpop.f32.mrb[0].mxu0
      %v2417 = vadd.f32 0.0, %v2416
      %v2418 = vpop.f32.mrb[0].mxu0
      %2419 = vdwg.mxu0
      %2420 = vrot.lane.b32.xlu0 %v2007, 120
      %v2421 = vpop.permute.xlu0 %2420
      %2422 = vrot.lane.b32.xlu0 %v2007, 88
      %v2423 = vpop.permute.xlu0 %2422
      %v2424 = vsel %vm176, %v2421, 0
      %v2426 = vsel %vm176, %v2423, 0
      %2428 = vmatprep.subr.mxu0 0.0
      %2429 = vmatpush1.xpose.msra.mxu0 %v2426
      %2430 = vmatprep.subr.mxu0 0.0
      %2431 = vmatpush1.xpose.msra.mxu0 0.0
      %2432 = vmatprep.subr.mxu0 0.0
      %2433 = vmatpush1.xpose.msra.mxu0 0.0
      %2434 = vmatprep.subr.mxu0 0.0
      %2435 = vmatpush1.xpose.msra.mxu0 0.0
      %2436 = vmatprep.subr.mxu0 0.0
      %2437 = vmatpush1.xpose.msra.mxu0 0.0
      %2438 = vmatprep.subr.mxu0 0.0
      %2439 = vmatpush1.xpose.msra.mxu0 0.0
      %2440 = vmatprep.subr.mxu0 0.0
      %2441 = vmatpush1.xpose.msra.mxu0 0.0
      %2442 = vmatprep.subr.mxu0 0.0
      %2443 = vmatpush1.xpose.msra.mxu0 0.0
      %2444 = vmatprep.subr.mxu0 0.0
      %2445 = vmatpush1.xpose.msra.mxu0 0.0
      %2446 = vmatprep.subr.mxu0 0.0
      %2447 = vmatpush1.xpose.msra.mxu0 0.0
      %2448 = vmatprep.subr.mxu0 0.0
      %2449 = vmatpush1.xpose.msra.mxu0 0.0
      %2450 = vmatprep.subr.mxu0 0.0
      %2451 = vmatpush1.xpose.msra.mxu0 0.0
      %2452 = vmatprep.subr.mxu0 0.0
      %2453 = vmatpush1.xpose.msra.mxu0 0.0
      %2454 = vmatprep.subr.mxu0 0.0
      %2455 = vmatpush1.xpose.msra.mxu0 0.0
      %2456 = vmatprep.subr.mxu0 0.0
      %2457 = vmatpush1.xpose.msra.mxu0 0.0
      %2458 = vmatprep.subr.mxu0 0.0
      %2459 = vmatpush1.xpose.msra.mxu0 0.0
      %2460 = vmatprep.subr.mxu0 0.0
      %2461 = vmatpush1.xpose.msra.mxu0 0.0
      %2462 = vmatprep.subr.mxu0 0.0
      %2463 = vmatpush1.xpose.msra.mxu0 0.0
      %2464 = vmatprep.subr.mxu0 0.0
      %2465 = vmatpush1.xpose.msra.mxu0 0.0
      %2466 = vmatprep.subr.mxu0 0.0
      %2467 = vmatpush1.xpose.msra.mxu0 0.0
      %2468 = vmatprep.subr.mxu0 0.0
      %2469 = vmatpush1.xpose.msra.mxu0 0.0
      %2470 = vmatprep.subr.mxu0 0.0
      %2471 = vmatpush1.xpose.msra.mxu0 0.0
      %2472 = vmatprep.subr.mxu0 0.0
      %2473 = vmatpush1.xpose.msra.mxu0 0.0
      %2474 = vmatprep.subr.mxu0 0.0
      %2475 = vmatpush1.xpose.msra.mxu0 0.0
      %2476 = vmatprep.subr.mxu0 0.0
      %2477 = vmatpush1.xpose.msra.mxu0 0.0
      %2478 = vmatprep.subr.mxu0 0.0
      %2479 = vmatpush1.xpose.msra.mxu0 0.0
      %2480 = vmatprep.subr.mxu0 0.0
      %2481 = vmatpush1.xpose.msra.mxu0 0.0
      %2482 = vmatprep.subr.mxu0 0.0
      %2483 = vmatpush1.xpose.msra.mxu0 0.0
      %2484 = vmatprep.subr.mxu0 0.0
      %2485 = vmatpush1.xpose.msra.mxu0 0.0
      %2486 = vmatprep.subr.mxu0 0.0
      %2487 = vmatpush1.xpose.msra.mxu0 0.0
      %2488 = vmatprep.subr.mxu0 0.0
      %2489 = vmatpush1.xpose.msra.mxu0 0.0
      %2490 = vmatprep.subr.mxu0 0.0
      %2491 = vmatpush1.xpose.msra.mxu0 0.0
      %2492 = vmatprep.mubr.f32.mxu0 0.0
      %2493 = vmatmul.mubr.f32.gmra.mrb[0].mxu0 %v2424
      %v2494 = vpop.f32.mrb[0].mxu0
      %v2495 = vadd.f32 0.0, %v2494
      %v2496 = vpop.f32.mrb[0].mxu0
      %2497 = vdwg.mxu0
      %v2498 = vmul.f32 %v2417, 0.35355338
      %v2499 = vmul.f32 %v2495, 0.35355338
      %v2500 = vadd.f32 %v2498, %v73
      %v2501 = vadd.f32 %v2499, %v77
      %v2502 = vsel %vm176, %v2500, -inf
      %2503 = vmax.xlane.f32.xlu0 %v2502
      %v2504 = vpop.xlane.xlu0 %2503
      %v2505 = vsel %vm176, %v2501, -inf
      %2506 = vmax.xlane.f32.xlu0 %v2505
      %v2507 = vpop.xlane.xlu0 %2506
      %v2508 = vsub.f32 %v2500, %v2504
      %v2509 = vsub.f32 %v2501, %v2507
      %v2510 = vmul.f32 %v2508, 1.442695
      %v2511 = vpow.pop %v2510
      %v2512 = vmul.f32 %v2509, 1.442695
      %v2513 = vpow.pop %v2512
      %v2514 = vsel %vm176, %v2511, 0.0
      %2515 = vadd.xlane.f32.xlu0 %v2514
      %v2516 = vpop.xlane.xlu0 %2515
      %v2517 = vsel %vm176, %v2513, 0.0
      %2518 = vadd.xlane.f32.xlu0 %v2517
      %v2519 = vpop.xlane.xlu0 %2518
      %v2520 = vrcp.pop %v2516
      %v2521 = vrcp.pop %v2519
      %v2522 = vmul.f32 %v2511, %v2520
      %v2523 = vmul.f32 %v2513, %v2521
      %2524 = vrot.lane.b32.xlu0 %v2002, 56
      %v2525 = vpop.permute.xlu0 %2524
      %v2528 = vsel %vm176, %v2522, 0
      %2530 = vmatprep.subr.mxu0 0.0
      %2531 = vmatpush1.msra.mxu0 %v2525
      %2532 = vmatprep.subr.mxu0 0.0
      %2533 = vmatpush1.msra.mxu0 0.0
      %2534 = vmatprep.subr.mxu0 0.0
      %2535 = vmatpush1.msra.mxu0 0.0
      %2536 = vmatprep.subr.mxu0 0.0
      %2537 = vmatpush1.msra.mxu0 0.0
      %2538 = vmatprep.subr.mxu0 0.0
      %2539 = vmatpush1.msra.mxu0 0.0
      %2540 = vmatprep.subr.mxu0 0.0
      %2541 = vmatpush1.msra.mxu0 0.0
      %2542 = vmatprep.subr.mxu0 0.0
      %2543 = vmatpush1.msra.mxu0 0.0
      %2544 = vmatprep.subr.mxu0 0.0
      %2545 = vmatpush1.msra.mxu0 0.0
      %2546 = vmatprep.subr.mxu0 0.0
      %2547 = vmatpush1.msra.mxu0 0.0
      %2548 = vmatprep.subr.mxu0 0.0
      %2549 = vmatpush1.msra.mxu0 0.0
      %2550 = vmatprep.subr.mxu0 0.0
      %2551 = vmatpush1.msra.mxu0 0.0
      %2552 = vmatprep.subr.mxu0 0.0
      %2553 = vmatpush1.msra.mxu0 0.0
      %2554 = vmatprep.subr.mxu0 0.0
      %2555 = vmatpush1.msra.mxu0 0.0
      %2556 = vmatprep.subr.mxu0 0.0
      %2557 = vmatpush1.msra.mxu0 0.0
      %2558 = vmatprep.subr.mxu0 0.0
      %2559 = vmatpush1.msra.mxu0 0.0
      %2560 = vmatprep.subr.mxu0 0.0
      %2561 = vmatpush1.msra.mxu0 0.0
      %2562 = vmatprep.subr.mxu0 0.0
      %2563 = vmatpush1.msra.mxu0 0.0
      %2564 = vmatprep.subr.mxu0 0.0
      %2565 = vmatpush1.msra.mxu0 0.0
      %2566 = vmatprep.subr.mxu0 0.0
      %2567 = vmatpush1.msra.mxu0 0.0
      %2568 = vmatprep.subr.mxu0 0.0
      %2569 = vmatpush1.msra.mxu0 0.0
      %2570 = vmatprep.subr.mxu0 0.0
      %2571 = vmatpush1.msra.mxu0 0.0
      %2572 = vmatprep.subr.mxu0 0.0
      %2573 = vmatpush1.msra.mxu0 0.0
      %2574 = vmatprep.subr.mxu0 0.0
      %2575 = vmatpush1.msra.mxu0 0.0
      %2576 = vmatprep.subr.mxu0 0.0
      %2577 = vmatpush1.msra.mxu0 0.0
      %2578 = vmatprep.subr.mxu0 0.0
      %2579 = vmatpush1.msra.mxu0 0.0
      %2580 = vmatprep.subr.mxu0 0.0
      %2581 = vmatpush1.msra.mxu0 0.0
      %2582 = vmatprep.subr.mxu0 0.0
      %2583 = vmatpush1.msra.mxu0 0.0
      %2584 = vmatprep.subr.mxu0 0.0
      %2585 = vmatpush1.msra.mxu0 0.0
      %2586 = vmatprep.subr.mxu0 0.0
      %2587 = vmatpush1.msra.mxu0 0.0
      %2588 = vmatprep.subr.mxu0 0.0
      %2589 = vmatpush1.msra.mxu0 0.0
      %2590 = vmatprep.subr.mxu0 0.0
      %2591 = vmatpush1.msra.mxu0 0.0
      %2592 = vmatprep.subr.mxu0 0.0
      %2593 = vmatpush1.msra.mxu0 0.0
      %2594 = vmatprep.mubr.f32.mxu0 0.0
      %2595 = vmatmul.mubr.f32.gmra.mrb[0].mxu0 %v2528
      %v2596 = vpop.f32.mrb[0].mxu0
      %v2597 = vadd.f32 0.0, %v2596
      %v2598 = vpop.f32.mrb[0].mxu0
      %2599 = vdwg.mxu0
      %2600 = vrot.lane.b32.xlu0 %v2007, 56
      %v2601 = vpop.permute.xlu0 %2600
      %v2604 = vsel %vm176, %v2523, 0
      %2606 = vmatprep.subr.mxu0 0.0
      %2607 = vmatpush1.msra.mxu0 %v2601
      %2608 = vmatprep.subr.mxu0 0.0
      %2609 = vmatpush1.msra.mxu0 0.0
      %2610 = vmatprep.subr.mxu0 0.0
      %2611 = vmatpush1.msra.mxu0 0.0
      %2612 = vmatprep.subr.mxu0 0.0
      %2613 = vmatpush1.msra.mxu0 0.0
      %2614 = vmatprep.subr.mxu0 0.0
      %2615 = vmatpush1.msra.mxu0 0.0
      %2616 = vmatprep.subr.mxu0 0.0
      %2617 = vmatpush1.msra.mxu0 0.0
      %2618 = vmatprep.subr.mxu0 0.0
      %2619 = vmatpush1.msra.mxu0 0.0
      %2620 = vmatprep.subr.mxu0 0.0
      %2621 = vmatpush1.msra.mxu0 0.0
      %2622 = vmatprep.subr.mxu0 0.0
      %2623 = vmatpush1.msra.mxu0 0.0
      %2624 = vmatprep.subr.mxu0 0.0
      %2625 = vmatpush1.msra.mxu0 0.0
      %2626 = vmatprep.subr.mxu0 0.0
      %2627 = vmatpush1.msra.mxu0 0.0
      %2628 = vmatprep.subr.mxu0 0.0
      %2629 = vmatpush1.msra.mxu0 0.0
      %2630 = vmatprep.subr.mxu0 0.0
      %2631 = vmatpush1.msra.mxu0 0.0
      %2632 = vmatprep.subr.mxu0 0.0
      %2633 = vmatpush1.msra.mxu0 0.0
      %2634 = vmatprep.subr.mxu0 0.0
      %2635 = vmatpush1.msra.mxu0 0.0
      %2636 = vmatprep.subr.mxu0 0.0
      %2637 = vmatpush1.msra.mxu0 0.0
      %2638 = vmatprep.subr.mxu0 0.0
      %2639 = vmatpush1.msra.mxu0 0.0
      %2640 = vmatprep.subr.mxu0 0.0
      %2641 = vmatpush1.msra.mxu0 0.0
      %2642 = vmatprep.subr.mxu0 0.0
      %2643 = vmatpush1.msra.mxu0 0.0
      %2644 = vmatprep.subr.mxu0 0.0
      %2645 = vmatpush1.msra.mxu0 0.0
      %2646 = vmatprep.subr.mxu0 0.0
      %2647 = vmatpush1.msra.mxu0 0.0
      %2648 = vmatprep.subr.mxu0 0.0
      %2649 = vmatpush1.msra.mxu0 0.0
      %2650 = vmatprep.subr.mxu0 0.0
      %2651 = vmatpush1.msra.mxu0 0.0
      %2652 = vmatprep.subr.mxu0 0.0
      %2653 = vmatpush1.msra.mxu0 0.0
      %2654 = vmatprep.subr.mxu0 0.0
      %2655 = vmatpush1.msra.mxu0 0.0
      %2656 = vmatprep.subr.mxu0 0.0
      %2657 = vmatpush1.msra.mxu0 0.0
      %2658 = vmatprep.subr.mxu0 0.0
      %2659 = vmatpush1.msra.mxu0 0.0
      %2660 = vmatprep.subr.mxu0 0.0
      %2661 = vmatpush1.msra.mxu0 0.0
      %2662 = vmatprep.subr.mxu0 0.0
      %2663 = vmatpush1.msra.mxu0 0.0
      %2664 = vmatprep.subr.mxu0 0.0
      %2665 = vmatpush1.msra.mxu0 0.0
      %2666 = vmatprep.subr.mxu0 0.0
      %2667 = vmatpush1.msra.mxu0 0.0
      %2668 = vmatprep.subr.mxu0 0.0
      %2669 = vmatpush1.msra.mxu0 0.0
      %2670 = vmatprep.mubr.f32.mxu0 0.0
      %2671 = vmatmul.mubr.f32.gmra.mrb[0].mxu0 %v2604
      %v2672 = vpop.f32.mrb[0].mxu0
      %v2673 = vadd.f32 0.0, %v2672
      %v2674 = vpop.f32.mrb[0].mxu0
      %2675 = vdwg.mxu0
      %2676 = vrot.lane.b32.xlu0 %v2002, 112
      %v2677 = vpop.permute.xlu0 %2676
      %2678 = vrot.lane.b32.xlu0 %v2002, 80
      %v2679 = vpop.permute.xlu0 %2678
      %v2680 = vsel %vm176, %v2677, 0
      %v2682 = vsel %vm176, %v2679, 0
      %2684 = vmatprep.subr.mxu0 0.0
      %2685 = vmatpush1.xpose.msra.mxu0 %v2682
      %2686 = vmatprep.subr.mxu0 0.0
      %2687 = vmatpush1.xpose.msra.mxu0 0.0
      %2688 = vmatprep.subr.mxu0 0.0
      %2689 = vmatpush1.xpose.msra.mxu0 0.0
      %2690 = vmatprep.subr.mxu0 0.0
      %2691 = vmatpush1.xpose.msra.mxu0 0.0
      %2692 = vmatprep.subr.mxu0 0.0
      %2693 = vmatpush1.xpose.msra.mxu0 0.0
      %2694 = vmatprep.subr.mxu0 0.0
      %2695 = vmatpush1.xpose.msra.mxu0 0.0
      %2696 = vmatprep.subr.mxu0 0.0
      %2697 = vmatpush1.xpose.msra.mxu0 0.0
      %2698 = vmatprep.subr.mxu0 0.0
      %2699 = vmatpush1.xpose.msra.mxu0 0.0
      %2700 = vmatprep.subr.mxu0 0.0
      %2701 = vmatpush1.xpose.msra.mxu0 0.0
      %2702 = vmatprep.subr.mxu0 0.0
      %2703 = vmatpush1.xpose.msra.mxu0 0.0
      %2704 = vmatprep.subr.mxu0 0.0
      %2705 = vmatpush1.xpose.msra.mxu0 0.0
      %2706 = vmatprep.subr.mxu0 0.0
      %2707 = vmatpush1.xpose.msra.mxu0 0.0
      %2708 = vmatprep.subr.mxu0 0.0
      %2709 = vmatpush1.xpose.msra.mxu0 0.0
      %2710 = vmatprep.subr.mxu0 0.0
      %2711 = vmatpush1.xpose.msra.mxu0 0.0
      %2712 = vmatprep.subr.mxu0 0.0
      %2713 = vmatpush1.xpose.msra.mxu0 0.0
      %2714 = vmatprep.subr.mxu0 0.0
      %2715 = vmatpush1.xpose.msra.mxu0 0.0
      %2716 = vmatprep.subr.mxu0 0.0
      %2717 = vmatpush1.xpose.msra.mxu0 0.0
      %2718 = vmatprep.subr.mxu0 0.0
      %2719 = vmatpush1.xpose.msra.mxu0 0.0
      %2720 = vmatprep.subr.mxu0 0.0
      %2721 = vmatpush1.xpose.msra.mxu0 0.0
      %2722 = vmatprep.subr.mxu0 0.0
      %2723 = vmatpush1.xpose.msra.mxu0 0.0
      %2724 = vmatprep.subr.mxu0 0.0
      %2725 = vmatpush1.xpose.msra.mxu0 0.0
      %2726 = vmatprep.subr.mxu0 0.0
      %2727 = vmatpush1.xpose.msra.mxu0 0.0
      %2728 = vmatprep.subr.mxu0 0.0
      %2729 = vmatpush1.xpose.msra.mxu0 0.0
      %2730 = vmatprep.subr.mxu0 0.0
      %2731 = vmatpush1.xpose.msra.mxu0 0.0
      %2732 = vmatprep.subr.mxu0 0.0
      %2733 = vmatpush1.xpose.msra.mxu0 0.0
      %2734 = vmatprep.subr.mxu0 0.0
      %2735 = vmatpush1.xpose.msra.mxu0 0.0
      %2736 = vmatprep.subr.mxu0 0.0
      %2737 = vmatpush1.xpose.msra.mxu0 0.0
      %2738 = vmatprep.subr.mxu0 0.0
      %2739 = vmatpush1.xpose.msra.mxu0 0.0
      %2740 = vmatprep.subr.mxu0 0.0
      %2741 = vmatpush1.xpose.msra.mxu0 0.0
      %2742 = vmatprep.subr.mxu0 0.0
      %2743 = vmatpush1.xpose.msra.mxu0 0.0
      %2744 = vmatprep.subr.mxu0 0.0
      %2745 = vmatpush1.xpose.msra.mxu0 0.0
      %2746 = vmatprep.subr.mxu0 0.0
      %2747 = vmatpush1.xpose.msra.mxu0 0.0
      %2748 = vmatprep.mubr.f32.mxu0 0.0
      %2749 = vmatmul.mubr.f32.gmra.mrb[0].mxu0 %v2680
      %v2750 = vpop.f32.mrb[0].mxu0
      %v2751 = vadd.f32 0.0, %v2750
      %v2752 = vpop.f32.mrb[0].mxu0
      %2753 = vdwg.mxu0
      %2754 = vrot.lane.b32.xlu0 %v2007, 112
      %v2755 = vpop.permute.xlu0 %2754
      %2756 = vrot.lane.b32.xlu0 %v2007, 80
      %v2757 = vpop.permute.xlu0 %2756
      %v2758 = vsel %vm176, %v2755, 0
      %v2760 = vsel %vm176, %v2757, 0
      %2762 = vmatprep.subr.mxu0 0.0
      %2763 = vmatpush1.xpose.msra.mxu0 %v2760
      %2764 = vmatprep.subr.mxu0 0.0
      %2765 = vmatpush1.xpose.msra.mxu0 0.0
      %2766 = vmatprep.subr.mxu0 0.0
      %2767 = vmatpush1.xpose.msra.mxu0 0.0
      %2768 = vmatprep.subr.mxu0 0.0
      %2769 = vmatpush1.xpose.msra.mxu0 0.0
      %2770 = vmatprep.subr.mxu0 0.0
      %2771 = vmatpush1.xpose.msra.mxu0 0.0
      %2772 = vmatprep.subr.mxu0 0.0
      %2773 = vmatpush1.xpose.msra.mxu0 0.0
      %2774 = vmatprep.subr.mxu0 0.0
      %2775 = vmatpush1.xpose.msra.mxu0 0.0
      %2776 = vmatprep.subr.mxu0 0.0
      %2777 = vmatpush1.xpose.msra.mxu0 0.0
      %2778 = vmatprep.subr.mxu0 0.0
      %2779 = vmatpush1.xpose.msra.mxu0 0.0
      %2780 = vmatprep.subr.mxu0 0.0
      %2781 = vmatpush1.xpose.msra.mxu0 0.0
      %2782 = vmatprep.subr.mxu0 0.0
      %2783 = vmatpush1.xpose.msra.mxu0 0.0
      %2784 = vmatprep.subr.mxu0 0.0
      %2785 = vmatpush1.xpose.msra.mxu0 0.0
      %2786 = vmatprep.subr.mxu0 0.0
      %2787 = vmatpush1.xpose.msra.mxu0 0.0
      %2788 = vmatprep.subr.mxu0 0.0
      %2789 = vmatpush1.xpose.msra.mxu0 0.0
      %2790 = vmatprep.subr.mxu0 0.0
      %2791 = vmatpush1.xpose.msra.mxu0 0.0
      %2792 = vmatprep.subr.mxu0 0.0
      %2793 = vmatpush1.xpose.msra.mxu0 0.0
      %2794 = vmatprep.subr.mxu0 0.0
      %2795 = vmatpush1.xpose.msra.mxu0 0.0
      %2796 = vmatprep.subr.mxu0 0.0
      %2797 = vmatpush1.xpose.msra.mxu0 0.0
      %2798 = vmatprep.subr.mxu0 0.0
      %2799 = vmatpush1.xpose.msra.mxu0 0.0
      %2800 = vmatprep.subr.mxu0 0.0
      %2801 = vmatpush1.xpose.msra.mxu0 0.0
      %2802 = vmatprep.subr.mxu0 0.0
      %2803 = vmatpush1.xpose.msra.mxu0 0.0
      %2804 = vmatprep.subr.mxu0 0.0
      %2805 = vmatpush1.xpose.msra.mxu0 0.0
      %2806 = vmatprep.subr.mxu0 0.0
      %2807 = vmatpush1.xpose.msra.mxu0 0.0
      %2808 = vmatprep.subr.mxu0 0.0
      %2809 = vmatpush1.xpose.msra.mxu0 0.0
      %2810 = vmatprep.subr.mxu0 0.0
      %2811 = vmatpush1.xpose.msra.mxu0 0.0
      %2812 = vmatprep.subr.mxu0 0.0
      %2813 = vmatpush1.xpose.msra.mxu0 0.0
      %2814 = vmatprep.subr.mxu0 0.0
      %2815 = vmatpush1.xpose.msra.mxu0 0.0
      %2816 = vmatprep.subr.mxu0 0.0
      %2817 = vmatpush1.xpose.msra.mxu0 0.0
      %2818 = vmatprep.subr.mxu0 0.0
      %2819 = vmatpush1.xpose.msra.mxu0 0.0
      %2820 = vmatprep.subr.mxu0 0.0
      %2821 = vmatpush1.xpose.msra.mxu0 0.0
      %2822 = vmatprep.subr.mxu0 0.0
      %2823 = vmatpush1.xpose.msra.mxu0 0.0
      %2824 = vmatprep.subr.mxu0 0.0
      %2825 = vmatpush1.xpose.msra.mxu0 0.0
      %2826 = vmatprep.mubr.f32.mxu0 0.0
      %2827 = vmatmul.mubr.f32.gmra.mrb[0].mxu0 %v2758
      %v2828 = vpop.f32.mrb[0].mxu0
      %v2829 = vadd.f32 0.0, %v2828
      %v2830 = vpop.f32.mrb[0].mxu0
      %2831 = vdwg.mxu0
      %v2832 = vmul.f32 %v2751, 0.35355338
      %v2833 = vmul.f32 %v2829, 0.35355338
      %v2834 = vadd.f32 %v2832, %v73
      %v2835 = vadd.f32 %v2833, %v77
      %v2836 = vsel %vm176, %v2834, -inf
      %2837 = vmax.xlane.f32.xlu0 %v2836
      %v2838 = vpop.xlane.xlu0 %2837
      %v2839 = vsel %vm176, %v2835, -inf
      %2840 = vmax.xlane.f32.xlu0 %v2839
      %v2841 = vpop.xlane.xlu0 %2840
      %v2842 = vsub.f32 %v2834, %v2838
      %v2843 = vsub.f32 %v2835, %v2841
      %v2844 = vmul.f32 %v2842, 1.442695
      %v2845 = vpow.pop %v2844
      %v2846 = vmul.f32 %v2843, 1.442695
      %v2847 = vpow.pop %v2846
      %v2848 = vsel %vm176, %v2845, 0.0
      %2849 = vadd.xlane.f32.xlu0 %v2848
      %v2850 = vpop.xlane.xlu0 %2849
      %v2851 = vsel %vm176, %v2847, 0.0
      %2852 = vadd.xlane.f32.xlu0 %v2851
      %v2853 = vpop.xlane.xlu0 %2852
      %v2854 = vrcp.pop %v2850
      %v2855 = vrcp.pop %v2853
      %v2856 = vmul.f32 %v2845, %v2854
      %v2857 = vmul.f32 %v2847, %v2855
      %2858 = vrot.lane.b32.xlu0 %v2002, 48
      %v2859 = vpop.permute.xlu0 %2858
      %v2862 = vsel %vm176, %v2856, 0
      %2864 = vmatprep.subr.mxu0 0.0
      %2865 = vmatpush1.msra.mxu0 %v2859
      %2866 = vmatprep.subr.mxu0 0.0
      %2867 = vmatpush1.msra.mxu0 0.0
      %2868 = vmatprep.subr.mxu0 0.0
      %2869 = vmatpush1.msra.mxu0 0.0
      %2870 = vmatprep.subr.mxu0 0.0
      %2871 = vmatpush1.msra.mxu0 0.0
      %2872 = vmatprep.subr.mxu0 0.0
      %2873 = vmatpush1.msra.mxu0 0.0
      %2874 = vmatprep.subr.mxu0 0.0
      %2875 = vmatpush1.msra.mxu0 0.0
      %2876 = vmatprep.subr.mxu0 0.0
      %2877 = vmatpush1.msra.mxu0 0.0
      %2878 = vmatprep.subr.mxu0 0.0
      %2879 = vmatpush1.msra.mxu0 0.0
      %2880 = vmatprep.subr.mxu0 0.0
      %2881 = vmatpush1.msra.mxu0 0.0
      %2882 = vmatprep.subr.mxu0 0.0
      %2883 = vmatpush1.msra.mxu0 0.0
      %2884 = vmatprep.subr.mxu0 0.0
      %2885 = vmatpush1.msra.mxu0 0.0
      %2886 = vmatprep.subr.mxu0 0.0
      %2887 = vmatpush1.msra.mxu0 0.0
      %2888 = vmatprep.subr.mxu0 0.0
      %2889 = vmatpush1.msra.mxu0 0.0
      %2890 = vmatprep.subr.mxu0 0.0
      %2891 = vmatpush1.msra.mxu0 0.0
      %2892 = vmatprep.subr.mxu0 0.0
      %2893 = vmatpush1.msra.mxu0 0.0
      %2894 = vmatprep.subr.mxu0 0.0
      %2895 = vmatpush1.msra.mxu0 0.0
      %2896 = vmatprep.subr.mxu0 0.0
      %2897 = vmatpush1.msra.mxu0 0.0
      %2898 = vmatprep.subr.mxu0 0.0
      %2899 = vmatpush1.msra.mxu0 0.0
      %2900 = vmatprep.subr.mxu0 0.0
      %2901 = vmatpush1.msra.mxu0 0.0
      %2902 = vmatprep.subr.mxu0 0.0
      %2903 = vmatpush1.msra.mxu0 0.0
      %2904 = vmatprep.subr.mxu0 0.0
      %2905 = vmatpush1.msra.mxu0 0.0
      %2906 = vmatprep.subr.mxu0 0.0
      %2907 = vmatpush1.msra.mxu0 0.0
      %2908 = vmatprep.subr.mxu0 0.0
      %2909 = vmatpush1.msra.mxu0 0.0
      %2910 = vmatprep.subr.mxu0 0.0
      %2911 = vmatpush1.msra.mxu0 0.0
      %2912 = vmatprep.subr.mxu0 0.0
      %2913 = vmatpush1.msra.mxu0 0.0
      %2914 = vmatprep.subr.mxu0 0.0
      %2915 = vmatpush1.msra.mxu0 0.0
      %2916 = vmatprep.subr.mxu0 0.0
      %2917 = vmatpush1.msra.mxu0 0.0
      %2918 = vmatprep.subr.mxu0 0.0
      %2919 = vmatpush1.msra.mxu0 0.0
      %2920 = vmatprep.subr.mxu0 0.0
      %2921 = vmatpush1.msra.mxu0 0.0
      %2922 = vmatprep.subr.mxu0 0.0
      %2923 = vmatpush1.msra.mxu0 0.0
      %2924 = vmatprep.subr.mxu0 0.0
      %2925 = vmatpush1.msra.mxu0 0.0
      %2926 = vmatprep.subr.mxu0 0.0
      %2927 = vmatpush1.msra.mxu0 0.0
      %2928 = vmatprep.mubr.f32.mxu0 0.0
      %2929 = vmatmul.mubr.f32.gmra.mrb[0].mxu0 %v2862
      %v2930 = vpop.f32.mrb[0].mxu0
      %v2931 = vadd.f32 0.0, %v2930
      %v2932 = vpop.f32.mrb[0].mxu0
      %2933 = vdwg.mxu0
      %2934 = vrot.lane.b32.xlu0 %v2007, 48
      %v2935 = vpop.permute.xlu0 %2934
      %v2938 = vsel %vm176, %v2857, 0
      %2940 = vmatprep.subr.mxu0 0.0
      %2941 = vmatpush1.msra.mxu0 %v2935
      %2942 = vmatprep.subr.mxu0 0.0
      %2943 = vmatpush1.msra.mxu0 0.0
      %2944 = vmatprep.subr.mxu0 0.0
      %2945 = vmatpush1.msra.mxu0 0.0
      %2946 = vmatprep.subr.mxu0 0.0
      %2947 = vmatpush1.msra.mxu0 0.0
      %2948 = vmatprep.subr.mxu0 0.0
      %2949 = vmatpush1.msra.mxu0 0.0
      %2950 = vmatprep.subr.mxu0 0.0
      %2951 = vmatpush1.msra.mxu0 0.0
      %2952 = vmatprep.subr.mxu0 0.0
      %2953 = vmatpush1.msra.mxu0 0.0
      %2954 = vmatprep.subr.mxu0 0.0
      %2955 = vmatpush1.msra.mxu0 0.0
      %2956 = vmatprep.subr.mxu0 0.0
      %2957 = vmatpush1.msra.mxu0 0.0
      %2958 = vmatprep.subr.mxu0 0.0
      %2959 = vmatpush1.msra.mxu0 0.0
      %2960 = vmatprep.subr.mxu0 0.0
      %2961 = vmatpush1.msra.mxu0 0.0
      %2962 = vmatprep.subr.mxu0 0.0
      %2963 = vmatpush1.msra.mxu0 0.0
      %2964 = vmatprep.subr.mxu0 0.0
      %2965 = vmatpush1.msra.mxu0 0.0
      %2966 = vmatprep.subr.mxu0 0.0
      %2967 = vmatpush1.msra.mxu0 0.0
      %2968 = vmatprep.subr.mxu0 0.0
      %2969 = vmatpush1.msra.mxu0 0.0
      %2970 = vmatprep.subr.mxu0 0.0
      %2971 = vmatpush1.msra.mxu0 0.0
      %2972 = vmatprep.subr.mxu0 0.0
      %2973 = vmatpush1.msra.mxu0 0.0
      %2974 = vmatprep.subr.mxu0 0.0
      %2975 = vmatpush1.msra.mxu0 0.0
      %2976 = vmatprep.subr.mxu0 0.0
      %2977 = vmatpush1.msra.mxu0 0.0
      %2978 = vmatprep.subr.mxu0 0.0
      %2979 = vmatpush1.msra.mxu0 0.0
      %2980 = vmatprep.subr.mxu0 0.0
      %2981 = vmatpush1.msra.mxu0 0.0
      %2982 = vmatprep.subr.mxu0 0.0
      %2983 = vmatpush1.msra.mxu0 0.0
      %2984 = vmatprep.subr.mxu0 0.0
      %2985 = vmatpush1.msra.mxu0 0.0
      %2986 = vmatprep.subr.mxu0 0.0
      %2987 = vmatpush1.msra.mxu0 0.0
      %2988 = vmatprep.subr.mxu0 0.0
      %2989 = vmatpush1.msra.mxu0 0.0
      %2990 = vmatprep.subr.mxu0 0.0
      %2991 = vmatpush1.msra.mxu0 0.0
      %2992 = vmatprep.subr.mxu0 0.0
      %2993 = vmatpush1.msra.mxu0 0.0
      %2994 = vmatprep.subr.mxu0 0.0
      %2995 = vmatpush1.msra.mxu0 0.0
      %2996 = vmatprep.subr.mxu0 0.0
      %2997 = vmatpush1.msra.mxu0 0.0
      %2998 = vmatprep.subr.mxu0 0.0
      %2999 = vmatpush1.msra.mxu0 0.0
      %3000 = vmatprep.subr.mxu0 0.0
      %3001 = vmatpush1.msra.mxu0 0.0
      %3002 = vmatprep.subr.mxu0 0.0
      %3003 = vmatpush1.msra.mxu0 0.0
      %3004 = vmatprep.mubr.f32.mxu0 0.0
      %3005 = vmatmul.mubr.f32.gmra.mrb[0].mxu0 %v2938
      %v3006 = vpop.f32.mrb[0].mxu0
      %v3007 = vadd.f32 0.0, %v3006
      %v3008 = vpop.f32.mrb[0].mxu0
      %3009 = vdwg.mxu0
      %3010 = vrot.lane.b32.xlu0 %v2002, 104
      %v3011 = vpop.permute.xlu0 %3010
      %3012 = vrot.lane.b32.xlu0 %v2002, 72
      %v3013 = vpop.permute.xlu0 %3012
      %v3014 = vsel %vm176, %v3011, 0
      %v3016 = vsel %vm176, %v3013, 0
      %3018 = vmatprep.subr.mxu0 0.0
      %3019 = vmatpush1.xpose.msra.mxu0 %v3016
      %3020 = vmatprep.subr.mxu0 0.0
      %3021 = vmatpush1.xpose.msra.mxu0 0.0
      %3022 = vmatprep.subr.mxu0 0.0
      %3023 = vmatpush1.xpose.msra.mxu0 0.0
      %3024 = vmatprep.subr.mxu0 0.0
      %3025 = vmatpush1.xpose.msra.mxu0 0.0
      %3026 = vmatprep.subr.mxu0 0.0
      %3027 = vmatpush1.xpose.msra.mxu0 0.0
      %3028 = vmatprep.subr.mxu0 0.0
      %3029 = vmatpush1.xpose.msra.mxu0 0.0
      %3030 = vmatprep.subr.mxu0 0.0
      %3031 = vmatpush1.xpose.msra.mxu0 0.0
      %3032 = vmatprep.subr.mxu0 0.0
      %3033 = vmatpush1.xpose.msra.mxu0 0.0
      %3034 = vmatprep.subr.mxu0 0.0
      %3035 = vmatpush1.xpose.msra.mxu0 0.0
      %3036 = vmatprep.subr.mxu0 0.0
      %3037 = vmatpush1.xpose.msra.mxu0 0.0
      %3038 = vmatprep.subr.mxu0 0.0
      %3039 = vmatpush1.xpose.msra.mxu0 0.0
      %3040 = vmatprep.subr.mxu0 0.0
      %3041 = vmatpush1.xpose.msra.mxu0 0.0
      %3042 = vmatprep.subr.mxu0 0.0
      %3043 = vmatpush1.xpose.msra.mxu0 0.0
      %3044 = vmatprep.subr.mxu0 0.0
      %3045 = vmatpush1.xpose.msra.mxu0 0.0
      %3046 = vmatprep.subr.mxu0 0.0
      %3047 = vmatpush1.xpose.msra.mxu0 0.0
      %3048 = vmatprep.subr.mxu0 0.0
      %3049 = vmatpush1.xpose.msra.mxu0 0.0
      %3050 = vmatprep.subr.mxu0 0.0
      %3051 = vmatpush1.xpose.msra.mxu0 0.0
      %3052 = vmatprep.subr.mxu0 0.0
      %3053 = vmatpush1.xpose.msra.mxu0 0.0
      %3054 = vmatprep.subr.mxu0 0.0
      %3055 = vmatpush1.xpose.msra.mxu0 0.0
      %3056 = vmatprep.subr.mxu0 0.0
      %3057 = vmatpush1.xpose.msra.mxu0 0.0
      %3058 = vmatprep.subr.mxu0 0.0
      %3059 = vmatpush1.xpose.msra.mxu0 0.0
      %3060 = vmatprep.subr.mxu0 0.0
      %3061 = vmatpush1.xpose.msra.mxu0 0.0
      %3062 = vmatprep.subr.mxu0 0.0
      %3063 = vmatpush1.xpose.msra.mxu0 0.0
      %3064 = vmatprep.subr.mxu0 0.0
      %3065 = vmatpush1.xpose.msra.mxu0 0.0
      %3066 = vmatprep.subr.mxu0 0.0
      %3067 = vmatpush1.xpose.msra.mxu0 0.0
      %3068 = vmatprep.subr.mxu0 0.0
      %3069 = vmatpush1.xpose.msra.mxu0 0.0
      %3070 = vmatprep.subr.mxu0 0.0
      %3071 = vmatpush1.xpose.msra.mxu0 0.0
      %3072 = vmatprep.subr.mxu0 0.0
      %3073 = vmatpush1.xpose.msra.mxu0 0.0
      %3074 = vmatprep.subr.mxu0 0.0
      %3075 = vmatpush1.xpose.msra.mxu0 0.0
      %3076 = vmatprep.subr.mxu0 0.0
      %3077 = vmatpush1.xpose.msra.mxu0 0.0
      %3078 = vmatprep.subr.mxu0 0.0
      %3079 = vmatpush1.xpose.msra.mxu0 0.0
      %3080 = vmatprep.subr.mxu0 0.0
      %3081 = vmatpush1.xpose.msra.mxu0 0.0
      %3082 = vmatprep.mubr.f32.mxu0 0.0
      %3083 = vmatmul.mubr.f32.gmra.mrb[0].mxu0 %v3014
      %v3084 = vpop.f32.mrb[0].mxu0
      %v3085 = vadd.f32 0.0, %v3084
      %v3086 = vpop.f32.mrb[0].mxu0
      %3087 = vdwg.mxu0
      %3088 = vrot.lane.b32.xlu0 %v2007, 104
      %v3089 = vpop.permute.xlu0 %3088
      %3090 = vrot.lane.b32.xlu0 %v2007, 72
      %v3091 = vpop.permute.xlu0 %3090
      %v3092 = vsel %vm176, %v3089, 0
      %v3094 = vsel %vm176, %v3091, 0
      %3096 = vmatprep.subr.mxu0 0.0
      %3097 = vmatpush1.xpose.msra.mxu0 %v3094
      %3098 = vmatprep.subr.mxu0 0.0
      %3099 = vmatpush1.xpose.msra.mxu0 0.0
      %3100 = vmatprep.subr.mxu0 0.0
      %3101 = vmatpush1.xpose.msra.mxu0 0.0
      %3102 = vmatprep.subr.mxu0 0.0
      %3103 = vmatpush1.xpose.msra.mxu0 0.0
      %3104 = vmatprep.subr.mxu0 0.0
      %3105 = vmatpush1.xpose.msra.mxu0 0.0
      %3106 = vmatprep.subr.mxu0 0.0
      %3107 = vmatpush1.xpose.msra.mxu0 0.0
      %3108 = vmatprep.subr.mxu0 0.0
      %3109 = vmatpush1.xpose.msra.mxu0 0.0
      %3110 = vmatprep.subr.mxu0 0.0
      %3111 = vmatpush1.xpose.msra.mxu0 0.0
      %3112 = vmatprep.subr.mxu0 0.0
      %3113 = vmatpush1.xpose.msra.mxu0 0.0
      %3114 = vmatprep.subr.mxu0 0.0
      %3115 = vmatpush1.xpose.msra.mxu0 0.0
      %3116 = vmatprep.subr.mxu0 0.0
      %3117 = vmatpush1.xpose.msra.mxu0 0.0
      %3118 = vmatprep.subr.mxu0 0.0
      %3119 = vmatpush1.xpose.msra.mxu0 0.0
      %3120 = vmatprep.subr.mxu0 0.0
      %3121 = vmatpush1.xpose.msra.mxu0 0.0
      %3122 = vmatprep.subr.mxu0 0.0
      %3123 = vmatpush1.xpose.msra.mxu0 0.0
      %3124 = vmatprep.subr.mxu0 0.0
      %3125 = vmatpush1.xpose.msra.mxu0 0.0
      %3126 = vmatprep.subr.mxu0 0.0
      %3127 = vmatpush1.xpose.msra.mxu0 0.0
      %3128 = vmatprep.subr.mxu0 0.0
      %3129 = vmatpush1.xpose.msra.mxu0 0.0
      %3130 = vmatprep.subr.mxu0 0.0
      %3131 = vmatpush1.xpose.msra.mxu0 0.0
      %3132 = vmatprep.subr.mxu0 0.0
      %3133 = vmatpush1.xpose.msra.mxu0 0.0
      %3134 = vmatprep.subr.mxu0 0.0
      %3135 = vmatpush1.xpose.msra.mxu0 0.0
      %3136 = vmatprep.subr.mxu0 0.0
      %3137 = vmatpush1.xpose.msra.mxu0 0.0
      %3138 = vmatprep.subr.mxu0 0.0
      %3139 = vmatpush1.xpose.msra.mxu0 0.0
      %3140 = vmatprep.subr.mxu0 0.0
      %3141 = vmatpush1.xpose.msra.mxu0 0.0
      %3142 = vmatprep.subr.mxu0 0.0
      %3143 = vmatpush1.xpose.msra.mxu0 0.0
      %3144 = vmatprep.subr.mxu0 0.0
      %3145 = vmatpush1.xpose.msra.mxu0 0.0
      %3146 = vmatprep.subr.mxu0 0.0
      %3147 = vmatpush1.xpose.msra.mxu0 0.0
      %3148 = vmatprep.subr.mxu0 0.0
      %3149 = vmatpush1.xpose.msra.mxu0 0.0
      %3150 = vmatprep.subr.mxu0 0.0
      %3151 = vmatpush1.xpose.msra.mxu0 0.0
      %3152 = vmatprep.subr.mxu0 0.0
      %3153 = vmatpush1.xpose.msra.mxu0 0.0
      %3154 = vmatprep.subr.mxu0 0.0
      %3155 = vmatpush1.xpose.msra.mxu0 0.0
      %3156 = vmatprep.subr.mxu0 0.0
      %3157 = vmatpush1.xpose.msra.mxu0 0.0
      %3158 = vmatprep.subr.mxu0 0.0
      %3159 = vmatpush1.xpose.msra.mxu0 0.0
      %3160 = vmatprep.mubr.f32.mxu0 0.0
      %3161 = vmatmul.mubr.f32.gmra.mrb[0].mxu0 %v3092
      %v3162 = vpop.f32.mrb[0].mxu0
      %v3163 = vadd.f32 0.0, %v3162
      %v3164 = vpop.f32.mrb[0].mxu0
      %3165 = vdwg.mxu0
      %v3166 = vmul.f32 %v3085, 0.35355338
      %v3167 = vmul.f32 %v3163, 0.35355338
      %v3168 = vadd.f32 %v3166, %v73
      %v3169 = vadd.f32 %v3167, %v77
      %v3170 = vsel %vm176, %v3168, -inf
      %3171 = vmax.xlane.f32.xlu0 %v3170
      %v3172 = vpop.xlane.xlu0 %3171
      %v3173 = vsel %vm176, %v3169, -inf
      %3174 = vmax.xlane.f32.xlu0 %v3173
      %v3175 = vpop.xlane.xlu0 %3174
      %v3176 = vsub.f32 %v3168, %v3172
      %v3177 = vsub.f32 %v3169, %v3175
      %v3178 = vmul.f32 %v3176, 1.442695
      %v3179 = vpow.pop %v3178
      %v3180 = vmul.f32 %v3177, 1.442695
      %v3181 = vpow.pop %v3180
      %v3182 = vsel %vm176, %v3179, 0.0
      %3183 = vadd.xlane.f32.xlu0 %v3182
      %v3184 = vpop.xlane.xlu0 %3183
      %v3185 = vsel %vm176, %v3181, 0.0
      %3186 = vadd.xlane.f32.xlu0 %v3185
      %v3187 = vpop.xlane.xlu0 %3186
      %v3188 = vrcp.pop %v3184
      %v3189 = vrcp.pop %v3187
      %v3190 = vmul.f32 %v3179, %v3188
      %v3191 = vmul.f32 %v3181, %v3189
      %3192 = vrot.lane.b32.xlu0 %v2002, 40
      %v3193 = vpop.permute.xlu0 %3192
      %v3196 = vsel %vm176, %v3190, 0
      %3198 = vmatprep.subr.mxu0 0.0
      %3199 = vmatpush1.msra.mxu0 %v3193
      %3200 = vmatprep.subr.mxu0 0.0
      %3201 = vmatpush1.msra.mxu0 0.0
      %3202 = vmatprep.subr.mxu0 0.0
      %3203 = vmatpush1.msra.mxu0 0.0
      %3204 = vmatprep.subr.mxu0 0.0
      %3205 = vmatpush1.msra.mxu0 0.0
      %3206 = vmatprep.subr.mxu0 0.0
      %3207 = vmatpush1.msra.mxu0 0.0
      %3208 = vmatprep.subr.mxu0 0.0
      %3209 = vmatpush1.msra.mxu0 0.0
      %3210 = vmatprep.subr.mxu0 0.0
      %3211 = vmatpush1.msra.mxu0 0.0
      %3212 = vmatprep.subr.mxu0 0.0
      %3213 = vmatpush1.msra.mxu0 0.0
      %3214 = vmatprep.subr.mxu0 0.0
      %3215 = vmatpush1.msra.mxu0 0.0
      %3216 = vmatprep.subr.mxu0 0.0
      %3217 = vmatpush1.msra.mxu0 0.0
      %3218 = vmatprep.subr.mxu0 0.0
      %3219 = vmatpush1.msra.mxu0 0.0
      %3220 = vmatprep.subr.mxu0 0.0
      %3221 = vmatpush1.msra.mxu0 0.0
      %3222 = vmatprep.subr.mxu0 0.0
      %3223 = vmatpush1.msra.mxu0 0.0
      %3224 = vmatprep.subr.mxu0 0.0
      %3225 = vmatpush1.msra.mxu0 0.0
      %3226 = vmatprep.subr.mxu0 0.0
      %3227 = vmatpush1.msra.mxu0 0.0
      %3228 = vmatprep.subr.mxu0 0.0
      %3229 = vmatpush1.msra.mxu0 0.0
      %3230 = vmatprep.subr.mxu0 0.0
      %3231 = vmatpush1.msra.mxu0 0.0
      %3232 = vmatprep.subr.mxu0 0.0
      %3233 = vmatpush1.msra.mxu0 0.0
      %3234 = vmatprep.subr.mxu0 0.0
      %3235 = vmatpush1.msra.mxu0 0.0
      %3236 = vmatprep.subr.mxu0 0.0
      %3237 = vmatpush1.msra.mxu0 0.0
      %3238 = vmatprep.subr.mxu0 0.0
      %3239 = vmatpush1.msra.mxu0 0.0
      %3240 = vmatprep.subr.mxu0 0.0
      %3241 = vmatpush1.msra.mxu0 0.0
      %3242 = vmatprep.subr.mxu0 0.0
      %3243 = vmatpush1.msra.mxu0 0.0
      %3244 = vmatprep.subr.mxu0 0.0
      %3245 = vmatpush1.msra.mxu0 0.0
      %3246 = vmatprep.subr.mxu0 0.0
      %3247 = vmatpush1.msra.mxu0 0.0
      %3248 = vmatprep.subr.mxu0 0.0
      %3249 = vmatpush1.msra.mxu0 0.0
      %3250 = vmatprep.subr.mxu0 0.0
      %3251 = vmatpush1.msra.mxu0 0.0
      %3252 = vmatprep.subr.mxu0 0.0
      %3253 = vmatpush1.msra.mxu0 0.0
      %3254 = vmatprep.subr.mxu0 0.0
      %3255 = vmatpush1.msra.mxu0 0.0
      %3256 = vmatprep.subr.mxu0 0.0
      %3257 = vmatpush1.msra.mxu0 0.0
      %3258 = vmatprep.subr.mxu0 0.0
      %3259 = vmatpush1.msra.mxu0 0.0
      %3260 = vmatprep.subr.mxu0 0.0
      %3261 = vmatpush1.msra.mxu0 0.0
      %3262 = vmatprep.mubr.f32.mxu0 0.0
      %3263 = vmatmul.mubr.f32.gmra.mrb[0].mxu0 %v3196
      %v3264 = vpop.f32.mrb[0].mxu0
      %v3265 = vadd.f32 0.0, %v3264
      %v3266 = vpop.f32.mrb[0].mxu0
      %3267 = vdwg.mxu0
      %3268 = vrot.lane.b32.xlu0 %v2007, 40
      %v3269 = vpop.permute.xlu0 %3268
      %v3272 = vsel %vm176, %v3191, 0
      %3274 = vmatprep.subr.mxu0 0.0
      %3275 = vmatpush1.msra.mxu0 %v3269
      %3276 = vmatprep.subr.mxu0 0.0
      %3277 = vmatpush1.msra.mxu0 0.0
      %3278 = vmatprep.subr.mxu0 0.0
      %3279 = vmatpush1.msra.mxu0 0.0
      %3280 = vmatprep.subr.mxu0 0.0
      %3281 = vmatpush1.msra.mxu0 0.0
      %3282 = vmatprep.subr.mxu0 0.0
      %3283 = vmatpush1.msra.mxu0 0.0
      %3284 = vmatprep.subr.mxu0 0.0
      %3285 = vmatpush1.msra.mxu0 0.0
      %3286 = vmatprep.subr.mxu0 0.0
      %3287 = vmatpush1.msra.mxu0 0.0
      %3288 = vmatprep.subr.mxu0 0.0
      %3289 = vmatpush1.msra.mxu0 0.0
      %3290 = vmatprep.subr.mxu0 0.0
      %3291 = vmatpush1.msra.mxu0 0.0
      %3292 = vmatprep.subr.mxu0 0.0
      %3293 = vmatpush1.msra.mxu0 0.0
      %3294 = vmatprep.subr.mxu0 0.0
      %3295 = vmatpush1.msra.mxu0 0.0
      %3296 = vmatprep.subr.mxu0 0.0
      %3297 = vmatpush1.msra.mxu0 0.0
      %3298 = vmatprep.subr.mxu0 0.0
      %3299 = vmatpush1.msra.mxu0 0.0
      %3300 = vmatprep.subr.mxu0 0.0
      %3301 = vmatpush1.msra.mxu0 0.0
      %3302 = vmatprep.subr.mxu0 0.0
      %3303 = vmatpush1.msra.mxu0 0.0
      %3304 = vmatprep.subr.mxu0 0.0
      %3305 = vmatpush1.msra.mxu0 0.0
      %3306 = vmatprep.subr.mxu0 0.0
      %3307 = vmatpush1.msra.mxu0 0.0
      %3308 = vmatprep.subr.mxu0 0.0
      %3309 = vmatpush1.msra.mxu0 0.0
      %3310 = vmatprep.subr.mxu0 0.0
      %3311 = vmatpush1.msra.mxu0 0.0
      %3312 = vmatprep.subr.mxu0 0.0
      %3313 = vmatpush1.msra.mxu0 0.0
      %3314 = vmatprep.subr.mxu0 0.0
      %3315 = vmatpush1.msra.mxu0 0.0
      %3316 = vmatprep.subr.mxu0 0.0
      %3317 = vmatpush1.msra.mxu0 0.0
      %3318 = vmatprep.subr.mxu0 0.0
      %3319 = vmatpush1.msra.mxu0 0.0
      %3320 = vmatprep.subr.mxu0 0.0
      %3321 = vmatpush1.msra.mxu0 0.0
      %3322 = vmatprep.subr.mxu0 0.0
      %3323 = vmatpush1.msra.mxu0 0.0
      %3324 = vmatprep.subr.mxu0 0.0
      %3325 = vmatpush1.msra.mxu0 0.0
      %3326 = vmatprep.subr.mxu0 0.0
      %3327 = vmatpush1.msra.mxu0 0.0
      %3328 = vmatprep.subr.mxu0 0.0
      %3329 = vmatpush1.msra.mxu0 0.0
      %3330 = vmatprep.subr.mxu0 0.0
      %3331 = vmatpush1.msra.mxu0 0.0
      %3332 = vmatprep.subr.mxu0 0.0
      %3333 = vmatpush1.msra.mxu0 0.0
      %3334 = vmatprep.subr.mxu0 0.0
      %3335 = vmatpush1.msra.mxu0 0.0
      %3336 = vmatprep.subr.mxu0 0.0
      %3337 = vmatpush1.msra.mxu0 0.0
      %3338 = vmatprep.mubr.f32.mxu0 0.0
      %3339 = vmatmul.mubr.f32.gmra.mrb[0].mxu0 %v3272
      %v3340 = vpop.f32.mrb[0].mxu0
      %v3341 = vadd.f32 0.0, %v3340
      %v3342 = vpop.f32.mrb[0].mxu0
      %3343 = vdwg.mxu0
      %3346 = vrot.lane.b32.xlu0 %v2597, 8
      %v3347 = vpop.permute.xlu0 %3346
      %3348 = vrot.lane.b32.xlu0 %v2673, 8
      %v3349 = vpop.permute.xlu0 %3348
      %3354 = vrot.lane.b32.xlu0 %v2931, 16
      %v3355 = vpop.permute.xlu0 %3354
      %3356 = vrot.lane.b32.xlu0 %v3007, 16
      %v3357 = vpop.permute.xlu0 %3356
      %3362 = vrot.lane.b32.xlu0 %v3265, 24
      %v3363 = vpop.permute.xlu0 %3362
      %3364 = vrot.lane.b32.xlu0 %v3341, 24
      %v3365 = vpop.permute.xlu0 %3364
      %v3368 = vsel %vm176, %v2263, %v3347
      %v3369 = vsel %vm176, %v2339, %v3349
      %v3370 = vsel %vm1534, %v3368, %v3355
      %v3371 = vsel %vm1534, %v3369, %v3357
      %v3372 = vsel %vm1537, %v3370, %v3363
      %v3373 = vsel %vm1537, %v3371, %v3365
      %s3374 = scalar_lea.vmem %s5, 32
      %v3375 = vld [vmem:[%s3374] sm:$0xff]
      %v3376 = vld [vmem:[%s3374 + $0x8] sm:$0xff]
      %v3377 = vld [vmem:[%s3374 + $0x10] sm:$0xff]
      %v3378 = vld [vmem:[%s3374 + $0x18] sm:$0xff]
      %s3379 = scalar_lea.vmem %s6, 1
      %v3380 = vld [vmem:[%s3379] sm:$0x1]
      %v3382 = vlaneseq
      %v3383 = vshrl.u32 %v3382, 7
      %v3384 = vsub.s32 0, %v3383
      %v3385 = vrot.slane %v3380, %v3384
      %v3388 = vsel %vm91, %v3372, 0
      %v3391 = vsel %vm91, %v3373, 0
      %3393 = vmatprep.subr.mxu0 0.0
      %3394 = vmatpush1.msra.mxu0 %v3375
      %3395 = vmatprep.subr.mxu0 0.0
      %3396 = vmatpush1.msra.mxu0 %v3376
      %3397 = vmatprep.subr.mxu0 0.0
      %3398 = vmatpush1.msra.mxu0 %v3377
      %3399 = vmatprep.subr.mxu0 0.0
      %3400 = vmatpush1.msra.mxu0 %v3378
      %3401 = vmatprep.subr.mxu0 0.0
      %3402 = vmatpush1.msra.mxu0 0.0
      %3403 = vmatprep.subr.mxu0 0.0
      %3404 = vmatpush1.msra.mxu0 0.0
      %3405 = vmatprep.subr.mxu0 0.0
      %3406 = vmatpush1.msra.mxu0 0.0
      %3407 = vmatprep.subr.mxu0 0.0
      %3408 = vmatpush1.msra.mxu0 0.0
      %3409 = vmatprep.subr.mxu0 0.0
      %3410 = vmatpush1.msra.mxu0 0.0
      %3411 = vmatprep.subr.mxu0 0.0
      %3412 = vmatpush1.msra.mxu0 0.0
      %3413 = vmatprep.subr.mxu0 0.0
      %3414 = vmatpush1.msra.mxu0 0.0
      %3415 = vmatprep.subr.mxu0 0.0
      %3416 = vmatpush1.msra.mxu0 0.0
      %3417 = vmatprep.subr.mxu0 0.0
      %3418 = vmatpush1.msra.mxu0 0.0
      %3419 = vmatprep.subr.mxu0 0.0
      %3420 = vmatpush1.msra.mxu0 0.0
      %3421 = vmatprep.subr.mxu0 0.0
      %3422 = vmatpush1.msra.mxu0 0.0
      %3423 = vmatprep.subr.mxu0 0.0
      %3424 = vmatpush1.msra.mxu0 0.0
      %3425 = vmatprep.subr.mxu0 0.0
      %3426 = vmatpush1.msra.mxu0 0.0
      %3427 = vmatprep.subr.mxu0 0.0
      %3428 = vmatpush1.msra.mxu0 0.0
      %3429 = vmatprep.subr.mxu0 0.0
      %3430 = vmatpush1.msra.mxu0 0.0
      %3431 = vmatprep.subr.mxu0 0.0
      %3432 = vmatpush1.msra.mxu0 0.0
      %3433 = vmatprep.subr.mxu0 0.0
      %3434 = vmatpush1.msra.mxu0 0.0
      %3435 = vmatprep.subr.mxu0 0.0
      %3436 = vmatpush1.msra.mxu0 0.0
      %3437 = vmatprep.subr.mxu0 0.0
      %3438 = vmatpush1.msra.mxu0 0.0
      %3439 = vmatprep.subr.mxu0 0.0
      %3440 = vmatpush1.msra.mxu0 0.0
      %3441 = vmatprep.subr.mxu0 0.0
      %3442 = vmatpush1.msra.mxu0 0.0
      %3443 = vmatprep.subr.mxu0 0.0
      %3444 = vmatpush1.msra.mxu0 0.0
      %3445 = vmatprep.subr.mxu0 0.0
      %3446 = vmatpush1.msra.mxu0 0.0
      %3447 = vmatprep.subr.mxu0 0.0
      %3448 = vmatpush1.msra.mxu0 0.0
      %3449 = vmatprep.subr.mxu0 0.0
      %3450 = vmatpush1.msra.mxu0 0.0
      %3451 = vmatprep.subr.mxu0 0.0
      %3452 = vmatpush1.msra.mxu0 0.0
      %3453 = vmatprep.subr.mxu0 0.0
      %3454 = vmatpush1.msra.mxu0 0.0
      %3455 = vmatprep.subr.mxu0 0.0
      %3456 = vmatpush1.msra.mxu0 0.0
      %3457 = vmatprep.mubr.f32.mxu0 0.0
      %3458 = vmatmul.mubr.f32.gmra.mrb[0].mxu0 %v3388
      %v3459 = vpop.f32.mrb[0].mxu0
      %v3460 = vadd.f32 %v3385, %v3459
      %v3461 = vpop.f32.mrb[0].mxu0
      %3462 = vmatprep.mubr.f32.mxu0 0.0
      %3463 = vmatmul.mubr.f32.gmra.mrb[0].mxu0 %v3391
      %v3464 = vpop.f32.mrb[0].mxu0
      %v3465 = vadd.f32 %v3385, %v3464
      %v3466 = vpop.f32.mrb[0].mxu0
      %3467 = vdwg.mxu0
      %v3468 = vadd.f32 %v1914, %v3460
      %v3469 = vadd.f32 %v1915, %v3465
      %s3470 = scalar_lea.vmem %s7, 1
      %v3471 = vld [vmem:[%s3470] sm:$0x1]
      %s3472 = scalar_lea.vmem %s8, 1
      %v3473 = vld [vmem:[%s3472] sm:$0x1]
      %v3474 = vsel %vm91, %v3468, 0.0
      %3475 = vadd.xlane.f32.xlu0 %v3474
      %v3476 = vpop.xlane.xlu0 %3475
      %v3477 = vsel %vm91, %v3469, 0.0
      %3478 = vadd.xlane.f32.xlu0 %v3477
      %v3479 = vpop.xlane.xlu0 %3478
      %v3480 = vmul.f32 %v3476, %v1642
      %v3481 = vmul.f32 %v3479, %v1642
      %v3482 = vsub.f32 %v3468, %v3480
      %v3483 = vsub.f32 %v3469, %v3481
      %v3484 = vmul.f32 %v3482, %v3482
      %v3485 = vmul.f32 %v3483, %v3483
      %v3486 = vsel %vm91, %v3484, 0.0
      %3487 = vadd.xlane.f32.xlu0 %v3486
      %v3488 = vpop.xlane.xlu0 %3487
      %v3489 = vsel %vm91, %v3485, 0.0
      %3490 = vadd.xlane.f32.xlu0 %v3489
      %v3491 = vpop.xlane.xlu0 %3490
      %v3492 = vmul.f32 %v3488, %v1642
      %v3493 = vmul.f32 %v3491, %v1642
      %v3494 = vadd.f32 %v3492, 1e-05
      %v3495 = vadd.f32 %v3493, 1e-05
      %v3496 = vrsqrt.pop %v3494
      %v3497 = vrsqrt.pop %v3495
      %v3498 = vmul.f32 %v3482, %v3496
      %v3499 = vmul.f32 %v3483, %v3497
      %v3501 = vlaneseq
      %v3502 = vshrl.u32 %v3501, 7
      %v3503 = vsub.s32 0, %v3502
      %v3504 = vrot.slane %v3471, %v3503
      %v3506 = vmul.f32 %v3498, %v3504
      %v3507 = vmul.f32 %v3499, %v3504
      %v3509 = vlaneseq
      %v3510 = vshrl.u32 %v3509, 7
      %v3511 = vsub.s32 0, %v3510
      %v3512 = vrot.slane %v3473, %v3511
      %v3514 = vadd.f32 %v3506, %v3512
      %v3515 = vadd.f32 %v3507, %v3512
      %s3516 = scalar_lea.vmem %s9, 32
      %v3517 = vld [vmem:[%s3516] sm:$0xff]
      %v3518 = vld [vmem:[%s3516 + $0x8] sm:$0xff]
      %v3519 = vld [vmem:[%s3516 + $0x10] sm:$0xff]
      %v3520 = vld [vmem:[%s3516 + $0x18] sm:$0xff]
      %s3521 = scalar_lea.vmem %s10, 1
      %v3522 = vld [vmem:[%s3521] sm:$0x1]
      %v3524 = vlaneseq
      %v3525 = vshrl.u32 %v3524, 7
      %v3526 = vsub.s32 0, %v3525
      %v3527 = vrot.slane %v3522, %v3526
      %v3530 = vsel %vm91, %v3514, 0
      %v3533 = vsel %vm91, %v3515, 0
      %3535 = vmatprep.subr.mxu0 0.0
      %3536 = vmatpush1.msra.mxu0 %v3517
      %3537 = vmatprep.subr.mxu0 0.0
      %3538 = vmatpush1.msra.mxu0 %v3518
      %3539 = vmatprep.subr.mxu0 0.0
      %3540 = vmatpush1.msra.mxu0 %v3519
      %3541 = vmatprep.subr.mxu0 0.0
      %3542 = vmatpush1.msra.mxu0 %v3520
      %3543 = vmatprep.subr.mxu0 0.0
      %3544 = vmatpush1.msra.mxu0 0.0
      %3545 = vmatprep.subr.mxu0 0.0
      %3546 = vmatpush1.msra.mxu0 0.0
      %3547 = vmatprep.subr.mxu0 0.0
      %3548 = vmatpush1.msra.mxu0 0.0
      %3549 = vmatprep.subr.mxu0 0.0
      %3550 = vmatpush1.msra.mxu0 0.0
      %3551 = vmatprep.subr.mxu0 0.0
      %3552 = vmatpush1.msra.mxu0 0.0
      %3553 = vmatprep.subr.mxu0 0.0
      %3554 = vmatpush1.msra.mxu0 0.0
      %3555 = vmatprep.subr.mxu0 0.0
      %3556 = vmatpush1.msra.mxu0 0.0
      %3557 = vmatprep.subr.mxu0 0.0
      %3558 = vmatpush1.msra.mxu0 0.0
      %3559 = vmatprep.subr.mxu0 0.0
      %3560 = vmatpush1.msra.mxu0 0.0
      %3561 = vmatprep.subr.mxu0 0.0
      %3562 = vmatpush1.msra.mxu0 0.0
      %3563 = vmatprep.subr.mxu0 0.0
      %3564 = vmatpush1.msra.mxu0 0.0
      %3565 = vmatprep.subr.mxu0 0.0
      %3566 = vmatpush1.msra.mxu0 0.0
      %3567 = vmatprep.subr.mxu0 0.0
      %3568 = vmatpush1.msra.mxu0 0.0
      %3569 = vmatprep.subr.mxu0 0.0
      %3570 = vmatpush1.msra.mxu0 0.0
      %3571 = vmatprep.subr.mxu0 0.0
      %3572 = vmatpush1.msra.mxu0 0.0
      %3573 = vmatprep.subr.mxu0 0.0
      %3574 = vmatpush1.msra.mxu0 0.0
      %3575 = vmatprep.subr.mxu0 0.0
      %3576 = vmatpush1.msra.mxu0 0.0
      %3577 = vmatprep.subr.mxu0 0.0
      %3578 = vmatpush1.msra.mxu0 0.0
      %3579 = vmatprep.subr.mxu0 0.0
      %3580 = vmatpush1.msra.mxu0 0.0
      %3581 = vmatprep.subr.mxu0 0.0
      %3582 = vmatpush1.msra.mxu0 0.0
      %3583 = vmatprep.subr.mxu0 0.0
      %3584 = vmatpush1.msra.mxu0 0.0
      %3585 = vmatprep.subr.mxu0 0.0
      %3586 = vmatpush1.msra.mxu0 0.0
      %3587 = vmatprep.subr.mxu0 0.0
      %3588 = vmatpush1.msra.mxu0 0.0
      %3589 = vmatprep.subr.mxu0 0.0
      %3590 = vmatpush1.msra.mxu0 0.0
      %3591 = vmatprep.subr.mxu0 0.0
      %3592 = vmatpush1.msra.mxu0 0.0
      %3593 = vmatprep.subr.mxu0 0.0
      %3594 = vmatpush1.msra.mxu0 0.0
      %3595 = vmatprep.subr.mxu0 0.0
      %3596 = vmatpush1.msra.mxu0 0.0
      %3597 = vmatprep.subr.mxu0 0.0
      %3598 = vmatpush1.msra.mxu0 0.0
      %3599 = vmatprep.mubr.f32.mxu0 0.0
      %3600 = vmatmul.mubr.f32.gmra.mrb[0].mxu0 %v3530
      %v3601 = vpop.f32.mrb[0].mxu0
      %v3602 = vadd.f32 %v3527, %v3601
      %v3603 = vpop.f32.mrb[0].mxu0
      %3604 = vmatprep.mubr.f32.mxu0 0.0
      %3605 = vmatmul.mubr.f32.gmra.mrb[0].mxu0 %v3533
      %v3606 = vpop.f32.mrb[0].mxu0
      %v3607 = vadd.f32 %v3527, %v3606
      %v3608 = vpop.f32.mrb[0].mxu0
      %3609 = vdwg.mxu0
      %v3610 = vmax.f32 %v3602, 0.0
      %v3611 = vmax.f32 %v3607, 0.0
      %s3612 = scalar_lea.vmem %s11, 64
      %v3613 = vld [vmem:[%s3612] sm:$0xff]
      %v3614 = vld [vmem:[%s3612 + $0x8] sm:$0xff]
      %v3615 = vld [vmem:[%s3612 + $0x10] sm:$0xff]
      %v3616 = vld [vmem:[%s3612 + $0x18] sm:$0xff]
      %v3617 = vld [vmem:[%s3612 + $0x20] sm:$0xff]
      %v3618 = vld [vmem:[%s3612 + $0x28] sm:$0xff]
      %v3619 = vld [vmem:[%s3612 + $0x30] sm:$0xff]
      %v3620 = vld [vmem:[%s3612 + $0x38] sm:$0xff]
      %s3621 = scalar_lea.vmem %s12, 1
      %v3622 = vld [vmem:[%s3621] sm:$0x1]
      %v3624 = vlaneseq
      %v3625 = vshrl.u32 %v3624, 7
      %v3626 = vsub.s32 0, %v3625
      %v3627 = vrot.slane %v3622, %v3626
      %v3630 = vsel %vm1788, %v3610, 0
      %v3633 = vsel %vm1788, %v3611, 0
      %3635 = vmatprep.subr.mxu0 0.0
      %3636 = vmatpush1.msra.mxu0 %v3613
      %3637 = vmatprep.subr.mxu0 0.0
      %3638 = vmatpush1.msra.mxu0 %v3614
      %3639 = vmatprep.subr.mxu0 0.0
      %3640 = vmatpush1.msra.mxu0 %v3615
      %3641 = vmatprep.subr.mxu0 0.0
      %3642 = vmatpush1.msra.mxu0 %v3616
      %3643 = vmatprep.subr.mxu0 0.0
      %3644 = vmatpush1.msra.mxu0 %v3617
      %3645 = vmatprep.subr.mxu0 0.0
      %3646 = vmatpush1.msra.mxu0 %v3618
      %3647 = vmatprep.subr.mxu0 0.0
      %3648 = vmatpush1.msra.mxu0 %v3619
      %3649 = vmatprep.subr.mxu0 0.0
      %3650 = vmatpush1.msra.mxu0 %v3620
      %3651 = vmatprep.subr.mxu0 0.0
      %3652 = vmatpush1.msra.mxu0 0.0
      %3653 = vmatprep.subr.mxu0 0.0
      %3654 = vmatpush1.msra.mxu0 0.0
      %3655 = vmatprep.subr.mxu0 0.0
      %3656 = vmatpush1.msra.mxu0 0.0
      %3657 = vmatprep.subr.mxu0 0.0
      %3658 = vmatpush1.msra.mxu0 0.0
      %3659 = vmatprep.subr.mxu0 0.0
      %3660 = vmatpush1.msra.mxu0 0.0
      %3661 = vmatprep.subr.mxu0 0.0
      %3662 = vmatpush1.msra.mxu0 0.0
      %3663 = vmatprep.subr.mxu0 0.0
      %3664 = vmatpush1.msra.mxu0 0.0
      %3665 = vmatprep.subr.mxu0 0.0
      %3666 = vmatpush1.msra.mxu0 0.0
      %3667 = vmatprep.subr.mxu0 0.0
      %3668 = vmatpush1.msra.mxu0 0.0
      %3669 = vmatprep.subr.mxu0 0.0
      %3670 = vmatpush1.msra.mxu0 0.0
      %3671 = vmatprep.subr.mxu0 0.0
      %3672 = vmatpush1.msra.mxu0 0.0
      %3673 = vmatprep.subr.mxu0 0.0
      %3674 = vmatpush1.msra.mxu0 0.0
      %3675 = vmatprep.subr.mxu0 0.0
      %3676 = vmatpush1.msra.mxu0 0.0
      %3677 = vmatprep.subr.mxu0 0.0
      %3678 = vmatpush1.msra.mxu0 0.0
      %3679 = vmatprep.subr.mxu0 0.0
      %3680 = vmatpush1.msra.mxu0 0.0
      %3681 = vmatprep.subr.mxu0 0.0
      %3682 = vmatpush1.msra.mxu0 0.0
      %3683 = vmatprep.subr.mxu0 0.0
      %3684 = vmatpush1.msra.mxu0 0.0
      %3685 = vmatprep.subr.mxu0 0.0
      %3686 = vmatpush1.msra.mxu0 0.0
      %3687 = vmatprep.subr.mxu0 0.0
      %3688 = vmatpush1.msra.mxu0 0.0
      %3689 = vmatprep.subr.mxu0 0.0
      %3690 = vmatpush1.msra.mxu0 0.0
      %3691 = vmatprep.subr.mxu0 0.0
      %3692 = vmatpush1.msra.mxu0 0.0
      %3693 = vmatprep.subr.mxu0 0.0
      %3694 = vmatpush1.msra.mxu0 0.0
      %3695 = vmatprep.subr.mxu0 0.0
      %3696 = vmatpush1.msra.mxu0 0.0
      %3697 = vmatprep.subr.mxu0 0.0
      %3698 = vmatpush1.msra.mxu0 0.0
      %3699 = vmatprep.mubr.f32.mxu0 0.0
      %3700 = vmatmul.mubr.f32.gmra.mrb[0].mxu0 %v3630
      %v3701 = vpop.f32.mrb[0].mxu0
      %v3702 = vadd.f32 %v3627, %v3701
      %v3703 = vpop.f32.mrb[0].mxu0
      %3704 = vmatprep.mubr.f32.mxu0 0.0
      %3705 = vmatmul.mubr.f32.gmra.mrb[0].mxu0 %v3633
      %v3706 = vpop.f32.mrb[0].mxu0
      %v3707 = vadd.f32 %v3627, %v3706
      %v3708 = vpop.f32.mrb[0].mxu0
      %3709 = vdwg.mxu0
      %v3710 = vadd.f32 %v3514, %v3702
      %v3711 = vadd.f32 %v3515, %v3707
      %s3712 = scalar_lea.vmem %s13, 1
      %v3713 = vld [vmem:[%s3712] sm:$0x1]
      %s3714 = scalar_lea.vmem %s14, 1
      %v3715 = vld [vmem:[%s3714] sm:$0x1]
      %v3716 = vsel %vm91, %v3710, 0.0
      %3717 = vadd.xlane.f32.xlu0 %v3716
      %v3718 = vpop.xlane.xlu0 %3717
      %v3719 = vsel %vm91, %v3711, 0.0
      %3720 = vadd.xlane.f32.xlu0 %v3719
      %v3721 = vpop.xlane.xlu0 %3720
      %v3722 = vmul.f32 %v3718, %v1642
      %v3723 = vmul.f32 %v3721, %v1642
      %v3724 = vsub.f32 %v3710, %v3722
      %v3725 = vsub.f32 %v3711, %v3723
      %v3726 = vmul.f32 %v3724, %v3724
      %v3727 = vmul.f32 %v3725, %v3725
      %v3728 = vsel %vm91, %v3726, 0.0
      %3729 = vadd.xlane.f32.xlu0 %v3728
      %v3730 = vpop.xlane.xlu0 %3729
      %v3731 = vsel %vm91, %v3727, 0.0
      %3732 = vadd.xlane.f32.xlu0 %v3731
      %v3733 = vpop.xlane.xlu0 %3732
      %v3734 = vmul.f32 %v3730, %v1642
      %v3735 = vmul.f32 %v3733, %v1642
      %v3736 = vadd.f32 %v3734, 1e-05
      %v3737 = vadd.f32 %v3735, 1e-05
      %v3738 = vrsqrt.pop %v3736
      %v3739 = vrsqrt.pop %v3737
      %v3740 = vmul.f32 %v3724, %v3738
      %v3741 = vmul.f32 %v3725, %v3739
      %v3743 = vlaneseq
      %v3744 = vshrl.u32 %v3743, 7
      %v3745 = vsub.s32 0, %v3744
      %v3746 = vrot.slane %v3713, %v3745
      %v3748 = vmul.f32 %v3740, %v3746
      %v3749 = vmul.f32 %v3741, %v3746
      %v3751 = vlaneseq
      %v3752 = vshrl.u32 %v3751, 7
      %v3753 = vsub.s32 0, %v3752
      %v3754 = vrot.slane %v3715, %v3753
      %v3756 = vadd.f32 %v3748, %v3754
      %v3757 = vadd.f32 %v3749, %v3754
      %v3758 = vld [vmem:[%s2] sm:$0xff]
      %v3759 = vld [vmem:[%s2 + $0x8] sm:$0xff]
      %vm3760 = vcmask 7168
      %v3761 = vsel %vm3760, %v3758, 0.0
      %v3762 = vrot.slane %v3761, 4
      %v3763 = vadd.f32 %v3761, %v3762
      %v3764 = vrot.slane %v3763, 2
      %v3765 = vadd.f32 %v3763, %v3764
      %v3766 = vrot.slane %v3765, 1
      %v3767 = vadd.f32 %v3765, %v3766
      %v3768 = vsel %vm3760, %v3759, 0.0
      %v3769 = vrot.slane %v3768, 4
      %v3770 = vadd.f32 %v3768, %v3769
      %v3771 = vrot.slane %v3770, 2
      %v3772 = vadd.f32 %v3770, %v3771
      %v3773 = vrot.slane %v3772, 1
      %v3774 = vadd.f32 %v3772, %v3773
      %v3775 = vmax.f32 %v3767, 1.0
      %v3776 = vmax.f32 %v3774, 1.0
      %3778 = vset.pattern.permute.xlu0 0
      %3779 = vperm.xlu0 %3778, %v3758
      %v3780 = vpop.permute.xlu0 %3779
      %3783 = vset.pattern.permute.xlu0 0
      %3784 = vperm.xlu0 %3783, %v3759
      %v3785 = vpop.permute.xlu0 %3784
      %v3787 = vmul.f32 %v3780, %v3756
      %v3788 = vmul.f32 %v3785, %v3757
      %v3789 = vsel %vm91, %v3787, 0.0
      %v3790 = vrot.slane %v3789, 4
      %v3791 = vadd.f32 %v3789, %v3790
      %v3792 = vrot.slane %v3791, 2
      %v3793 = vadd.f32 %v3791, %v3792
      %v3794 = vrot.slane %v3793, 1
      %v3795 = vadd.f32 %v3793, %v3794
      %v3796 = vsel %vm91, %v3788, 0.0
      %v3797 = vrot.slane %v3796, 4
      %v3798 = vadd.f32 %v3796, %v3797
      %v3799 = vrot.slane %v3798, 2
      %v3800 = vadd.f32 %v3798, %v3799
      %v3801 = vrot.slane %v3800, 1
      %v3802 = vadd.f32 %v3800, %v3801
      %v3803 = vrcp.pop %v3775
      %v3804 = vrcp.pop %v3776
      %3806 = vset.pattern.permute.xlu0 0
      %3807 = vperm.xlu0 %3806, %v3803
      %v3808 = vpop.permute.xlu0 %3807
      %3811 = vset.pattern.permute.xlu0 0
      %3812 = vperm.xlu0 %3811, %v3804
      %v3813 = vpop.permute.xlu0 %3812
      %v3815 = vmul.f32 %v3795, %v3808
      %v3816 = vmul.f32 %v3802, %v3813
      %v3817 = vld [vmem:[%s15] sm:$0xff]
      %v3818 = vld [vmem:[%s15 + $0x8] sm:$0xff]
      %v3819 = vld [vmem:[%s15 + $0x10] sm:$0xff]
      %v3820 = vld [vmem:[%s15 + $0x18] sm:$0xff]
      %v3821 = vld [vmem:[%s16] sm:$0x1]
      %v3823 = vlaneseq
      %v3824 = vshrl.u32 %v3823, 7
      %v3825 = vsub.s32 0, %v3824
      %v3826 = vrot.slane %v3821, %v3825
      %vm3830 = vcmask 1041409
      %v3831 = vsel %vm3830, %v3816, %v3815
      %v3832 = vsel %vm91, %v3831, 0
      %3834 = vmatprep.subr.mxu0 0.0
      %3835 = vmatpush1.msra.mxu0 %v3817
      %3836 = vmatprep.subr.mxu0 0.0
      %3837 = vmatpush1.msra.mxu0 %v3818
      %3838 = vmatprep.subr.mxu0 0.0
      %3839 = vmatpush1.msra.mxu0 %v3819
      %3840 = vmatprep.subr.mxu0 0.0
      %3841 = vmatpush1.msra.mxu0 %v3820
      %3842 = vmatprep.subr.mxu0 0.0
      %3843 = vmatpush1.msra.mxu0 0.0
      %3844 = vmatprep.subr.mxu0 0.0
      %3845 = vmatpush1.msra.mxu0 0.0
      %3846 = vmatprep.subr.mxu0 0.0
      %3847 = vmatpush1.msra.mxu0 0.0
      %3848 = vmatprep.subr.mxu0 0.0
      %3849 = vmatpush1.msra.mxu0 0.0
      %3850 = vmatprep.subr.mxu0 0.0
      %3851 = vmatpush1.msra.mxu0 0.0
      %3852 = vmatprep.subr.mxu0 0.0
      %3853 = vmatpush1.msra.mxu0 0.0
      %3854 = vmatprep.subr.mxu0 0.0
      %3855 = vmatpush1.msra.mxu0 0.0
      %3856 = vmatprep.subr.mxu0 0.0
      %3857 = vmatpush1.msra.mxu0 0.0
      %3858 = vmatprep.subr.mxu0 0.0
      %3859 = vmatpush1.msra.mxu0 0.0
      %3860 = vmatprep.subr.mxu0 0.0
      %3861 = vmatpush1.msra.mxu0 0.0
      %3862 = vmatprep.subr.mxu0 0.0
      %3863 = vmatpush1.msra.mxu0 0.0
      %3864 = vmatprep.subr.mxu0 0.0
      %3865 = vmatpush1.msra.mxu0 0.0
      %3866 = vmatprep.subr.mxu0 0.0
      %3867 = vmatpush1.msra.mxu0 0.0
      %3868 = vmatprep.subr.mxu0 0.0
      %3869 = vmatpush1.msra.mxu0 0.0
      %3870 = vmatprep.subr.mxu0 0.0
      %3871 = vmatpush1.msra.mxu0 0.0
      %3872 = vmatprep.subr.mxu0 0.0
      %3873 = vmatpush1.msra.mxu0 0.0
      %3874 = vmatprep.subr.mxu0 0.0
      %3875 = vmatpush1.msra.mxu0 0.0
      %3876 = vmatprep.subr.mxu0 0.0
      %3877 = vmatpush1.msra.mxu0 0.0
      %3878 = vmatprep.subr.mxu0 0.0
      %3879 = vmatpush1.msra.mxu0 0.0
      %3880 = vmatprep.subr.mxu0 0.0
      %3881 = vmatpush1.msra.mxu0 0.0
      %3882 = vmatprep.subr.mxu0 0.0
      %3883 = vmatpush1.msra.mxu0 0.0
      %3884 = vmatprep.subr.mxu0 0.0
      %3885 = vmatpush1.msra.mxu0 0.0
      %3886 = vmatprep.subr.mxu0 0.0
      %3887 = vmatpush1.msra.mxu0 0.0
      %3888 = vmatprep.subr.mxu0 0.0
      %3889 = vmatpush1.msra.mxu0 0.0
      %3890 = vmatprep.subr.mxu0 0.0
      %3891 = vmatpush1.msra.mxu0 0.0
      %3892 = vmatprep.subr.mxu0 0.0
      %3893 = vmatpush1.msra.mxu0 0.0
      %3894 = vmatprep.subr.mxu0 0.0
      %3895 = vmatpush1.msra.mxu0 0.0
      %3896 = vmatprep.subr.mxu0 0.0
      %3897 = vmatpush1.msra.mxu0 0.0
      %3898 = vmatprep.mubr.f32.mxu0 0.0
      %3899 = vmatmul.mubr.f32.gmra.mrb[0].mxu0 %v3832
      %v3900 = vpop.f32.mrb[0].mxu0
      %v3901 = vadd.f32 %v3826, %v3900
      %v3902 = vpop.f32.mrb[0].mxu0
      %3903 = vdwg.mxu0
      %vm3904 = vcmask 254976
      %3905 = vst.msk [vmem:[#allocation2] sm:$0x3] %vm3904, %v3901
    $region77: #{base_qualifier_forward.1} parent=1 // pred_fallthru
      _
    %v3906 = vld [vmem:[#allocation2] sm:$0x3]
    %v3907 = vld [vmem:[%s17] sm:$0xff]
    %v3908 = vld [vmem:[%s17 + $0x8] sm:$0xff]
    %v3909 = vld [vmem:[%s17 + $0x10] sm:$0xff]
    %v3910 = vld [vmem:[%s17 + $0x18] sm:$0xff]
    %vm3911 = vcmask 261120
    %v3913 = vsel %vm3911, %v3906, 0
    %3915 = vmatprep.subr.mxu0 0.0
    %3916 = vmatpush1.msra.mxu0 %v3907
    %3917 = vmatprep.subr.mxu0 0.0
    %3918 = vmatpush1.msra.mxu0 %v3908
    %3919 = vmatprep.subr.mxu0 0.0
    %3920 = vmatpush1.msra.mxu0 %v3909
    %3921 = vmatprep.subr.mxu0 0.0
    %3922 = vmatpush1.msra.mxu0 %v3910
    %3923 = vmatprep.subr.mxu0 0.0
    %3924 = vmatpush1.msra.mxu0 0.0
    %3925 = vmatprep.subr.mxu0 0.0
    %3926 = vmatpush1.msra.mxu0 0.0
    %3927 = vmatprep.subr.mxu0 0.0
    %3928 = vmatpush1.msra.mxu0 0.0
    %3929 = vmatprep.subr.mxu0 0.0
    %3930 = vmatpush1.msra.mxu0 0.0
    %3931 = vmatprep.subr.mxu0 0.0
    %3932 = vmatpush1.msra.mxu0 0.0
    %3933 = vmatprep.subr.mxu0 0.0
    %3934 = vmatpush1.msra.mxu0 0.0
    %3935 = vmatprep.subr.mxu0 0.0
    %3936 = vmatpush1.msra.mxu0 0.0
    %3937 = vmatprep.subr.mxu0 0.0
    %3938 = vmatpush1.msra.mxu0 0.0
    %3939 = vmatprep.subr.mxu0 0.0
    %3940 = vmatpush1.msra.mxu0 0.0
    %3941 = vmatprep.subr.mxu0 0.0
    %3942 = vmatpush1.msra.mxu0 0.0
    %3943 = vmatprep.subr.mxu0 0.0
    %3944 = vmatpush1.msra.mxu0 0.0
    %3945 = vmatprep.subr.mxu0 0.0
    %3946 = vmatpush1.msra.mxu0 0.0
    %3947 = vmatprep.subr.mxu0 0.0
    %3948 = vmatpush1.msra.mxu0 0.0
    %3949 = vmatprep.subr.mxu0 0.0
    %3950 = vmatpush1.msra.mxu0 0.0
    %3951 = vmatprep.subr.mxu0 0.0
    %3952 = vmatpush1.msra.mxu0 0.0
    %3953 = vmatprep.subr.mxu0 0.0
    %3954 = vmatpush1.msra.mxu0 0.0
    %3955 = vmatprep.subr.mxu0 0.0
    %3956 = vmatpush1.msra.mxu0 0.0
    %3957 = vmatprep.subr.mxu0 0.0
    %3958 = vmatpush1.msra.mxu0 0.0
    %3959 = vmatprep.subr.mxu0 0.0
    %3960 = vmatpush1.msra.mxu0 0.0
    %3961 = vmatprep.subr.mxu0 0.0
    %3962 = vmatpush1.msra.mxu0 0.0
    %3963 = vmatprep.subr.mxu0 0.0
    %3964 = vmatpush1.msra.mxu0 0.0
    %3965 = vmatprep.subr.mxu0 0.0
    %3966 = vmatpush1.msra.mxu0 0.0
    %3967 = vmatprep.subr.mxu0 0.0
    %3968 = vmatpush1.msra.mxu0 0.0
    %3969 = vmatprep.subr.mxu0 0.0
    %3970 = vmatpush1.msra.mxu0 0.0
    %3971 = vmatprep.subr.mxu0 0.0
    %3972 = vmatpush1.msra.mxu0 0.0
    %3973 = vmatprep.subr.mxu0 0.0
    %3974 = vmatpush1.msra.mxu0 0.0
    %3975 = vmatprep.subr.mxu0 0.0
    %3976 = vmatpush1.msra.mxu0 0.0
    %3977 = vmatprep.subr.mxu0 0.0
    %3978 = vmatpush1.msra.mxu0 0.0
    %3979 = vmatprep.mubr.f32.mxu0 0.0
    %3980 = vmatmul.mubr.f32.gmra.mrb[0].mxu0 %v3913
    %v3981 = vpop.f32.mrb[0].mxu0
    %v3982 = vadd.f32 0.0, %v3981
    %v3983 = vpop.f32.mrb[0].mxu0
    %3984 = vdwg.mxu0
    %vm3985 = vcmask 123904
    %3986 = vst.msk [vmem:[#allocation3] sm:$0x3] %vm3985, %v3982
    // Predicated region
    $region78: #{base_qualifier_forward.1} parent=1 // pred_check
      _
    $region79: #{base_qualifier_forward.1} parent=1 // pred_check_branch
      %3988 = sbr.rel (0) target = $region81
    $region80: #{base_qualifier_forward.1} parent=1 // pred_region
      %s3990 = ssub.s32 32, 32
      %3991 = vsyncadd [#allocation4], %s3990
      %s3993 = sshll.u32 [#allocation3], 4
      %s3994 = int_to_ptr.vmem [resolvable:$true] %s3993
      %3996 = dma.vmem_to_hbm [thread:$0]  %s3994, 32, %s18, [#allocation4]
    $region81: #{base_qualifier_forward.1} parent=1 // pred_fallthru
      _
    // Predicated region
    $region82: #{base_qualifier_forward.1} parent=1 // pred_check
      _
    $region83: #{base_qualifier_forward.1} parent=1 // pred_check_branch
      %3998 = sbr.rel (0) target = $region85
    $region84: #{base_qualifier_forward.1} parent=1 // pred_region
      %3999 = dma.done [#allocation4], 32
    $region85: #{base_qualifier_forward.1} parent=1 // pred_fallthru
      _
    %4000 = vsyncpa [#allocation4], 1

</llo_original>
